<compile_context>
chip_gen: v7x
topology: tpu7x:2x2x1
jax: 0.10.0
libtpu: 0.0.40
codegen_flags: <defaults>
</compile_context>

<pallas_src>
import jax
import jax.numpy as jnp
from jax import lax
from jax.experimental import pallas as pl
from jax.experimental.pallas import tpu as pltpu

HIDDEN = 64
SEQ = 80
NUM_CLASSES = 3


# ----------------------------------------------------------------------------
# Kernel
# ----------------------------------------------------------------------------
def lstm_net_kernel(x_ref, wf_ref, wrow_ref, brow_ref, wfc_ref, bfc_ref,
                    out_ref, xadd_ref):
    H = HIDDEN
    NG = 8 * H                                          # 512 fused gate cols
    Bblk = x_ref.shape[0]

    # ---- one-shot precompute (off the serial chain) -------------------------
    #   xadd[t, b, :] = x[t, b] * wrow   (layer-1 columns of wrow are zero)
    # chunked over SEQ so the f32 intermediate stays small (< 4 MiB).
    xt = x_ref[...].T                                   # (SEQ, Bblk) f32
    wrow = wrow_ref[...].reshape(1, 1, NG)              # (1, 1, 512) f32
    CH = 8
    for c in range(SEQ // CH):                          # static, one-shot
        sl = slice(c * CH, (c + 1) * CH)
        xadd_ref[sl] = (xt[sl, :, None] * wrow).astype(jnp.bfloat16)

    brow = brow_ref[...]                                # (1, 512) f32 biases

    def fused(hp, cp, t):
        # hp: (Bblk, 128) bf16 = [h0(t-1) | h1(t-2)]
        # cp: (Bblk, 128) f32  = [c0(t-1) | c1(t-2)]
        gates = (jnp.dot(hp, wf_ref[...],
                         preferred_element_type=jnp.float32)
                 + xadd_ref[t] + brow)                  # (Bblk, 512) f32
        # column layout: [i0 i1 | f0 f1 | o0 o1 | g0 g1]
        sig = 0.5 * jnp.tanh(0.5 * gates[:, 0:6 * H]) + 0.5   # i,f,o on EUP
        i = sig[:, 0:2 * H]
        f = sig[:, 2 * H:4 * H]
        o = sig[:, 4 * H:6 * H]
        g = jnp.tanh(gates[:, 6 * H:8 * H])
        cn = f * cp + i * g                             # [c0(t) | c1(t-1)]
        hn = o * jnp.tanh(cn)                           # [h0(t) | h1(t-1)] f32
        return hn, cn

    def step(k, carry):
        hp, cp = carry
        hn, cn = fused(hp, cp, k)
        return hn.astype(jnp.bfloat16), cn

    # prologue (t = 0): layer-0 half is real, layer-1 half is junk -> mask to 0
    zeros_h = jnp.zeros((Bblk, 2 * H), jnp.bfloat16)
    zeros_c = jnp.zeros((Bblk, 2 * H), jnp.float32)
    hn, cn = fused(zeros_h, zeros_c, 0)
    lane = lax.broadcasted_iota(jnp.int32, (1, 2 * H), 1)
    l0 = lane < H
    hp = jnp.where(l0, hn, 0.0).astype(jnp.bfloat16)
    cp = jnp.where(l0, cn, 0.0)

    # software-pipelined recurrence: iteration k runs layer0(k) and layer1(k-1)
    UNROLL = 4
    n_main = ((SEQ - 1) // UNROLL) * UNROLL             # 76 pipelined steps

    def step_unrolled(j, carry):
        k0 = 1 + j * UNROLL
        for u in range(UNROLL):                         # manual 4x unroll
            carry = step(k0 + u, carry)
        return carry

    carry = lax.fori_loop(0, n_main // UNROLL, step_unrolled, (hp, cp))
    for k in range(1 + n_main, SEQ):                    # static remainder
        carry = step(k, carry)
    hp, cp = carry
    hn, _ = fused(hp, cp, SEQ - 1)                      # drain: layer1 @ t=79
    h1 = hn[:, H:2 * H]                                 # (Bblk, 64) f32

    # ReLU -> Linear(64, 3) -> softmax over classes
    feat = jnp.maximum(h1, 0.0)
    logits = (jnp.dot(feat, wfc_ref[...],
                      preferred_element_type=jnp.float32) + bfc_ref[...])
    logits = logits - jnp.max(logits, axis=1, keepdims=True)
    e = jnp.exp(logits)
    out_ref[...] = e / jnp.sum(e, axis=1, keepdims=True)


# ----------------------------------------------------------------------------
# Parameters
# ----------------------------------------------------------------------------
def init_raw_params(key):
    """PyTorch-style raw params: U(-1/sqrt(H), 1/sqrt(H)), gate order [i,f,g,o]."""
    ks = jax.random.split(key, 10)
    s = 1.0 / (HIDDEN ** 0.5)

    def u(k, shape):
        return jax.random.uniform(k, shape, jnp.float32, -s, s)

    return dict(
        w_ih_l0=u(ks[0], (4 * HIDDEN, 1)),
        w_hh_l0=u(ks[1], (4 * HIDDEN, HIDDEN)),
        b_ih_l0=u(ks[2], (4 * HIDDEN,)),
        b_hh_l0=u(ks[3], (4 * HIDDEN,)),
        w_ih_l1=u(ks[4], (4 * HIDDEN, HIDDEN)),
        w_hh_l1=u(ks[5], (4 * HIDDEN, HIDDEN)),
        b_ih_l1=u(ks[6], (4 * HIDDEN,)),
        b_hh_l1=u(ks[7], (4 * HIDDEN,)),
        w_fc=u(ks[8], (NUM_CLASSES, HIDDEN)),
        b_fc=u(ks[9], (NUM_CLASSES,)),
    )


def pack_params(raw):
    """Build the fused-kernel layout from PyTorch-style raw params.

    PyTorch packs gate rows as [i, f, g, o]; the kernel uses gate blocks
    [i, f, o, g], each 128 wide and interleaved as [layer0 (64) | layer1 (64)].
    Fused recurrent weight (128, 512) bf16:
        rows  0: 64 -> [W_hh0 | W_ih1]
        rows 64:128 -> [  0   | W_hh1]
    """
    H = HIDDEN
    gate_rows = (slice(0, H), slice(H, 2 * H), slice(3 * H, 4 * H),
                 slice(2 * H, 3 * H))                    # i, f, o, g (torch rows)
    whh0 = raw["w_hh_l0"].T                              # (64, 256)
    wih1 = raw["w_ih_l1"].T                              # (64, 256)
    whh1 = raw["w_hh_l1"].T                              # (64, 256)
    wih0 = raw["w_ih_l0"][:, 0]                          # (256,)
    b0 = raw["b_ih_l0"] + raw["b_hh_l0"]                 # (256,)
    b1 = raw["b_ih_l1"] + raw["b_hh_l1"]                 # (256,)

    zcol = jnp.zeros((H, H), jnp.float32)
    zrow = jnp.zeros((H,), jnp.float32)
    wf_blocks, wrow_blocks, brow_blocks = [], [], []
    for gs in gate_rows:
        top = jnp.concatenate([whh0[:, gs], wih1[:, gs]], axis=1)     # (64,128)
        bot = jnp.concatenate([zcol, whh1[:, gs]], axis=1)            # (64,128)
        wf_blocks.append(jnp.concatenate([top, bot], axis=0))         # (128,128)
        wrow_blocks.append(jnp.concatenate([wih0[gs], zrow]))         # (128,)
        brow_blocks.append(jnp.concatenate([b0[gs], b1[gs]]))         # (128,)

    wf = jnp.concatenate(wf_blocks, axis=1).astype(jnp.bfloat16)      # (128,512)
    wrow = jnp.concatenate(wrow_blocks).reshape(1, 8 * H)             # (1, 512)
    brow = jnp.concatenate(brow_blocks).reshape(1, 8 * H)             # (1, 512)
    wfc = raw["w_fc"].T                                               # (64, 3)
    bfc = raw["b_fc"].reshape(1, NUM_CLASSES)                         # (1, 3)
    return (wf, wrow, brow, wfc, bfc)


# ----------------------------------------------------------------------------
# Wrapper
# ----------------------------------------------------------------------------
def _round_up(n, m):
    return ((n + m - 1) // m) * m


def _is_v7x():
    try:
        return "v7" in jax.devices()[0].device_kind.lower()
    except Exception:
        return False


_MAX_BLOCK = 256   # rows/block: bf16 xadd scratch = 80*256*512*2 = 20 MiB (v7x-safe)


def _pick_block(B):
    b8 = _round_up(max(B, 1), 8)
    if b8 > _MAX_BLOCK:
        return _MAX_BLOCK
    if _is_v7x() and b8 >= 16:
        # split into 2 parallel blocks so both v7x TensorCores run a chain
        return min(_MAX_BLOCK, _round_up(-(-B // 2), 8))
    return b8


def net_forward(x, params):
    """x: any float array reshapeable to (-1, 80) (matches x.view(-1, 80))."""
    x = jnp.asarray(x, jnp.float32).reshape(-1, SEQ)
    B = x.shape[0]
    bp_block = _pick_block(B)
    B_pad = _round_up(B, bp_block)
    xp = jnp.zeros((B_pad, SEQ), jnp.float32).at[:B].set(x)

    scratch_bytes = SEQ * bp_block * 8 * HIDDEN * 2         # bf16 xadd scratch
    vmem_limit = min(60 << 20, scratch_bytes + (24 << 20))  # v5e default is 16 MiB

    vmem = pl.BlockSpec(memory_space=pltpu.MemorySpace.VMEM)
    out = pl.pallas_call(
        lstm_net_kernel,
        out_shape=jax.ShapeDtypeStruct((B_pad, NUM_CLASSES), jnp.float32),
        grid_spec=pltpu.PrefetchScalarGridSpec(
            num_scalar_prefetch=0,
            grid=(B_pad // bp_block,),
            in_specs=[pl.BlockSpec((bp_block, SEQ), lambda b: (b, 0))]
                     + [vmem] * 5,
            out_specs=pl.BlockSpec((bp_block, NUM_CLASSES), lambda b: (b, 0)),
            scratch_shapes=[pltpu.VMEM((SEQ, bp_block, 8 * HIDDEN),
                                       jnp.bfloat16)],
        ),
        compiler_params=pltpu.CompilerParams(
            dimension_semantics=("parallel",),               # megacore on v7x
            vmem_limit_bytes=int(vmem_limit)),
    )(xp, *params)
    return out[:B]                                           # (B, 3) probs


# ----------------------------------------------------------------------------
# Pure-JAX reference (matches the PyTorch module exactly)
# ----------------------------------------------------------------------------
def net_forward_ref(x, raw):
    x = jnp.asarray(x, jnp.float32).reshape(-1, SEQ)
    B = x.shape[0]
    H = HIDDEN

    def cell(h, c, gates):
        i = jax.nn.sigmoid(gates[:, 0:H])
        f = jax.nn.sigmoid(gates[:, H:2 * H])
        g = jnp.tanh(gates[:, 2 * H:3 * H])
        o = jax.nn.sigmoid(gates[:, 3 * H:4 * H])
        c = f * c + i * g
        h = o * jnp.tanh(c)
        return h, c

    def step(carry, x_t):
        h0, c0, h1, c1 = carry
        g0 = (x_t @ raw["w_ih_l0"].T + h0 @ raw["w_hh_l0"].T
              + raw["b_ih_l0"] + raw["b_hh_l0"])
        h0, c0 = cell(h0, c0, g0)
        g1 = (h0 @ raw["w_ih_l1"].T + h1 @ raw["w_hh_l1"].T
              + raw["b_ih_l1"] + raw["b_hh_l1"])
        h1, c1 = cell(h1, c1, g1)
        return (h0, c0, h1, c1), None

    zeros = jnp.zeros((B, H), jnp.float32)
    xs = x.T[:, :, None]                                     # (SEQ, B, 1)
    (_, _, h1, _), _ = lax.scan(step, (zeros, zeros, zeros, zeros), xs)
    feat = jnp.maximum(h1, 0.0)
    logits = feat @ raw["w_fc"].T + raw["b_fc"]
    return jax.nn.softmax(logits, axis=1)


if __name__ == "__main__":
    key = jax.random.PRNGKey(0)
    pkey, xkey = jax.random.split(key)
    raw = init_raw_params(pkey)
    params = pack_params(raw)

    ref_fn = jax.jit(net_forward_ref)

    for batch in (2, 32):
        x = jax.random.normal(jax.random.fold_in(xkey, batch), (batch, SEQ),
                              jnp.float32)
        probs = net_forward(x, params)
        jax.block_until_ready(probs)

        ref = ref_fn(x, raw)
        assert probs.shape == (batch, NUM_CLASSES)
        row_sums = jnp.sum(probs, axis=1)
        assert bool(jnp.all(jnp.abs(row_sums - 1.0) < 1e-5))
        # bf16 MXU operands + bf16 additive-term scratch -> slightly looser
        # tolerance than a pure-f32 path; gate math / c-state stay f32.
        assert bool(jnp.allclose(probs, ref, atol=2e-3, rtol=2e-3))

    print("KERNEL_OK")
</pallas_src>

<mosaic_0001>
module attributes {stable_mosaic.version = 11 : i64} {
  func.func @lstm_net_kernel(%arg0: i32, %arg1: memref<8x80xf32, #tpu.memory_space<vmem>>, %arg2: memref<128x512xbf16, #tpu.memory_space<vmem>>, %arg3: memref<1x512xf32, #tpu.memory_space<vmem>>, %arg4: memref<1x512xf32, #tpu.memory_space<vmem>>, %arg5: memref<64x3xf32, #tpu.memory_space<vmem>>, %arg6: memref<1x3xf32, #tpu.memory_space<vmem>>, %arg7: memref<8x3xf32, #tpu.memory_space<vmem>>, %arg8: memref<80x8x512xbf16, #tpu.memory_space<vmem>>) attributes {dimension_semantics = [#tpu.dimension_semantics<parallel>], iteration_bounds = array<i64: 1>, scalar_prefetch = 0 : i64, scratch_operands = 1 : i64, tpu.core_type = #tpu.core_type<tc>, window_params = [{transform_indices = @transform_0, window_bounds = array<i64: 8, 80>}, {pipeline_mode = #tpu.pipeline_mode<synchronous>, transform_indices = @transform_1, window_bounds = array<i64: 128, 512>}, {pipeline_mode = #tpu.pipeline_mode<synchronous>, transform_indices = @transform_2, window_bounds = array<i64: 1, 512>}, {pipeline_mode = #tpu.pipeline_mode<synchronous>, transform_indices = @transform_3, window_bounds = array<i64: 1, 512>}, {pipeline_mode = #tpu.pipeline_mode<synchronous>, transform_indices = @transform_4, window_bounds = array<i64: 64, 3>}, {pipeline_mode = #tpu.pipeline_mode<synchronous>, transform_indices = @transform_5, window_bounds = array<i64: 1, 3>}, {transform_indices = @transform_6, window_bounds = array<i64: 8, 3>}]} {
    %c0 = arith.constant 0 : index
    %c0_0 = arith.constant 0 : index
    %0 = vector.load %arg1[%c0, %c0_0] : memref<8x80xf32, #tpu.memory_space<vmem>>, vector<8x80xf32>
    %1 = tpu.transpose %0, [1, 0] : vector<8x80xf32> -> vector<80x8xf32>
    %c0_1 = arith.constant 0 : index
    %c0_2 = arith.constant 0 : index
    %2 = vector.load %arg3[%c0_1, %c0_2] : memref<1x512xf32, #tpu.memory_space<vmem>>, vector<1x512xf32>
    %3 = vector.shape_cast %2 : vector<1x512xf32> to vector<1x1x512xf32>
    %4 = vector.extract_strided_slice %1 {offsets = [0, 0], sizes = [8, 8], strides = [1, 1]} : vector<80x8xf32> to vector<8x8xf32>
    %5 = vector.shape_cast %4 : vector<8x8xf32> to vector<8x8x1xf32>
    %6 = vector.broadcast %5 : vector<8x8x1xf32> to vector<8x8x512xf32>
    %7 = vector.broadcast %3 : vector<1x1x512xf32> to vector<8x8x512xf32>
    %8 = arith.mulf %6, %7 : vector<8x8x512xf32>
    %9 = arith.truncf %8 : vector<8x8x512xf32> to vector<8x8x512xbf16>
    %c0_3 = arith.constant 0 : index
    %c0_4 = arith.constant 0 : index
    %c0_5 = arith.constant 0 : index
    %10 = vector.load %arg8[%c0_3, %c0_4, %c0_5] : memref<80x8x512xbf16, #tpu.memory_space<vmem>>, vector<8x8x512xbf16>
    tpu.vector_store %arg8[%c0_3, %c0_4, %c0_5], %9 {strides = array<i32>} : memref<80x8x512xbf16, #tpu.memory_space<vmem>>, vector<8x8x512xbf16>,
    %11 = vector.extract_strided_slice %1 {offsets = [8, 0], sizes = [8, 8], strides = [1, 1]} : vector<80x8xf32> to vector<8x8xf32>
    %12 = vector.shape_cast %11 : vector<8x8xf32> to vector<8x8x1xf32>
    %13 = vector.broadcast %12 : vector<8x8x1xf32> to vector<8x8x512xf32>
    %14 = vector.broadcast %3 : vector<1x1x512xf32> to vector<8x8x512xf32>
    %15 = arith.mulf %13, %14 : vector<8x8x512xf32>
    %16 = arith.truncf %15 : vector<8x8x512xf32> to vector<8x8x512xbf16>
    %c8 = arith.constant 8 : index
    %c0_6 = arith.constant 0 : index
    %c0_7 = arith.constant 0 : index
    %17 = vector.load %arg8[%c8, %c0_6, %c0_7] : memref<80x8x512xbf16, #tpu.memory_space<vmem>>, vector<8x8x512xbf16>
    tpu.vector_store %arg8[%c8, %c0_6, %c0_7], %16 {strides = array<i32>} : memref<80x8x512xbf16, #tpu.memory_space<vmem>>, vector<8x8x512xbf16>,
    %18 = vector.extract_strided_slice %1 {offsets = [16, 0], sizes = [8, 8], strides = [1, 1]} : vector<80x8xf32> to vector<8x8xf32>
    %19 = vector.shape_cast %18 : vector<8x8xf32> to vector<8x8x1xf32>
    %20 = vector.broadcast %19 : vector<8x8x1xf32> to vector<8x8x512xf32>
    %21 = vector.broadcast %3 : vector<1x1x512xf32> to vector<8x8x512xf32>
    %22 = arith.mulf %20, %21 : vector<8x8x512xf32>
    %23 = arith.truncf %22 : vector<8x8x512xf32> to vector<8x8x512xbf16>
    %c16 = arith.constant 16 : index
    %c0_8 = arith.constant 0 : index
    %c0_9 = arith.constant 0 : index
    %24 = vector.load %arg8[%c16, %c0_8, %c0_9] : memref<80x8x512xbf16, #tpu.memory_space<vmem>>, vector<8x8x512xbf16>
    tpu.vector_store %arg8[%c16, %c0_8, %c0_9], %23 {strides = array<i32>} : memref<80x8x512xbf16, #tpu.memory_space<vmem>>, vector<8x8x512xbf16>,
    %25 = vector.extract_strided_slice %1 {offsets = [24, 0], sizes = [8, 8], strides = [1, 1]} : vector<80x8xf32> to vector<8x8xf32>
    %26 = vector.shape_cast %25 : vector<8x8xf32> to vector<8x8x1xf32>
    %27 = vector.broadcast %26 : vector<8x8x1xf32> to vector<8x8x512xf32>
    %28 = vector.broadcast %3 : vector<1x1x512xf32> to vector<8x8x512xf32>
    %29 = arith.mulf %27, %28 : vector<8x8x512xf32>
    %30 = arith.truncf %29 : vector<8x8x512xf32> to vector<8x8x512xbf16>
    %c24 = arith.constant 24 : index
    %c0_10 = arith.constant 0 : index
    %c0_11 = arith.constant 0 : index
    %31 = vector.load %arg8[%c24, %c0_10, %c0_11] : memref<80x8x512xbf16, #tpu.memory_space<vmem>>, vector<8x8x512xbf16>
    tpu.vector_store %arg8[%c24, %c0_10, %c0_11], %30 {strides = array<i32>} : memref<80x8x512xbf16, #tpu.memory_space<vmem>>, vector<8x8x512xbf16>,
    %32 = vector.extract_strided_slice %1 {offsets = [32, 0], sizes = [8, 8], strides = [1, 1]} : vector<80x8xf32> to vector<8x8xf32>
    %33 = vector.shape_cast %32 : vector<8x8xf32> to vector<8x8x1xf32>
    %34 = vector.broadcast %33 : vector<8x8x1xf32> to vector<8x8x512xf32>
    %35 = vector.broadcast %3 : vector<1x1x512xf32> to vector<8x8x512xf32>
    %36 = arith.mulf %34, %35 : vector<8x8x512xf32>
    %37 = arith.truncf %36 : vector<8x8x512xf32> to vector<8x8x512xbf16>
    %c32 = arith.constant 32 : index
    %c0_12 = arith.constant 0 : index
    %c0_13 = arith.constant 0 : index
    %38 = vector.load %arg8[%c32, %c0_12, %c0_13] : memref<80x8x512xbf16, #tpu.memory_space<vmem>>, vector<8x8x512xbf16>
    tpu.vector_store %arg8[%c32, %c0_12, %c0_13], %37 {strides = array<i32>} : memref<80x8x512xbf16, #tpu.memory_space<vmem>>, vector<8x8x512xbf16>,
    %39 = vector.extract_strided_slice %1 {offsets = [40, 0], sizes = [8, 8], strides = [1, 1]} : vector<80x8xf32> to vector<8x8xf32>
    %40 = vector.shape_cast %39 : vector<8x8xf32> to vector<8x8x1xf32>
    %41 = vector.broadcast %40 : vector<8x8x1xf32> to vector<8x8x512xf32>
    %42 = vector.broadcast %3 : vector<1x1x512xf32> to vector<8x8x512xf32>
    %43 = arith.mulf %41, %42 : vector<8x8x512xf32>
    %44 = arith.truncf %43 : vector<8x8x512xf32> to vector<8x8x512xbf16>
    %c40 = arith.constant 40 : index
    %c0_14 = arith.constant 0 : index
    %c0_15 = arith.constant 0 : index
    %45 = vector.load %arg8[%c40, %c0_14, %c0_15] : memref<80x8x512xbf16, #tpu.memory_space<vmem>>, vector<8x8x512xbf16>
    tpu.vector_store %arg8[%c40, %c0_14, %c0_15], %44 {strides = array<i32>} : memref<80x8x512xbf16, #tpu.memory_space<vmem>>, vector<8x8x512xbf16>,
    %46 = vector.extract_strided_slice %1 {offsets = [48, 0], sizes = [8, 8], strides = [1, 1]} : vector<80x8xf32> to vector<8x8xf32>
    %47 = vector.shape_cast %46 : vector<8x8xf32> to vector<8x8x1xf32>
    %48 = vector.broadcast %47 : vector<8x8x1xf32> to vector<8x8x512xf32>
    %49 = vector.broadcast %3 : vector<1x1x512xf32> to vector<8x8x512xf32>
    %50 = arith.mulf %48, %49 : vector<8x8x512xf32>
    %51 = arith.truncf %50 : vector<8x8x512xf32> to vector<8x8x512xbf16>
    %c48 = arith.constant 48 : index
    %c0_16 = arith.constant 0 : index
    %c0_17 = arith.constant 0 : index
    %52 = vector.load %arg8[%c48, %c0_16, %c0_17] : memref<80x8x512xbf16, #tpu.memory_space<vmem>>, vector<8x8x512xbf16>
    tpu.vector_store %arg8[%c48, %c0_16, %c0_17], %51 {strides = array<i32>} : memref<80x8x512xbf16, #tpu.memory_space<vmem>>, vector<8x8x512xbf16>,
    %53 = vector.extract_strided_slice %1 {offsets = [56, 0], sizes = [8, 8], strides = [1, 1]} : vector<80x8xf32> to vector<8x8xf32>
    %54 = vector.shape_cast %53 : vector<8x8xf32> to vector<8x8x1xf32>
    %55 = vector.broadcast %54 : vector<8x8x1xf32> to vector<8x8x512xf32>
    %56 = vector.broadcast %3 : vector<1x1x512xf32> to vector<8x8x512xf32>
    %57 = arith.mulf %55, %56 : vector<8x8x512xf32>
    %58 = arith.truncf %57 : vector<8x8x512xf32> to vector<8x8x512xbf16>
    %c56 = arith.constant 56 : index
    %c0_18 = arith.constant 0 : index
    %c0_19 = arith.constant 0 : index
    %59 = vector.load %arg8[%c56, %c0_18, %c0_19] : memref<80x8x512xbf16, #tpu.memory_space<vmem>>, vector<8x8x512xbf16>
    tpu.vector_store %arg8[%c56, %c0_18, %c0_19], %58 {strides = array<i32>} : memref<80x8x512xbf16, #tpu.memory_space<vmem>>, vector<8x8x512xbf16>,
    %60 = vector.extract_strided_slice %1 {offsets = [64, 0], sizes = [8, 8], strides = [1, 1]} : vector<80x8xf32> to vector<8x8xf32>
    %61 = vector.shape_cast %60 : vector<8x8xf32> to vector<8x8x1xf32>
    %62 = vector.broadcast %61 : vector<8x8x1xf32> to vector<8x8x512xf32>
    %63 = vector.broadcast %3 : vector<1x1x512xf32> to vector<8x8x512xf32>
    %64 = arith.mulf %62, %63 : vector<8x8x512xf32>
    %65 = arith.truncf %64 : vector<8x8x512xf32> to vector<8x8x512xbf16>
    %c64 = arith.constant 64 : index
    %c0_20 = arith.constant 0 : index
    %c0_21 = arith.constant 0 : index
    %66 = vector.load %arg8[%c64, %c0_20, %c0_21] : memref<80x8x512xbf16, #tpu.memory_space<vmem>>, vector<8x8x512xbf16>
    tpu.vector_store %arg8[%c64, %c0_20, %c0_21], %65 {strides = array<i32>} : memref<80x8x512xbf16, #tpu.memory_space<vmem>>, vector<8x8x512xbf16>,
    %67 = vector.extract_strided_slice %1 {offsets = [72, 0], sizes = [8, 8], strides = [1, 1]} : vector<80x8xf32> to vector<8x8xf32>
    %68 = vector.shape_cast %67 : vector<8x8xf32> to vector<8x8x1xf32>
    %69 = vector.broadcast %68 : vector<8x8x1xf32> to vector<8x8x512xf32>
    %70 = vector.broadcast %3 : vector<1x1x512xf32> to vector<8x8x512xf32>
    %71 = arith.mulf %69, %70 : vector<8x8x512xf32>
    %72 = arith.truncf %71 : vector<8x8x512xf32> to vector<8x8x512xbf16>
    %c72 = arith.constant 72 : index
    %c0_22 = arith.constant 0 : index
    %c0_23 = arith.constant 0 : index
    %73 = vector.load %arg8[%c72, %c0_22, %c0_23] : memref<80x8x512xbf16, #tpu.memory_space<vmem>>, vector<8x8x512xbf16>
    tpu.vector_store %arg8[%c72, %c0_22, %c0_23], %72 {strides = array<i32>} : memref<80x8x512xbf16, #tpu.memory_space<vmem>>, vector<8x8x512xbf16>,
    %c0_24 = arith.constant 0 : index
    %c0_25 = arith.constant 0 : index
    %74 = vector.load %arg4[%c0_24, %c0_25] : memref<1x512xf32, #tpu.memory_space<vmem>>, vector<1x512xf32>
    %cst = arith.constant 0.000000e+00 : bf16
    %75 = vector.broadcast %cst : bf16 to vector<8x128xbf16>
    %cst_26 = arith.constant 0.000000e+00 : f32
    %76 = vector.broadcast %cst_26 : f32 to vector<8x128xf32>
    %c0_27 = arith.constant 0 : index
    %c0_28 = arith.constant 0 : index
    %77 = vector.load %arg2[%c0_27, %c0_28] : memref<128x512xbf16, #tpu.memory_space<vmem>>, vector<128x512xbf16>
    %cst_29 = arith.constant dense<0.000000e+00> : vector<8x512xf32>
    %78 = tpu.matmul %75, %77, %cst_29 {dimension_numbers = #tpu.dot_dimension_numbers<[1], [0], [0], [1], [0, 0, 1, 1], [], []>} : vector<8x128xbf16>, vector<128x512xbf16>, vector<8x512xf32> -> vector<8x512xf32>
    %c0_30 = arith.constant 0 : index
    %c0_31 = arith.constant 0 : index
    %c0_32 = arith.constant 0 : index
    %79 = vector.load %arg8[%c0_30, %c0_31, %c0_32] : memref<80x8x512xbf16, #tpu.memory_space<vmem>>, vector<1x8x512xbf16>
    %80 = vector.shape_cast %79 : vector<1x8x512xbf16> to vector<8x512xbf16>
    %81 = arith.extf %80 : vector<8x512xbf16> to vector<8x512xf32>
    %82 = arith.addf %78, %81 : vector<8x512xf32>
    %83 = vector.broadcast %74 : vector<1x512xf32> to vector<8x512xf32>
    %84 = arith.addf %82, %83 : vector<8x512xf32>
    %85 = vector.extract_strided_slice %84 {offsets = [0, 0], sizes = [8, 384], strides = [1, 1]} : vector<8x512xf32> to vector<8x384xf32>
    %cst_33 = arith.constant 5.000000e-01 : f32
    %86 = vector.broadcast %cst_33 : f32 to vector<8x384xf32>
    %87 = arith.mulf %86, %85 : vector<8x384xf32>
    %88 = math.tanh %87 : vector<8x384xf32>
    %cst_34 = arith.constant 5.000000e-01 : f32
    %89 = vector.broadcast %cst_34 : f32 to vector<8x384xf32>
    %90 = arith.mulf %89, %88 : vector<8x384xf32>
    %cst_35 = arith.constant 5.000000e-01 : f32
    %91 = vector.broadcast %cst_35 : f32 to vector<8x384xf32>
    %92 = arith.addf %90, %91 : vector<8x384xf32>
    %93 = vector.extract_strided_slice %92 {offsets = [0, 0], sizes = [8, 128], strides = [1, 1]} : vector<8x384xf32> to vector<8x128xf32>
    %94 = vector.extract_strided_slice %92 {offsets = [0, 128], sizes = [8, 128], strides = [1, 1]} : vector<8x384xf32> to vector<8x128xf32>
    %95 = vector.extract_strided_slice %92 {offsets = [0, 256], sizes = [8, 128], strides = [1, 1]} : vector<8x384xf32> to vector<8x128xf32>
    %96 = vector.extract_strided_slice %84 {offsets = [0, 384], sizes = [8, 128], strides = [1, 1]} : vector<8x512xf32> to vector<8x128xf32>
    %97 = math.tanh %96 : vector<8x128xf32>
    %98 = arith.mulf %94, %76 : vector<8x128xf32>
    %99 = arith.mulf %93, %97 : vector<8x128xf32>
    %100 = arith.addf %98, %99 : vector<8x128xf32>
    %101 = math.tanh %100 : vector<8x128xf32>
    %102 = arith.mulf %95, %101 : vector<8x128xf32>
    %103 = tpu.iota {dimensions = array<i32: 1>} : vector<1x128xi32>
    %c64_i32 = arith.constant 64 : i32
    %104 = vector.broadcast %c64_i32 : i32 to vector<1x128xi32>
    %105 = arith.cmpi slt, %103, %104 : vector<1x128xi32>
    %cst_36 = arith.constant 0.000000e+00 : f32
    %106 = vector.shape_cast %105 : vector<1x128xi1> to vector<1x128xi1>
    %107 = vector.broadcast %106 : vector<1x128xi1> to vector<8x128xi1>
    %108 = vector.broadcast %cst_36 : f32 to vector<8x128xf32>
    %109 = arith.select %107, %102, %108 : vector<8x128xi1>, vector<8x128xf32>
    %110 = arith.truncf %109 : vector<8x128xf32> to vector<8x128xbf16>
    %cst_37 = arith.constant 0.000000e+00 : f32
    %111 = vector.shape_cast %105 : vector<1x128xi1> to vector<1x128xi1>
    %112 = vector.broadcast %111 : vector<1x128xi1> to vector<8x128xi1>
    %113 = vector.broadcast %cst_37 : f32 to vector<8x128xf32>
    %114 = arith.select %112, %100, %113 : vector<8x128xi1>, vector<8x128xf32>
    %c0_i32 = arith.constant 0 : i32
    %c19_i32 = arith.constant 19 : i32
    %115 = arith.addi %c0_i32, %c19_i32 : i32
    %c1_i32 = arith.constant 1 : i32
    %116:2 = scf.for %arg9 = %c0_i32 to %115 step %c1_i32 iter_args(%arg10 = %110, %arg11 = %114) -> (vector<8x128xbf16>, vector<8x128xf32>)  : i32 {
      %c4_i32 = arith.constant 4 : i32
      %242 = arith.muli %arg9, %c4_i32 : i32
      %c1_i32_82 = arith.constant 1 : i32
      %243 = arith.addi %c1_i32_82, %242 : i32
      %c0_i32_83 = arith.constant 0 : i32
      %244 = arith.addi %243, %c0_i32_83 : i32
      %c0_84 = arith.constant 0 : index
      %c0_85 = arith.constant 0 : index
      %245 = vector.load %arg2[%c0_84, %c0_85] : memref<128x512xbf16, #tpu.memory_space<vmem>>, vector<128x512xbf16>
      %cst_86 = arith.constant dense<0.000000e+00> : vector<8x512xf32>
      %246 = tpu.matmul %arg10, %245, %cst_86 {dimension_numbers = #tpu.dot_dimension_numbers<[1], [0], [0], [1], [0, 0, 1, 1], [], []>} : vector<8x128xbf16>, vector<128x512xbf16>, vector<8x512xf32> -> vector<8x512xf32>
      %247 = arith.index_cast %244 : i32 to index
      %c0_87 = arith.constant 0 : index
      %c0_88 = arith.constant 0 : index
      %248 = vector.load %arg8[%247, %c0_87, %c0_88] : memref<80x8x512xbf16, #tpu.memory_space<vmem>>, vector<1x8x512xbf16>
      %249 = vector.shape_cast %248 : vector<1x8x512xbf16> to vector<8x512xbf16>
      %250 = arith.extf %249 : vector<8x512xbf16> to vector<8x512xf32>
      %251 = arith.addf %246, %250 : vector<8x512xf32>
      %252 = vector.broadcast %74 : vector<1x512xf32> to vector<8x512xf32>
      %253 = arith.addf %251, %252 : vector<8x512xf32>
      %254 = vector.extract_strided_slice %253 {offsets = [0, 0], sizes = [8, 384], strides = [1, 1]} : vector<8x512xf32> to vector<8x384xf32>
      %cst_89 = arith.constant 5.000000e-01 : f32
      %255 = vector.broadcast %cst_89 : f32 to vector<8x384xf32>
      %256 = arith.mulf %255, %254 : vector<8x384xf32>
      %257 = math.tanh %256 : vector<8x384xf32>
      %cst_90 = arith.constant 5.000000e-01 : f32
      %258 = vector.broadcast %cst_90 : f32 to vector<8x384xf32>
      %259 = arith.mulf %258, %257 : vector<8x384xf32>
      %cst_91 = arith.constant 5.000000e-01 : f32
      %260 = vector.broadcast %cst_91 : f32 to vector<8x384xf32>
      %261 = arith.addf %259, %260 : vector<8x384xf32>
      %262 = vector.extract_strided_slice %261 {offsets = [0, 0], sizes = [8, 128], strides = [1, 1]} : vector<8x384xf32> to vector<8x128xf32>
      %263 = vector.extract_strided_slice %261 {offsets = [0, 128], sizes = [8, 128], strides = [1, 1]} : vector<8x384xf32> to vector<8x128xf32>
      %264 = vector.extract_strided_slice %261 {offsets = [0, 256], sizes = [8, 128], strides = [1, 1]} : vector<8x384xf32> to vector<8x128xf32>
      %265 = vector.extract_strided_slice %253 {offsets = [0, 384], sizes = [8, 128], strides = [1, 1]} : vector<8x512xf32> to vector<8x128xf32>
      %266 = math.tanh %265 : vector<8x128xf32>
      %267 = arith.mulf %263, %arg11 : vector<8x128xf32>
      %268 = arith.mulf %262, %266 : vector<8x128xf32>
      %269 = arith.addf %267, %268 : vector<8x128xf32>
      %270 = math.tanh %269 : vector<8x128xf32>
      %271 = arith.mulf %264, %270 : vector<8x128xf32>
      %272 = arith.truncf %271 : vector<8x128xf32> to vector<8x128xbf16>
      %c1_i32_92 = arith.constant 1 : i32
      %273 = arith.addi %243, %c1_i32_92 : i32
      %c0_93 = arith.constant 0 : index
      %c0_94 = arith.constant 0 : index
      %274 = vector.load %arg2[%c0_93, %c0_94] : memref<128x512xbf16, #tpu.memory_space<vmem>>, vector<128x512xbf16>
      %cst_95 = arith.constant dense<0.000000e+00> : vector<8x512xf32>
      %275 = tpu.matmul %272, %274, %cst_95 {dimension_numbers = #tpu.dot_dimension_numbers<[1], [0], [0], [1], [0, 0, 1, 1], [], []>} : vector<8x128xbf16>, vector<128x512xbf16>, vector<8x512xf32> -> vector<8x512xf32>
      %276 = arith.index_cast %273 : i32 to index
      %c0_96 = arith.constant 0 : index
      %c0_97 = arith.constant 0 : index
      %277 = vector.load %arg8[%276, %c0_96, %c0_97] : memref<80x8x512xbf16, #tpu.memory_space<vmem>>, vector<1x8x512xbf16>
      %278 = vector.shape_cast %277 : vector<1x8x512xbf16> to vector<8x512xbf16>
      %279 = arith.extf %278 : vector<8x512xbf16> to vector<8x512xf32>
      %280 = arith.addf %275, %279 : vector<8x512xf32>
      %281 = vector.broadcast %74 : vector<1x512xf32> to vector<8x512xf32>
      %282 = arith.addf %280, %281 : vector<8x512xf32>
      %283 = vector.extract_strided_slice %282 {offsets = [0, 0], sizes = [8, 384], strides = [1, 1]} : vector<8x512xf32> to vector<8x384xf32>
      %cst_98 = arith.constant 5.000000e-01 : f32
      %284 = vector.broadcast %cst_98 : f32 to vector<8x384xf32>
      %285 = arith.mulf %284, %283 : vector<8x384xf32>
      %286 = math.tanh %285 : vector<8x384xf32>
      %cst_99 = arith.constant 5.000000e-01 : f32
      %287 = vector.broadcast %cst_99 : f32 to vector<8x384xf32>
      %288 = arith.mulf %287, %286 : vector<8x384xf32>
      %cst_100 = arith.constant 5.000000e-01 : f32
      %289 = vector.broadcast %cst_100 : f32 to vector<8x384xf32>
      %290 = arith.addf %288, %289 : vector<8x384xf32>
      %291 = vector.extract_strided_slice %290 {offsets = [0, 0], sizes = [8, 128], strides = [1, 1]} : vector<8x384xf32> to vector<8x128xf32>
      %292 = vector.extract_strided_slice %290 {offsets = [0, 128], sizes = [8, 128], strides = [1, 1]} : vector<8x384xf32> to vector<8x128xf32>
      %293 = vector.extract_strided_slice %290 {offsets = [0, 256], sizes = [8, 128], strides = [1, 1]} : vector<8x384xf32> to vector<8x128xf32>
      %294 = vector.extract_strided_slice %282 {offsets = [0, 384], sizes = [8, 128], strides = [1, 1]} : vector<8x512xf32> to vector<8x128xf32>
      %295 = math.tanh %294 : vector<8x128xf32>
      %296 = arith.mulf %292, %269 : vector<8x128xf32>
      %297 = arith.mulf %291, %295 : vector<8x128xf32>
      %298 = arith.addf %296, %297 : vector<8x128xf32>
      %299 = math.tanh %298 : vector<8x128xf32>
      %300 = arith.mulf %293, %299 : vector<8x128xf32>
      %301 = arith.truncf %300 : vector<8x128xf32> to vector<8x128xbf16>
      %c2_i32 = arith.constant 2 : i32
      %302 = arith.addi %243, %c2_i32 : i32
      %c0_101 = arith.constant 0 : index
      %c0_102 = arith.constant 0 : index
      %303 = vector.load %arg2[%c0_101, %c0_102] : memref<128x512xbf16, #tpu.memory_space<vmem>>, vector<128x512xbf16>
      %cst_103 = arith.constant dense<0.000000e+00> : vector<8x512xf32>
      %304 = tpu.matmul %301, %303, %cst_103 {dimension_numbers = #tpu.dot_dimension_numbers<[1], [0], [0], [1], [0, 0, 1, 1], [], []>} : vector<8x128xbf16>, vector<128x512xbf16>, vector<8x512xf32> -> vector<8x512xf32>
      %305 = arith.index_cast %302 : i32 to index
      %c0_104 = arith.constant 0 : index
      %c0_105 = arith.constant 0 : index
      %306 = vector.load %arg8[%305, %c0_104, %c0_105] : memref<80x8x512xbf16, #tpu.memory_space<vmem>>, vector<1x8x512xbf16>
      %307 = vector.shape_cast %306 : vector<1x8x512xbf16> to vector<8x512xbf16>
      %308 = arith.extf %307 : vector<8x512xbf16> to vector<8x512xf32>
      %309 = arith.addf %304, %308 : vector<8x512xf32>
      %310 = vector.broadcast %74 : vector<1x512xf32> to vector<8x512xf32>
      %311 = arith.addf %309, %310 : vector<8x512xf32>
      %312 = vector.extract_strided_slice %311 {offsets = [0, 0], sizes = [8, 384], strides = [1, 1]} : vector<8x512xf32> to vector<8x384xf32>
      %cst_106 = arith.constant 5.000000e-01 : f32
      %313 = vector.broadcast %cst_106 : f32 to vector<8x384xf32>
      %314 = arith.mulf %313, %312 : vector<8x384xf32>
      %315 = math.tanh %314 : vector<8x384xf32>
      %cst_107 = arith.constant 5.000000e-01 : f32
      %316 = vector.broadcast %cst_107 : f32 to vector<8x384xf32>
      %317 = arith.mulf %316, %315 : vector<8x384xf32>
      %cst_108 = arith.constant 5.000000e-01 : f32
      %318 = vector.broadcast %cst_108 : f32 to vector<8x384xf32>
      %319 = arith.addf %317, %318 : vector<8x384xf32>
      %320 = vector.extract_strided_slice %319 {offsets = [0, 0], sizes = [8, 128], strides = [1, 1]} : vector<8x384xf32> to vector<8x128xf32>
      %321 = vector.extract_strided_slice %319 {offsets = [0, 128], sizes = [8, 128], strides = [1, 1]} : vector<8x384xf32> to vector<8x128xf32>
      %322 = vector.extract_strided_slice %319 {offsets = [0, 256], sizes = [8, 128], strides = [1, 1]} : vector<8x384xf32> to vector<8x128xf32>
      %323 = vector.extract_strided_slice %311 {offsets = [0, 384], sizes = [8, 128], strides = [1, 1]} : vector<8x512xf32> to vector<8x128xf32>
      %324 = math.tanh %323 : vector<8x128xf32>
      %325 = arith.mulf %321, %298 : vector<8x128xf32>
      %326 = arith.mulf %320, %324 : vector<8x128xf32>
      %327 = arith.addf %325, %326 : vector<8x128xf32>
      %328 = math.tanh %327 : vector<8x128xf32>
      %329 = arith.mulf %322, %328 : vector<8x128xf32>
      %330 = arith.truncf %329 : vector<8x128xf32> to vector<8x128xbf16>
      %c3_i32 = arith.constant 3 : i32
      %331 = arith.addi %243, %c3_i32 : i32
      %c0_109 = arith.constant 0 : index
      %c0_110 = arith.constant 0 : index
      %332 = vector.load %arg2[%c0_109, %c0_110] : memref<128x512xbf16, #tpu.memory_space<vmem>>, vector<128x512xbf16>
      %cst_111 = arith.constant dense<0.000000e+00> : vector<8x512xf32>
      %333 = tpu.matmul %330, %332, %cst_111 {dimension_numbers = #tpu.dot_dimension_numbers<[1], [0], [0], [1], [0, 0, 1, 1], [], []>} : vector<8x128xbf16>, vector<128x512xbf16>, vector<8x512xf32> -> vector<8x512xf32>
      %334 = arith.index_cast %331 : i32 to index
      %c0_112 = arith.constant 0 : index
      %c0_113 = arith.constant 0 : index
      %335 = vector.load %arg8[%334, %c0_112, %c0_113] : memref<80x8x512xbf16, #tpu.memory_space<vmem>>, vector<1x8x512xbf16>
      %336 = vector.shape_cast %335 : vector<1x8x512xbf16> to vector<8x512xbf16>
      %337 = arith.extf %336 : vector<8x512xbf16> to vector<8x512xf32>
      %338 = arith.addf %333, %337 : vector<8x512xf32>
      %339 = vector.broadcast %74 : vector<1x512xf32> to vector<8x512xf32>
      %340 = arith.addf %338, %339 : vector<8x512xf32>
      %341 = vector.extract_strided_slice %340 {offsets = [0, 0], sizes = [8, 384], strides = [1, 1]} : vector<8x512xf32> to vector<8x384xf32>
      %cst_114 = arith.constant 5.000000e-01 : f32
      %342 = vector.broadcast %cst_114 : f32 to vector<8x384xf32>
      %343 = arith.mulf %342, %341 : vector<8x384xf32>
      %344 = math.tanh %343 : vector<8x384xf32>
      %cst_115 = arith.constant 5.000000e-01 : f32
      %345 = vector.broadcast %cst_115 : f32 to vector<8x384xf32>
      %346 = arith.mulf %345, %344 : vector<8x384xf32>
      %cst_116 = arith.constant 5.000000e-01 : f32
      %347 = vector.broadcast %cst_116 : f32 to vector<8x384xf32>
      %348 = arith.addf %346, %347 : vector<8x384xf32>
      %349 = vector.extract_strided_slice %348 {offsets = [0, 0], sizes = [8, 128], strides = [1, 1]} : vector<8x384xf32> to vector<8x128xf32>
      %350 = vector.extract_strided_slice %348 {offsets = [0, 128], sizes = [8, 128], strides = [1, 1]} : vector<8x384xf32> to vector<8x128xf32>
      %351 = vector.extract_strided_slice %348 {offsets = [0, 256], sizes = [8, 128], strides = [1, 1]} : vector<8x384xf32> to vector<8x128xf32>
      %352 = vector.extract_strided_slice %340 {offsets = [0, 384], sizes = [8, 128], strides = [1, 1]} : vector<8x512xf32> to vector<8x128xf32>
      %353 = math.tanh %352 : vector<8x128xf32>
      %354 = arith.mulf %350, %327 : vector<8x128xf32>
      %355 = arith.mulf %349, %353 : vector<8x128xf32>
      %356 = arith.addf %354, %355 : vector<8x128xf32>
      %357 = math.tanh %356 : vector<8x128xf32>
      %358 = arith.mulf %351, %357 : vector<8x128xf32>
      %359 = arith.truncf %358 : vector<8x128xf32> to vector<8x128xbf16>
      scf.yield %359, %356 : vector<8x128xbf16>, vector<8x128xf32>
    }
    %c19_i32_38 = arith.constant 19 : i32
    %c0_39 = arith.constant 0 : index
    %c0_40 = arith.constant 0 : index
    %117 = vector.load %arg2[%c0_39, %c0_40] : memref<128x512xbf16, #tpu.memory_space<vmem>>, vector<128x512xbf16>
    %cst_41 = arith.constant dense<0.000000e+00> : vector<8x512xf32>
    %118 = tpu.matmul %116#0, %117, %cst_41 {dimension_numbers = #tpu.dot_dimension_numbers<[1], [0], [0], [1], [0, 0, 1, 1], [], []>} : vector<8x128xbf16>, vector<128x512xbf16>, vector<8x512xf32> -> vector<8x512xf32>
    %c77 = arith.constant 77 : index
    %c0_42 = arith.constant 0 : index
    %c0_43 = arith.constant 0 : index
    %119 = vector.load %arg8[%c77, %c0_42, %c0_43] : memref<80x8x512xbf16, #tpu.memory_space<vmem>>, vector<1x8x512xbf16>
    %120 = vector.shape_cast %119 : vector<1x8x512xbf16> to vector<8x512xbf16>
    %121 = arith.extf %120 : vector<8x512xbf16> to vector<8x512xf32>
    %122 = arith.addf %118, %121 : vector<8x512xf32>
    %123 = vector.broadcast %74 : vector<1x512xf32> to vector<8x512xf32>
    %124 = arith.addf %122, %123 : vector<8x512xf32>
    %125 = vector.extract_strided_slice %124 {offsets = [0, 0], sizes = [8, 384], strides = [1, 1]} : vector<8x512xf32> to vector<8x384xf32>
    %cst_44 = arith.constant 5.000000e-01 : f32
    %126 = vector.broadcast %cst_44 : f32 to vector<8x384xf32>
    %127 = arith.mulf %126, %125 : vector<8x384xf32>
    %128 = math.tanh %127 : vector<8x384xf32>
    %cst_45 = arith.constant 5.000000e-01 : f32
    %129 = vector.broadcast %cst_45 : f32 to vector<8x384xf32>
    %130 = arith.mulf %129, %128 : vector<8x384xf32>
    %cst_46 = arith.constant 5.000000e-01 : f32
    %131 = vector.broadcast %cst_46 : f32 to vector<8x384xf32>
    %132 = arith.addf %130, %131 : vector<8x384xf32>
    %133 = vector.extract_strided_slice %132 {offsets = [0, 0], sizes = [8, 128], strides = [1, 1]} : vector<8x384xf32> to vector<8x128xf32>
    %134 = vector.extract_strided_slice %132 {offsets = [0, 128], sizes = [8, 128], strides = [1, 1]} : vector<8x384xf32> to vector<8x128xf32>
    %135 = vector.extract_strided_slice %132 {offsets = [0, 256], sizes = [8, 128], strides = [1, 1]} : vector<8x384xf32> to vector<8x128xf32>
    %136 = vector.extract_strided_slice %124 {offsets = [0, 384], sizes = [8, 128], strides = [1, 1]} : vector<8x512xf32> to vector<8x128xf32>
    %137 = math.tanh %136 : vector<8x128xf32>
    %138 = arith.mulf %134, %116#1 : vector<8x128xf32>
    %139 = arith.mulf %133, %137 : vector<8x128xf32>
    %140 = arith.addf %138, %139 : vector<8x128xf32>
    %141 = math.tanh %140 : vector<8x128xf32>
    %142 = arith.mulf %135, %141 : vector<8x128xf32>
    %143 = arith.truncf %142 : vector<8x128xf32> to vector<8x128xbf16>
    %c0_47 = arith.constant 0 : index
    %c0_48 = arith.constant 0 : index
    %144 = vector.load %arg2[%c0_47, %c0_48] : memref<128x512xbf16, #tpu.memory_space<vmem>>, vector<128x512xbf16>
    %cst_49 = arith.constant dense<0.000000e+00> : vector<8x512xf32>
    %145 = tpu.matmul %143, %144, %cst_49 {dimension_numbers = #tpu.dot_dimension_numbers<[1], [0], [0], [1], [0, 0, 1, 1], [], []>} : vector<8x128xbf16>, vector<128x512xbf16>, vector<8x512xf32> -> vector<8x512xf32>
    %c78 = arith.constant 78 : index
    %c0_50 = arith.constant 0 : index
    %c0_51 = arith.constant 0 : index
    %146 = vector.load %arg8[%c78, %c0_50, %c0_51] : memref<80x8x512xbf16, #tpu.memory_space<vmem>>, vector<1x8x512xbf16>
    %147 = vector.shape_cast %146 : vector<1x8x512xbf16> to vector<8x512xbf16>
    %148 = arith.extf %147 : vector<8x512xbf16> to vector<8x512xf32>
    %149 = arith.addf %145, %148 : vector<8x512xf32>
    %150 = vector.broadcast %74 : vector<1x512xf32> to vector<8x512xf32>
    %151 = arith.addf %149, %150 : vector<8x512xf32>
    %152 = vector.extract_strided_slice %151 {offsets = [0, 0], sizes = [8, 384], strides = [1, 1]} : vector<8x512xf32> to vector<8x384xf32>
    %cst_52 = arith.constant 5.000000e-01 : f32
    %153 = vector.broadcast %cst_52 : f32 to vector<8x384xf32>
    %154 = arith.mulf %153, %152 : vector<8x384xf32>
    %155 = math.tanh %154 : vector<8x384xf32>
    %cst_53 = arith.constant 5.000000e-01 : f32
    %156 = vector.broadcast %cst_53 : f32 to vector<8x384xf32>
    %157 = arith.mulf %156, %155 : vector<8x384xf32>
    %cst_54 = arith.constant 5.000000e-01 : f32
    %158 = vector.broadcast %cst_54 : f32 to vector<8x384xf32>
    %159 = arith.addf %157, %158 : vector<8x384xf32>
    %160 = vector.extract_strided_slice %159 {offsets = [0, 0], sizes = [8, 128], strides = [1, 1]} : vector<8x384xf32> to vector<8x128xf32>
    %161 = vector.extract_strided_slice %159 {offsets = [0, 128], sizes = [8, 128], strides = [1, 1]} : vector<8x384xf32> to vector<8x128xf32>
    %162 = vector.extract_strided_slice %159 {offsets = [0, 256], sizes = [8, 128], strides = [1, 1]} : vector<8x384xf32> to vector<8x128xf32>
    %163 = vector.extract_strided_slice %151 {offsets = [0, 384], sizes = [8, 128], strides = [1, 1]} : vector<8x512xf32> to vector<8x128xf32>
    %164 = math.tanh %163 : vector<8x128xf32>
    %165 = arith.mulf %161, %140 : vector<8x128xf32>
    %166 = arith.mulf %160, %164 : vector<8x128xf32>
    %167 = arith.addf %165, %166 : vector<8x128xf32>
    %168 = math.tanh %167 : vector<8x128xf32>
    %169 = arith.mulf %162, %168 : vector<8x128xf32>
    %170 = arith.truncf %169 : vector<8x128xf32> to vector<8x128xbf16>
    %c0_55 = arith.constant 0 : index
    %c0_56 = arith.constant 0 : index
    %171 = vector.load %arg2[%c0_55, %c0_56] : memref<128x512xbf16, #tpu.memory_space<vmem>>, vector<128x512xbf16>
    %cst_57 = arith.constant dense<0.000000e+00> : vector<8x512xf32>
    %172 = tpu.matmul %170, %171, %cst_57 {dimension_numbers = #tpu.dot_dimension_numbers<[1], [0], [0], [1], [0, 0, 1, 1], [], []>} : vector<8x128xbf16>, vector<128x512xbf16>, vector<8x512xf32> -> vector<8x512xf32>
    %c79 = arith.constant 79 : index
    %c0_58 = arith.constant 0 : index
    %c0_59 = arith.constant 0 : index
    %173 = vector.load %arg8[%c79, %c0_58, %c0_59] : memref<80x8x512xbf16, #tpu.memory_space<vmem>>, vector<1x8x512xbf16>
    %174 = vector.shape_cast %173 : vector<1x8x512xbf16> to vector<8x512xbf16>
    %175 = arith.extf %174 : vector<8x512xbf16> to vector<8x512xf32>
    %176 = arith.addf %172, %175 : vector<8x512xf32>
    %177 = vector.broadcast %74 : vector<1x512xf32> to vector<8x512xf32>
    %178 = arith.addf %176, %177 : vector<8x512xf32>
    %179 = vector.extract_strided_slice %178 {offsets = [0, 0], sizes = [8, 384], strides = [1, 1]} : vector<8x512xf32> to vector<8x384xf32>
    %cst_60 = arith.constant 5.000000e-01 : f32
    %180 = vector.broadcast %cst_60 : f32 to vector<8x384xf32>
    %181 = arith.mulf %180, %179 : vector<8x384xf32>
    %182 = math.tanh %181 : vector<8x384xf32>
    %cst_61 = arith.constant 5.000000e-01 : f32
    %183 = vector.broadcast %cst_61 : f32 to vector<8x384xf32>
    %184 = arith.mulf %183, %182 : vector<8x384xf32>
    %cst_62 = arith.constant 5.000000e-01 : f32
    %185 = vector.broadcast %cst_62 : f32 to vector<8x384xf32>
    %186 = arith.addf %184, %185 : vector<8x384xf32>
    %187 = vector.extract_strided_slice %186 {offsets = [0, 0], sizes = [8, 128], strides = [1, 1]} : vector<8x384xf32> to vector<8x128xf32>
    %188 = vector.extract_strided_slice %186 {offsets = [0, 128], sizes = [8, 128], strides = [1, 1]} : vector<8x384xf32> to vector<8x128xf32>
    %189 = vector.extract_strided_slice %186 {offsets = [0, 256], sizes = [8, 128], strides = [1, 1]} : vector<8x384xf32> to vector<8x128xf32>
    %190 = vector.extract_strided_slice %178 {offsets = [0, 384], sizes = [8, 128], strides = [1, 1]} : vector<8x512xf32> to vector<8x128xf32>
    %191 = math.tanh %190 : vector<8x128xf32>
    %192 = arith.mulf %188, %167 : vector<8x128xf32>
    %193 = arith.mulf %187, %191 : vector<8x128xf32>
    %194 = arith.addf %192, %193 : vector<8x128xf32>
    %195 = math.tanh %194 : vector<8x128xf32>
    %196 = arith.mulf %189, %195 : vector<8x128xf32>
    %197 = arith.truncf %196 : vector<8x128xf32> to vector<8x128xbf16>
    %c0_63 = arith.constant 0 : index
    %c0_64 = arith.constant 0 : index
    %198 = vector.load %arg2[%c0_63, %c0_64] : memref<128x512xbf16, #tpu.memory_space<vmem>>, vector<128x512xbf16>
    %cst_65 = arith.constant dense<0.000000e+00> : vector<8x512xf32>
    %199 = tpu.matmul %197, %198, %cst_65 {dimension_numbers = #tpu.dot_dimension_numbers<[1], [0], [0], [1], [0, 0, 1, 1], [], []>} : vector<8x128xbf16>, vector<128x512xbf16>, vector<8x512xf32> -> vector<8x512xf32>
    %c79_66 = arith.constant 79 : index
    %c0_67 = arith.constant 0 : index
    %c0_68 = arith.constant 0 : index
    %200 = vector.load %arg8[%c79_66, %c0_67, %c0_68] : memref<80x8x512xbf16, #tpu.memory_space<vmem>>, vector<1x8x512xbf16>
    %201 = vector.shape_cast %200 : vector<1x8x512xbf16> to vector<8x512xbf16>
    %202 = arith.extf %201 : vector<8x512xbf16> to vector<8x512xf32>
    %203 = arith.addf %199, %202 : vector<8x512xf32>
    %204 = vector.broadcast %74 : vector<1x512xf32> to vector<8x512xf32>
    %205 = arith.addf %203, %204 : vector<8x512xf32>
    %206 = vector.extract_strided_slice %205 {offsets = [0, 0], sizes = [8, 384], strides = [1, 1]} : vector<8x512xf32> to vector<8x384xf32>
    %cst_69 = arith.constant 5.000000e-01 : f32
    %207 = vector.broadcast %cst_69 : f32 to vector<8x384xf32>
    %208 = arith.mulf %207, %206 : vector<8x384xf32>
    %209 = math.tanh %208 : vector<8x384xf32>
    %cst_70 = arith.constant 5.000000e-01 : f32
    %210 = vector.broadcast %cst_70 : f32 to vector<8x384xf32>
    %211 = arith.mulf %210, %209 : vector<8x384xf32>
    %cst_71 = arith.constant 5.000000e-01 : f32
    %212 = vector.broadcast %cst_71 : f32 to vector<8x384xf32>
    %213 = arith.addf %211, %212 : vector<8x384xf32>
    %214 = vector.extract_strided_slice %213 {offsets = [0, 0], sizes = [8, 128], strides = [1, 1]} : vector<8x384xf32> to vector<8x128xf32>
    %215 = vector.extract_strided_slice %213 {offsets = [0, 128], sizes = [8, 128], strides = [1, 1]} : vector<8x384xf32> to vector<8x128xf32>
    %216 = vector.extract_strided_slice %213 {offsets = [0, 256], sizes = [8, 128], strides = [1, 1]} : vector<8x384xf32> to vector<8x128xf32>
    %217 = vector.extract_strided_slice %205 {offsets = [0, 384], sizes = [8, 128], strides = [1, 1]} : vector<8x512xf32> to vector<8x128xf32>
    %218 = math.tanh %217 : vector<8x128xf32>
    %219 = arith.mulf %215, %194 : vector<8x128xf32>
    %220 = arith.mulf %214, %218 : vector<8x128xf32>
    %221 = arith.addf %219, %220 : vector<8x128xf32>
    %222 = math.tanh %221 : vector<8x128xf32>
    %223 = arith.mulf %216, %222 : vector<8x128xf32>
    %224 = vector.extract_strided_slice %223 {offsets = [0, 64], sizes = [8, 64], strides = [1, 1]} : vector<8x128xf32> to vector<8x64xf32>
    %cst_72 = arith.constant 0.000000e+00 : f32
    %225 = vector.broadcast %cst_72 : f32 to vector<8x64xf32>
    %226 = arith.maximumf %224, %225 : vector<8x64xf32>
    %c0_73 = arith.constant 0 : index
    %c0_74 = arith.constant 0 : index
    %227 = vector.load %arg5[%c0_73, %c0_74] : memref<64x3xf32, #tpu.memory_space<vmem>>, vector<64x3xf32>
    %cst_75 = arith.constant dense<0.000000e+00> : vector<8x3xf32>
    %228 = tpu.matmul %226, %227, %cst_75 {dimension_numbers = #tpu.dot_dimension_numbers<[1], [0], [0], [1], [0, 0, 1, 1], [], []>} : vector<8x64xf32>, vector<64x3xf32>, vector<8x3xf32> -> vector<8x3xf32>
    %c0_76 = arith.constant 0 : index
    %c0_77 = arith.constant 0 : index
    %229 = vector.load %arg6[%c0_76, %c0_77] : memref<1x3xf32, #tpu.memory_space<vmem>>, vector<1x3xf32>
    %230 = vector.broadcast %229 : vector<1x3xf32> to vector<8x3xf32>
    %231 = arith.addf %228, %230 : vector<8x3xf32>
    %cst_78 = arith.constant dense<0xFF800000> : vector<8xf32>
    %232 = vector.multi_reduction <maximumf>, %231, %cst_78 [1] : vector<8x3xf32> to vector<8xf32>
    %233 = vector.shape_cast %232 : vector<8xf32> to vector<8x1xf32>
    %234 = vector.broadcast %233 : vector<8x1xf32> to vector<8x3xf32>
    %235 = arith.subf %231, %234 : vector<8x3xf32>
    %236 = math.exp %235 : vector<8x3xf32>
    %cst_79 = arith.constant dense<0.000000e+00> : vector<8xf32>
    %237 = vector.multi_reduction <add>, %236, %cst_79 [1] : vector<8x3xf32> to vector<8xf32>
    %238 = vector.shape_cast %237 : vector<8xf32> to vector<8x1xf32>
    %239 = vector.broadcast %238 : vector<8x1xf32> to vector<8x3xf32>
    %240 = arith.divf %236, %239 : vector<8x3xf32>
    %c0_80 = arith.constant 0 : index
    %c0_81 = arith.constant 0 : index
    %241 = vector.load %arg7[%c0_80, %c0_81] : memref<8x3xf32, #tpu.memory_space<vmem>>, vector<8x3xf32>
    tpu.vector_store %arg7[%c0_80, %c0_81], %240 {strides = array<i32>} : memref<8x3xf32, #tpu.memory_space<vmem>>, vector<8x3xf32>,
    return
  }
  func.func @transform_0(%arg0: i32) -> (i32, i32) {
    %c0_i32 = arith.constant 0 : i32
    %c0_i32_0 = arith.constant 0 : i32
    return %arg0, %c0_i32 : i32, i32
  }
  func.func @transform_1(%arg0: i32) -> (i32, i32) {
    %c0_i32 = arith.constant 0 : i32
    %c0_i32_0 = arith.constant 0 : i32
    %c0_i32_1 = arith.constant 0 : i32
    return %c0_i32, %c0_i32_0 : i32, i32
  }
  func.func @transform_2(%arg0: i32) -> (i32, i32) {
    %c0_i32 = arith.constant 0 : i32
    %c0_i32_0 = arith.constant 0 : i32
    %c0_i32_1 = arith.constant 0 : i32
    return %c0_i32, %c0_i32_0 : i32, i32
  }
  func.func @transform_3(%arg0: i32) -> (i32, i32) {
    %c0_i32 = arith.constant 0 : i32
    %c0_i32_0 = arith.constant 0 : i32
    %c0_i32_1 = arith.constant 0 : i32
    return %c0_i32, %c0_i32_0 : i32, i32
  }
  func.func @transform_4(%arg0: i32) -> (i32, i32) {
    %c0_i32 = arith.constant 0 : i32
    %c0_i32_0 = arith.constant 0 : i32
    %c0_i32_1 = arith.constant 0 : i32
    return %c0_i32, %c0_i32_0 : i32, i32
  }
  func.func @transform_5(%arg0: i32) -> (i32, i32) {
    %c0_i32 = arith.constant 0 : i32
    %c0_i32_0 = arith.constant 0 : i32
    %c0_i32_1 = arith.constant 0 : i32
    return %c0_i32, %c0_i32_0 : i32, i32
  }
  func.func @transform_6(%arg0: i32) -> (i32, i32) {
    %c0_i32 = arith.constant 0 : i32
    %c0_i32_0 = arith.constant 0 : i32
    return %arg0, %c0_i32 : i32, i32
  }
}

</mosaic_0001>

<llo_original>
// kernel: tpu_custom_call.1
$region0: #{tpu_custom_call.1}
  #allocation0 [shape = 'u32[]', space=smem, size = 0x4, offset = 0x4, fixed_abs, tag = 'smem constant byte address 0x4 - core index']
  #allocation1 [shape = 'u32[144,128]{1,0:T(1,128)}', space=vmem, size = 0x12000, scoped, tag = 'internal scratch']
  #allocation2 [shape = 'bf16[80,8,512]{2,1,0:T(8,128)(2,1)}', space=vmem, size = 0xa0000, scoped, tag = 'scratch operand']
  %s0 = inlined_call_operand.vmem [shape: f32[8,80], index: 0, kind: input, shape index: {}]
  %s1 = inlined_call_operand.hbm [shape: bf16[128,512], index: 1, kind: input, shape index: {}]
  %s2 = inlined_call_operand.vmem [shape: f32[1,512], index: 2, kind: input, shape index: {}]
  %s3 = inlined_call_operand.vmem [shape: f32[1,512], index: 3, kind: input, shape index: {}]
  %s4 = inlined_call_operand.vmem [shape: f32[64,3], index: 4, kind: input, shape index: {}]
  %s5 = inlined_call_operand.vmem [shape: f32[1,3], index: 5, kind: input, shape index: {}]
  %s6 = inlined_call_operand.vmem [shape: f32[8,3], index: 6, kind: output, shape index: {}]
  %s7 = sld [smem:[#allocation0]]
  $region45: #{tpu_custom_call.1} parent=0
    _
  %s9 = ssub.s32 1, %s7
  %s10 = scalar_select 0, %s9, %s7
  $region1: #{tpu_custom_call.1} parent=0
    #allocation3 [shape = 'u8[131072]{0}', space=vmem, size = 0x20000, scoped, tag = 'input window, operand 1, single buffered']
    #allocation4 [shape = 's32[1]{0}', space=sflag, size = 0x4, scoped, tag = 'scoped memory for tpu_custom_call.1']
    %11 = vsyncpa [#allocation4], 0
    // Predicated region
    $region2: #{tpu_custom_call.1} parent=1 // pred_check
      _
    $region3: #{tpu_custom_call.1} parent=1 // pred_check_branch
      %13 = sbr.rel (0) target = $region5
    $region4: #{tpu_custom_call.1} parent=1 // pred_region
      _
    $region5: #{tpu_custom_call.1} parent=1 // pred_fallthru
      _
    // Predicated region
    $region6: #{tpu_custom_call.1} parent=1 // pred_check
      _
    $region7: #{tpu_custom_call.1} parent=1 // pred_check_branch
      %15 = sbr.rel (0) target = $region9
    $region8: #{tpu_custom_call.1} parent=1 // pred_region
      %s17 = ssub.s32 4096, 4096
      %18 = vsyncadd [#allocation4], %s17
      %s19 = sshll.u32 [#allocation3], 4
      %s20 = int_to_ptr.vmem [resolvable:$true] %s19
      %25 = dma.hbm_to_vmem [thread:$0]  %s1, 4096, %s20, [#allocation4], 256, 256, 16
    $region9: #{tpu_custom_call.1} parent=1 // pred_fallthru
      _
    // Predicated region
    $region10: #{tpu_custom_call.1} parent=1 // pred_check
      _
    $region11: #{tpu_custom_call.1} parent=1 // pred_check_branch
      %27 = sbr.rel (0) target = $region13
    $region12: #{tpu_custom_call.1} parent=1 // pred_region
      _
    $region13: #{tpu_custom_call.1} parent=1 // pred_fallthru
      _
    // Predicated region
    $region14: #{tpu_custom_call.1} parent=1 // pred_check
      _
    $region15: #{tpu_custom_call.1} parent=1 // pred_check_branch
      %29 = sbr.rel (0) target = $region17
    $region16: #{tpu_custom_call.1} parent=1 // pred_region
      _
    $region17: #{tpu_custom_call.1} parent=1 // pred_fallthru
      _
    // Predicated region
    $region18: #{tpu_custom_call.1} parent=1 // pred_check
      _
    $region19: #{tpu_custom_call.1} parent=1 // pred_check_branch
      %31 = sbr.rel (0) target = $region21
    $region20: #{tpu_custom_call.1} parent=1 // pred_region
      _
    $region21: #{tpu_custom_call.1} parent=1 // pred_fallthru
      _
    // Predicated region
    $region22: #{tpu_custom_call.1} parent=1 // pred_check
      _
    $region23: #{tpu_custom_call.1} parent=1 // pred_check_branch
      %33 = sbr.rel (0) target = $region25
    $region24: #{tpu_custom_call.1} parent=1 // pred_region
      _
    $region25: #{tpu_custom_call.1} parent=1 // pred_fallthru
      _
    // Predicated region
    $region26: #{tpu_custom_call.1} parent=1 // pred_check
      _
    $region27: #{tpu_custom_call.1} parent=1 // pred_check_branch
      %35 = sbr.rel (0) target = $region29
    $region28: #{tpu_custom_call.1} parent=1 // pred_region
      %36 = dma.done [#allocation4], 4096
    $region29: #{tpu_custom_call.1} parent=1 // pred_fallthru
      _
    %v38 = vld [vmem:[%s0] sm:$0xff]
    %39 = vxpose.xlu0.b32.start [1/16] %v38, 128
    %40 = vxpose.xlu0.b32.cont [2/16] 0.0, 128
    %41 = vxpose.xlu0.b32.cont [3/16] 0.0, 128
    %42 = vxpose.xlu0.b32.cont [4/16] 0.0, 128
    %43 = vxpose.xlu0.b32.cont [5/16] 0.0, 128
    %44 = vxpose.xlu0.b32.cont [6/16] 0.0, 128
    %45 = vxpose.xlu0.b32.cont [7/16] 0.0, 128
    %46 = vxpose.xlu0.b32.cont [8/16] 0.0, 128
    %47 = vxpose.xlu0.b32.cont [9/16] 0.0, 128
    %48 = vxpose.xlu0.b32.cont [10/16] 0.0, 128
    %49 = vxpose.xlu0.b32.cont [11/16] 0.0, 128
    %50 = vxpose.xlu0.b32.cont [12/16] 0.0, 128
    %51 = vxpose.xlu0.b32.cont [13/16] 0.0, 128
    %52 = vxpose.xlu0.b32.cont [14/16] 0.0, 128
    %53 = vxpose.xlu0.b32.cont [15/16] 0.0, 128
    %54 = vxpose.xlu0.b32.end [16/16] 0.0, 128
    %v55 = vpop.trf.xlu0
    %v56 = vpop.trf.xlu0
    %v57 = vpop.trf.xlu0
    %v58 = vpop.trf.xlu0
    %v59 = vpop.trf.xlu0
    %v60 = vpop.trf.xlu0
    %v61 = vpop.trf.xlu0
    %v62 = vpop.trf.xlu0
    %v63 = vpop.trf.xlu0
    %v64 = vpop.trf.xlu0
    %v65 = vpop.trf.xlu0
    %v66 = vpop.trf.xlu0
    %v67 = vpop.trf.xlu0
    %v68 = vpop.trf.xlu0
    %v69 = vpop.trf.xlu0
    %v70 = vpop.trf.xlu0
    %v71 = vld [vmem:[%s2] sm:$0xf]
    %v72 = vlaneseq
    %v73 = vshrl.u32 %v72, 7
    %v74 = vsub.s32 0, %v73
    %v75 = vrot.slane %v55, %v74
    %77 = vbcast.lane.b32.xlu0 %v75, 256
    %v78 = vpop.permute.xlu0 %77
    %v79 = vlaneseq
    %v80 = vshrl.u32 %v79, 7
    %v81 = vsub.s32 1, %v80
    %v82 = vrot.slane %v55, %v81
    %84 = vbcast.lane.b32.xlu0 %v82, 256
    %v85 = vpop.permute.xlu0 %84
    %v86 = vlaneseq
    %v87 = vshrl.u32 %v86, 7
    %v88 = vsub.s32 2, %v87
    %v89 = vrot.slane %v55, %v88
    %91 = vbcast.lane.b32.xlu0 %v89, 256
    %v92 = vpop.permute.xlu0 %91
    %v93 = vlaneseq
    %v94 = vshrl.u32 %v93, 7
    %v95 = vsub.s32 3, %v94
    %v96 = vrot.slane %v55, %v95
    %98 = vbcast.lane.b32.xlu0 %v96, 256
    %v99 = vpop.permute.xlu0 %98
    %v100 = vlaneseq
    %v101 = vshrl.u32 %v100, 7
    %v102 = vsub.s32 4, %v101
    %v103 = vrot.slane %v55, %v102
    %105 = vbcast.lane.b32.xlu0 %v103, 256
    %v106 = vpop.permute.xlu0 %105
    %v107 = vlaneseq
    %v108 = vshrl.u32 %v107, 7
    %v109 = vsub.s32 5, %v108
    %v110 = vrot.slane %v55, %v109
    %112 = vbcast.lane.b32.xlu0 %v110, 256
    %v113 = vpop.permute.xlu0 %112
    %v114 = vlaneseq
    %v115 = vshrl.u32 %v114, 7
    %v116 = vsub.s32 6, %v115
    %v117 = vrot.slane %v55, %v116
    %119 = vbcast.lane.b32.xlu0 %v117, 256
    %v120 = vpop.permute.xlu0 %119
    %v121 = vlaneseq
    %v122 = vshrl.u32 %v121, 7
    %v123 = vsub.s32 7, %v122
    %v124 = vrot.slane %v55, %v123
    %126 = vbcast.lane.b32.xlu0 %v124, 256
    %v127 = vpop.permute.xlu0 %126
    %v129 = vlaneseq
    %v130 = vshrl.u32 %v129, 7
    %v131 = vsub.s32 0, %v130
    %v132 = vrot.slane %v71, %v131
    %v133 = vlaneseq
    %v134 = vshrl.u32 %v133, 7
    %v135 = vsub.s32 1, %v134
    %v136 = vrot.slane %v71, %v135
    %v137 = vlaneseq
    %v138 = vshrl.u32 %v137, 7
    %v139 = vsub.s32 2, %v138
    %v140 = vrot.slane %v71, %v139
    %v141 = vlaneseq
    %v142 = vshrl.u32 %v141, 7
    %v143 = vsub.s32 3, %v142
    %v144 = vrot.slane %v71, %v143
    %v149 = vmul.f32 %v78, %v132
    %v150 = vmul.f32 %v78, %v136
    %v151 = vmul.f32 %v78, %v140
    %v152 = vmul.f32 %v78, %v144
    %v153 = vmul.f32 %v85, %v132
    %v154 = vmul.f32 %v85, %v136
    %v155 = vmul.f32 %v85, %v140
    %v156 = vmul.f32 %v85, %v144
    %v157 = vmul.f32 %v92, %v132
    %v158 = vmul.f32 %v92, %v136
    %v159 = vmul.f32 %v92, %v140
    %v160 = vmul.f32 %v92, %v144
    %v161 = vmul.f32 %v99, %v132
    %v162 = vmul.f32 %v99, %v136
    %v163 = vmul.f32 %v99, %v140
    %v164 = vmul.f32 %v99, %v144
    %v165 = vmul.f32 %v106, %v132
    %v166 = vmul.f32 %v106, %v136
    %v167 = vmul.f32 %v106, %v140
    %v168 = vmul.f32 %v106, %v144
    %v169 = vmul.f32 %v113, %v132
    %v170 = vmul.f32 %v113, %v136
    %v171 = vmul.f32 %v113, %v140
    %v172 = vmul.f32 %v113, %v144
    %v173 = vmul.f32 %v120, %v132
    %v174 = vmul.f32 %v120, %v136
    %v175 = vmul.f32 %v120, %v140
    %v176 = vmul.f32 %v120, %v144
    %v177 = vmul.f32 %v127, %v132
    %v178 = vmul.f32 %v127, %v136
    %v179 = vmul.f32 %v127, %v140
    %v180 = vmul.f32 %v127, %v144
    %v181 = vpack.c.bf16 %v149, %v149
    %v182 = vpack.c.bf16 %v150, %v150
    %v183 = vpack.c.bf16 %v151, %v151
    %v184 = vpack.c.bf16 %v152, %v152
    %v185 = vpack.c.bf16 %v153, %v153
    %v186 = vpack.c.bf16 %v154, %v154
    %v187 = vpack.c.bf16 %v155, %v155
    %v188 = vpack.c.bf16 %v156, %v156
    %v189 = vpack.c.bf16 %v157, %v157
    %v190 = vpack.c.bf16 %v158, %v158
    %v191 = vpack.c.bf16 %v159, %v159
    %v192 = vpack.c.bf16 %v160, %v160
    %v193 = vpack.c.bf16 %v161, %v161
    %v194 = vpack.c.bf16 %v162, %v162
    %v195 = vpack.c.bf16 %v163, %v163
    %v196 = vpack.c.bf16 %v164, %v164
    %v197 = vpack.c.bf16 %v165, %v165
    %v198 = vpack.c.bf16 %v166, %v166
    %v199 = vpack.c.bf16 %v167, %v167
    %v200 = vpack.c.bf16 %v168, %v168
    %v201 = vpack.c.bf16 %v169, %v169
    %v202 = vpack.c.bf16 %v170, %v170
    %v203 = vpack.c.bf16 %v171, %v171
    %v204 = vpack.c.bf16 %v172, %v172
    %v205 = vpack.c.bf16 %v173, %v173
    %v206 = vpack.c.bf16 %v174, %v174
    %v207 = vpack.c.bf16 %v175, %v175
    %v208 = vpack.c.bf16 %v176, %v176
    %v209 = vpack.c.bf16 %v177, %v177
    %v210 = vpack.c.bf16 %v178, %v178
    %v211 = vpack.c.bf16 %v179, %v179
    %v212 = vpack.c.bf16 %v180, %v180
    %v245 = vunpack.c.l.b16 %v181
    %v246 = vunpack.c.l.b16 %v182
    %v247 = vunpack.c.l.b16 %v183
    %v248 = vunpack.c.l.b16 %v184
    %v249 = vunpack.c.l.b16 %v185
    %v250 = vunpack.c.l.b16 %v186
    %v251 = vunpack.c.l.b16 %v187
    %v252 = vunpack.c.l.b16 %v188
    %v253 = vunpack.c.l.b16 %v189
    %v254 = vunpack.c.l.b16 %v190
    %v255 = vunpack.c.l.b16 %v191
    %v256 = vunpack.c.l.b16 %v192
    %v257 = vunpack.c.l.b16 %v193
    %v258 = vunpack.c.l.b16 %v194
    %v259 = vunpack.c.l.b16 %v195
    %v260 = vunpack.c.l.b16 %v196
    %v261 = vunpack.c.l.b16 %v197
    %v262 = vunpack.c.l.b16 %v198
    %v263 = vunpack.c.l.b16 %v199
    %v264 = vunpack.c.l.b16 %v200
    %v265 = vunpack.c.l.b16 %v201
    %v266 = vunpack.c.l.b16 %v202
    %v267 = vunpack.c.l.b16 %v203
    %v268 = vunpack.c.l.b16 %v204
    %v269 = vunpack.c.l.b16 %v205
    %v270 = vunpack.c.l.b16 %v206
    %v271 = vunpack.c.l.b16 %v207
    %v272 = vunpack.c.l.b16 %v208
    %v273 = vunpack.c.l.b16 %v209
    %v274 = vunpack.c.l.b16 %v210
    %v275 = vunpack.c.l.b16 %v211
    %v276 = vunpack.c.l.b16 %v212
    %v277 = vpack.c.b16 %v246, %v245
    %v278 = vpack.c.b16 %v248, %v247
    %v279 = vpack.c.b16 %v250, %v249
    %v280 = vpack.c.b16 %v252, %v251
    %v281 = vpack.c.b16 %v254, %v253
    %v282 = vpack.c.b16 %v256, %v255
    %v283 = vpack.c.b16 %v258, %v257
    %v284 = vpack.c.b16 %v260, %v259
    %v285 = vpack.c.b16 %v262, %v261
    %v286 = vpack.c.b16 %v264, %v263
    %v287 = vpack.c.b16 %v266, %v265
    %v288 = vpack.c.b16 %v268, %v267
    %v289 = vpack.c.b16 %v270, %v269
    %v290 = vpack.c.b16 %v272, %v271
    %v291 = vpack.c.b16 %v274, %v273
    %v292 = vpack.c.b16 %v276, %v275
    %309 = vst [vmem:[#allocation2] sm:$0xff] %v277
    %310 = vst [vmem:[#allocation2 + $0x8] sm:$0xff] %v278
    %311 = vst [vmem:[#allocation2 + $0x10] sm:$0xff] %v279
    %312 = vst [vmem:[#allocation2 + $0x18] sm:$0xff] %v280
    %313 = vst [vmem:[#allocation2 + $0x20] sm:$0xff] %v281
    %314 = vst [vmem:[#allocation2 + $0x28] sm:$0xff] %v282
    %315 = vst [vmem:[#allocation2 + $0x30] sm:$0xff] %v283
    %316 = vst [vmem:[#allocation2 + $0x38] sm:$0xff] %v284
    %317 = vst [vmem:[#allocation2 + $0x40] sm:$0xff] %v285
    %318 = vst [vmem:[#allocation2 + $0x48] sm:$0xff] %v286
    %319 = vst [vmem:[#allocation2 + $0x50] sm:$0xff] %v287
    %320 = vst [vmem:[#allocation2 + $0x58] sm:$0xff] %v288
    %321 = vst [vmem:[#allocation2 + $0x60] sm:$0xff] %v289
    %322 = vst [vmem:[#allocation2 + $0x68] sm:$0xff] %v290
    %323 = vst [vmem:[#allocation2 + $0x70] sm:$0xff] %v291
    %324 = vst [vmem:[#allocation2 + $0x78] sm:$0xff] %v292
    %v325 = vlaneseq
    %v326 = vshrl.u32 %v325, 7
    %v327 = vsub.s32 0, %v326
    %v328 = vrot.slane %v56, %v327
    %330 = vbcast.lane.b32.xlu0 %v328, 256
    %v331 = vpop.permute.xlu0 %330
    %v332 = vlaneseq
    %v333 = vshrl.u32 %v332, 7
    %v334 = vsub.s32 1, %v333
    %v335 = vrot.slane %v56, %v334
    %337 = vbcast.lane.b32.xlu0 %v335, 256
    %v338 = vpop.permute.xlu0 %337
    %v339 = vlaneseq
    %v340 = vshrl.u32 %v339, 7
    %v341 = vsub.s32 2, %v340
    %v342 = vrot.slane %v56, %v341
    %344 = vbcast.lane.b32.xlu0 %v342, 256
    %v345 = vpop.permute.xlu0 %344
    %v346 = vlaneseq
    %v347 = vshrl.u32 %v346, 7
    %v348 = vsub.s32 3, %v347
    %v349 = vrot.slane %v56, %v348
    %351 = vbcast.lane.b32.xlu0 %v349, 256
    %v352 = vpop.permute.xlu0 %351
    %v353 = vlaneseq
    %v354 = vshrl.u32 %v353, 7
    %v355 = vsub.s32 4, %v354
    %v356 = vrot.slane %v56, %v355
    %358 = vbcast.lane.b32.xlu0 %v356, 256
    %v359 = vpop.permute.xlu0 %358
    %v360 = vlaneseq
    %v361 = vshrl.u32 %v360, 7
    %v362 = vsub.s32 5, %v361
    %v363 = vrot.slane %v56, %v362
    %365 = vbcast.lane.b32.xlu0 %v363, 256
    %v366 = vpop.permute.xlu0 %365
    %v367 = vlaneseq
    %v368 = vshrl.u32 %v367, 7
    %v369 = vsub.s32 6, %v368
    %v370 = vrot.slane %v56, %v369
    %372 = vbcast.lane.b32.xlu0 %v370, 256
    %v373 = vpop.permute.xlu0 %372
    %v374 = vlaneseq
    %v375 = vshrl.u32 %v374, 7
    %v376 = vsub.s32 7, %v375
    %v377 = vrot.slane %v56, %v376
    %379 = vbcast.lane.b32.xlu0 %v377, 256
    %v380 = vpop.permute.xlu0 %379
    %v381 = vmul.f32 %v331, %v132
    %v382 = vmul.f32 %v331, %v136
    %v383 = vmul.f32 %v331, %v140
    %v384 = vmul.f32 %v331, %v144
    %v385 = vmul.f32 %v338, %v132
    %v386 = vmul.f32 %v338, %v136
    %v387 = vmul.f32 %v338, %v140
    %v388 = vmul.f32 %v338, %v144
    %v389 = vmul.f32 %v345, %v132
    %v390 = vmul.f32 %v345, %v136
    %v391 = vmul.f32 %v345, %v140
    %v392 = vmul.f32 %v345, %v144
    %v393 = vmul.f32 %v352, %v132
    %v394 = vmul.f32 %v352, %v136
    %v395 = vmul.f32 %v352, %v140
    %v396 = vmul.f32 %v352, %v144
    %v397 = vmul.f32 %v359, %v132
    %v398 = vmul.f32 %v359, %v136
    %v399 = vmul.f32 %v359, %v140
    %v400 = vmul.f32 %v359, %v144
    %v401 = vmul.f32 %v366, %v132
    %v402 = vmul.f32 %v366, %v136
    %v403 = vmul.f32 %v366, %v140
    %v404 = vmul.f32 %v366, %v144
    %v405 = vmul.f32 %v373, %v132
    %v406 = vmul.f32 %v373, %v136
    %v407 = vmul.f32 %v373, %v140
    %v408 = vmul.f32 %v373, %v144
    %v409 = vmul.f32 %v380, %v132
    %v410 = vmul.f32 %v380, %v136
    %v411 = vmul.f32 %v380, %v140
    %v412 = vmul.f32 %v380, %v144
    %v413 = vpack.c.bf16 %v381, %v381
    %v414 = vpack.c.bf16 %v382, %v382
    %v415 = vpack.c.bf16 %v383, %v383
    %v416 = vpack.c.bf16 %v384, %v384
    %v417 = vpack.c.bf16 %v385, %v385
    %v418 = vpack.c.bf16 %v386, %v386
    %v419 = vpack.c.bf16 %v387, %v387
    %v420 = vpack.c.bf16 %v388, %v388
    %v421 = vpack.c.bf16 %v389, %v389
    %v422 = vpack.c.bf16 %v390, %v390
    %v423 = vpack.c.bf16 %v391, %v391
    %v424 = vpack.c.bf16 %v392, %v392
    %v425 = vpack.c.bf16 %v393, %v393
    %v426 = vpack.c.bf16 %v394, %v394
    %v427 = vpack.c.bf16 %v395, %v395
    %v428 = vpack.c.bf16 %v396, %v396
    %v429 = vpack.c.bf16 %v397, %v397
    %v430 = vpack.c.bf16 %v398, %v398
    %v431 = vpack.c.bf16 %v399, %v399
    %v432 = vpack.c.bf16 %v400, %v400
    %v433 = vpack.c.bf16 %v401, %v401
    %v434 = vpack.c.bf16 %v402, %v402
    %v435 = vpack.c.bf16 %v403, %v403
    %v436 = vpack.c.bf16 %v404, %v404
    %v437 = vpack.c.bf16 %v405, %v405
    %v438 = vpack.c.bf16 %v406, %v406
    %v439 = vpack.c.bf16 %v407, %v407
    %v440 = vpack.c.bf16 %v408, %v408
    %v441 = vpack.c.bf16 %v409, %v409
    %v442 = vpack.c.bf16 %v410, %v410
    %v443 = vpack.c.bf16 %v411, %v411
    %v444 = vpack.c.bf16 %v412, %v412
    %v477 = vunpack.c.l.b16 %v413
    %v478 = vunpack.c.l.b16 %v414
    %v479 = vunpack.c.l.b16 %v415
    %v480 = vunpack.c.l.b16 %v416
    %v481 = vunpack.c.l.b16 %v417
    %v482 = vunpack.c.l.b16 %v418
    %v483 = vunpack.c.l.b16 %v419
    %v484 = vunpack.c.l.b16 %v420
    %v485 = vunpack.c.l.b16 %v421
    %v486 = vunpack.c.l.b16 %v422
    %v487 = vunpack.c.l.b16 %v423
    %v488 = vunpack.c.l.b16 %v424
    %v489 = vunpack.c.l.b16 %v425
    %v490 = vunpack.c.l.b16 %v426
    %v491 = vunpack.c.l.b16 %v427
    %v492 = vunpack.c.l.b16 %v428
    %v493 = vunpack.c.l.b16 %v429
    %v494 = vunpack.c.l.b16 %v430
    %v495 = vunpack.c.l.b16 %v431
    %v496 = vunpack.c.l.b16 %v432
    %v497 = vunpack.c.l.b16 %v433
    %v498 = vunpack.c.l.b16 %v434
    %v499 = vunpack.c.l.b16 %v435
    %v500 = vunpack.c.l.b16 %v436
    %v501 = vunpack.c.l.b16 %v437
    %v502 = vunpack.c.l.b16 %v438
    %v503 = vunpack.c.l.b16 %v439
    %v504 = vunpack.c.l.b16 %v440
    %v505 = vunpack.c.l.b16 %v441
    %v506 = vunpack.c.l.b16 %v442
    %v507 = vunpack.c.l.b16 %v443
    %v508 = vunpack.c.l.b16 %v444
    %v509 = vpack.c.b16 %v478, %v477
    %v510 = vpack.c.b16 %v480, %v479
    %v511 = vpack.c.b16 %v482, %v481
    %v512 = vpack.c.b16 %v484, %v483
    %v513 = vpack.c.b16 %v486, %v485
    %v514 = vpack.c.b16 %v488, %v487
    %v515 = vpack.c.b16 %v490, %v489
    %v516 = vpack.c.b16 %v492, %v491
    %v517 = vpack.c.b16 %v494, %v493
    %v518 = vpack.c.b16 %v496, %v495
    %v519 = vpack.c.b16 %v498, %v497
    %v520 = vpack.c.b16 %v500, %v499
    %v521 = vpack.c.b16 %v502, %v501
    %v522 = vpack.c.b16 %v504, %v503
    %v523 = vpack.c.b16 %v506, %v505
    %v524 = vpack.c.b16 %v508, %v507
    %s541 = scalar_lea.vmem [#allocation2], 128
    %542 = vst [vmem:[%s541] sm:$0xff] %v509
    %543 = vst [vmem:[%s541 + $0x8] sm:$0xff] %v510
    %544 = vst [vmem:[%s541 + $0x10] sm:$0xff] %v511
    %545 = vst [vmem:[%s541 + $0x18] sm:$0xff] %v512
    %546 = vst [vmem:[%s541 + $0x20] sm:$0xff] %v513
    %547 = vst [vmem:[%s541 + $0x28] sm:$0xff] %v514
    %548 = vst [vmem:[%s541 + $0x30] sm:$0xff] %v515
    %549 = vst [vmem:[%s541 + $0x38] sm:$0xff] %v516
    %550 = vst [vmem:[%s541 + $0x40] sm:$0xff] %v517
    %551 = vst [vmem:[%s541 + $0x48] sm:$0xff] %v518
    %552 = vst [vmem:[%s541 + $0x50] sm:$0xff] %v519
    %553 = vst [vmem:[%s541 + $0x58] sm:$0xff] %v520
    %554 = vst [vmem:[%s541 + $0x60] sm:$0xff] %v521
    %555 = vst [vmem:[%s541 + $0x68] sm:$0xff] %v522
    %556 = vst [vmem:[%s541 + $0x70] sm:$0xff] %v523
    %557 = vst [vmem:[%s541 + $0x78] sm:$0xff] %v524
    %v558 = vlaneseq
    %v559 = vshrl.u32 %v558, 7
    %v560 = vsub.s32 0, %v559
    %v561 = vrot.slane %v57, %v560
    %563 = vbcast.lane.b32.xlu0 %v561, 256
    %v564 = vpop.permute.xlu0 %563
    %v565 = vlaneseq
    %v566 = vshrl.u32 %v565, 7
    %v567 = vsub.s32 1, %v566
    %v568 = vrot.slane %v57, %v567
    %570 = vbcast.lane.b32.xlu0 %v568, 256
    %v571 = vpop.permute.xlu0 %570
    %v572 = vlaneseq
    %v573 = vshrl.u32 %v572, 7
    %v574 = vsub.s32 2, %v573
    %v575 = vrot.slane %v57, %v574
    %577 = vbcast.lane.b32.xlu0 %v575, 256
    %v578 = vpop.permute.xlu0 %577
    %v579 = vlaneseq
    %v580 = vshrl.u32 %v579, 7
    %v581 = vsub.s32 3, %v580
    %v582 = vrot.slane %v57, %v581
    %584 = vbcast.lane.b32.xlu0 %v582, 256
    %v585 = vpop.permute.xlu0 %584
    %v586 = vlaneseq
    %v587 = vshrl.u32 %v586, 7
    %v588 = vsub.s32 4, %v587
    %v589 = vrot.slane %v57, %v588
    %591 = vbcast.lane.b32.xlu0 %v589, 256
    %v592 = vpop.permute.xlu0 %591
    %v593 = vlaneseq
    %v594 = vshrl.u32 %v593, 7
    %v595 = vsub.s32 5, %v594
    %v596 = vrot.slane %v57, %v595
    %598 = vbcast.lane.b32.xlu0 %v596, 256
    %v599 = vpop.permute.xlu0 %598
    %v600 = vlaneseq
    %v601 = vshrl.u32 %v600, 7
    %v602 = vsub.s32 6, %v601
    %v603 = vrot.slane %v57, %v602
    %605 = vbcast.lane.b32.xlu0 %v603, 256
    %v606 = vpop.permute.xlu0 %605
    %v607 = vlaneseq
    %v608 = vshrl.u32 %v607, 7
    %v609 = vsub.s32 7, %v608
    %v610 = vrot.slane %v57, %v609
    %612 = vbcast.lane.b32.xlu0 %v610, 256
    %v613 = vpop.permute.xlu0 %612
    %v614 = vmul.f32 %v564, %v132
    %v615 = vmul.f32 %v564, %v136
    %v616 = vmul.f32 %v564, %v140
    %v617 = vmul.f32 %v564, %v144
    %v618 = vmul.f32 %v571, %v132
    %v619 = vmul.f32 %v571, %v136
    %v620 = vmul.f32 %v571, %v140
    %v621 = vmul.f32 %v571, %v144
    %v622 = vmul.f32 %v578, %v132
    %v623 = vmul.f32 %v578, %v136
    %v624 = vmul.f32 %v578, %v140
    %v625 = vmul.f32 %v578, %v144
    %v626 = vmul.f32 %v585, %v132
    %v627 = vmul.f32 %v585, %v136
    %v628 = vmul.f32 %v585, %v140
    %v629 = vmul.f32 %v585, %v144
    %v630 = vmul.f32 %v592, %v132
    %v631 = vmul.f32 %v592, %v136
    %v632 = vmul.f32 %v592, %v140
    %v633 = vmul.f32 %v592, %v144
    %v634 = vmul.f32 %v599, %v132
    %v635 = vmul.f32 %v599, %v136
    %v636 = vmul.f32 %v599, %v140
    %v637 = vmul.f32 %v599, %v144
    %v638 = vmul.f32 %v606, %v132
    %v639 = vmul.f32 %v606, %v136
    %v640 = vmul.f32 %v606, %v140
    %v641 = vmul.f32 %v606, %v144
    %v642 = vmul.f32 %v613, %v132
    %v643 = vmul.f32 %v613, %v136
    %v644 = vmul.f32 %v613, %v140
    %v645 = vmul.f32 %v613, %v144
    %v646 = vpack.c.bf16 %v614, %v614
    %v647 = vpack.c.bf16 %v615, %v615
    %v648 = vpack.c.bf16 %v616, %v616
    %v649 = vpack.c.bf16 %v617, %v617
    %v650 = vpack.c.bf16 %v618, %v618
    %v651 = vpack.c.bf16 %v619, %v619
    %v652 = vpack.c.bf16 %v620, %v620
    %v653 = vpack.c.bf16 %v621, %v621
    %v654 = vpack.c.bf16 %v622, %v622
    %v655 = vpack.c.bf16 %v623, %v623
    %v656 = vpack.c.bf16 %v624, %v624
    %v657 = vpack.c.bf16 %v625, %v625
    %v658 = vpack.c.bf16 %v626, %v626
    %v659 = vpack.c.bf16 %v627, %v627
    %v660 = vpack.c.bf16 %v628, %v628
    %v661 = vpack.c.bf16 %v629, %v629
    %v662 = vpack.c.bf16 %v630, %v630
    %v663 = vpack.c.bf16 %v631, %v631
    %v664 = vpack.c.bf16 %v632, %v632
    %v665 = vpack.c.bf16 %v633, %v633
    %v666 = vpack.c.bf16 %v634, %v634
    %v667 = vpack.c.bf16 %v635, %v635
    %v668 = vpack.c.bf16 %v636, %v636
    %v669 = vpack.c.bf16 %v637, %v637
    %v670 = vpack.c.bf16 %v638, %v638
    %v671 = vpack.c.bf16 %v639, %v639
    %v672 = vpack.c.bf16 %v640, %v640
    %v673 = vpack.c.bf16 %v641, %v641
    %v674 = vpack.c.bf16 %v642, %v642
    %v675 = vpack.c.bf16 %v643, %v643
    %v676 = vpack.c.bf16 %v644, %v644
    %v677 = vpack.c.bf16 %v645, %v645
    %v710 = vunpack.c.l.b16 %v646
    %v711 = vunpack.c.l.b16 %v647
    %v712 = vunpack.c.l.b16 %v648
    %v713 = vunpack.c.l.b16 %v649
    %v714 = vunpack.c.l.b16 %v650
    %v715 = vunpack.c.l.b16 %v651
    %v716 = vunpack.c.l.b16 %v652
    %v717 = vunpack.c.l.b16 %v653
    %v718 = vunpack.c.l.b16 %v654
    %v719 = vunpack.c.l.b16 %v655
    %v720 = vunpack.c.l.b16 %v656
    %v721 = vunpack.c.l.b16 %v657
    %v722 = vunpack.c.l.b16 %v658
    %v723 = vunpack.c.l.b16 %v659
    %v724 = vunpack.c.l.b16 %v660
    %v725 = vunpack.c.l.b16 %v661
    %v726 = vunpack.c.l.b16 %v662
    %v727 = vunpack.c.l.b16 %v663
    %v728 = vunpack.c.l.b16 %v664
    %v729 = vunpack.c.l.b16 %v665
    %v730 = vunpack.c.l.b16 %v666
    %v731 = vunpack.c.l.b16 %v667
    %v732 = vunpack.c.l.b16 %v668
    %v733 = vunpack.c.l.b16 %v669
    %v734 = vunpack.c.l.b16 %v670
    %v735 = vunpack.c.l.b16 %v671
    %v736 = vunpack.c.l.b16 %v672
    %v737 = vunpack.c.l.b16 %v673
    %v738 = vunpack.c.l.b16 %v674
    %v739 = vunpack.c.l.b16 %v675
    %v740 = vunpack.c.l.b16 %v676
    %v741 = vunpack.c.l.b16 %v677
    %v742 = vpack.c.b16 %v711, %v710
    %v743 = vpack.c.b16 %v713, %v712
    %v744 = vpack.c.b16 %v715, %v714
    %v745 = vpack.c.b16 %v717, %v716
    %v746 = vpack.c.b16 %v719, %v718
    %v747 = vpack.c.b16 %v721, %v720
    %v748 = vpack.c.b16 %v723, %v722
    %v749 = vpack.c.b16 %v725, %v724
    %v750 = vpack.c.b16 %v727, %v726
    %v751 = vpack.c.b16 %v729, %v728
    %v752 = vpack.c.b16 %v731, %v730
    %v753 = vpack.c.b16 %v733, %v732
    %v754 = vpack.c.b16 %v735, %v734
    %v755 = vpack.c.b16 %v737, %v736
    %v756 = vpack.c.b16 %v739, %v738
    %v757 = vpack.c.b16 %v741, %v740
    %s774 = scalar_lea.vmem [#allocation2], 256
    %775 = vst [vmem:[%s774] sm:$0xff] %v742
    %776 = vst [vmem:[%s774 + $0x8] sm:$0xff] %v743
    %777 = vst [vmem:[%s774 + $0x10] sm:$0xff] %v744
    %778 = vst [vmem:[%s774 + $0x18] sm:$0xff] %v745
    %779 = vst [vmem:[%s774 + $0x20] sm:$0xff] %v746
    %780 = vst [vmem:[%s774 + $0x28] sm:$0xff] %v747
    %781 = vst [vmem:[%s774 + $0x30] sm:$0xff] %v748
    %782 = vst [vmem:[%s774 + $0x38] sm:$0xff] %v749
    %783 = vst [vmem:[%s774 + $0x40] sm:$0xff] %v750
    %784 = vst [vmem:[%s774 + $0x48] sm:$0xff] %v751
    %785 = vst [vmem:[%s774 + $0x50] sm:$0xff] %v752
    %786 = vst [vmem:[%s774 + $0x58] sm:$0xff] %v753
    %787 = vst [vmem:[%s774 + $0x60] sm:$0xff] %v754
    %788 = vst [vmem:[%s774 + $0x68] sm:$0xff] %v755
    %789 = vst [vmem:[%s774 + $0x70] sm:$0xff] %v756
    %790 = vst [vmem:[%s774 + $0x78] sm:$0xff] %v757
    %v791 = vlaneseq
    %v792 = vshrl.u32 %v791, 7
    %v793 = vsub.s32 0, %v792
    %v794 = vrot.slane %v58, %v793
    %796 = vbcast.lane.b32.xlu0 %v794, 256
    %v797 = vpop.permute.xlu0 %796
    %v798 = vlaneseq
    %v799 = vshrl.u32 %v798, 7
    %v800 = vsub.s32 1, %v799
    %v801 = vrot.slane %v58, %v800
    %803 = vbcast.lane.b32.xlu0 %v801, 256
    %v804 = vpop.permute.xlu0 %803
    %v805 = vlaneseq
    %v806 = vshrl.u32 %v805, 7
    %v807 = vsub.s32 2, %v806
    %v808 = vrot.slane %v58, %v807
    %810 = vbcast.lane.b32.xlu0 %v808, 256
    %v811 = vpop.permute.xlu0 %810
    %v812 = vlaneseq
    %v813 = vshrl.u32 %v812, 7
    %v814 = vsub.s32 3, %v813
    %v815 = vrot.slane %v58, %v814
    %817 = vbcast.lane.b32.xlu0 %v815, 256
    %v818 = vpop.permute.xlu0 %817
    %v819 = vlaneseq
    %v820 = vshrl.u32 %v819, 7
    %v821 = vsub.s32 4, %v820
    %v822 = vrot.slane %v58, %v821
    %824 = vbcast.lane.b32.xlu0 %v822, 256
    %v825 = vpop.permute.xlu0 %824
    %v826 = vlaneseq
    %v827 = vshrl.u32 %v826, 7
    %v828 = vsub.s32 5, %v827
    %v829 = vrot.slane %v58, %v828
    %831 = vbcast.lane.b32.xlu0 %v829, 256
    %v832 = vpop.permute.xlu0 %831
    %v833 = vlaneseq
    %v834 = vshrl.u32 %v833, 7
    %v835 = vsub.s32 6, %v834
    %v836 = vrot.slane %v58, %v835
    %838 = vbcast.lane.b32.xlu0 %v836, 256
    %v839 = vpop.permute.xlu0 %838
    %v840 = vlaneseq
    %v841 = vshrl.u32 %v840, 7
    %v842 = vsub.s32 7, %v841
    %v843 = vrot.slane %v58, %v842
    %845 = vbcast.lane.b32.xlu0 %v843, 256
    %v846 = vpop.permute.xlu0 %845
    %v847 = vmul.f32 %v797, %v132
    %v848 = vmul.f32 %v797, %v136
    %v849 = vmul.f32 %v797, %v140
    %v850 = vmul.f32 %v797, %v144
    %v851 = vmul.f32 %v804, %v132
    %v852 = vmul.f32 %v804, %v136
    %v853 = vmul.f32 %v804, %v140
    %v854 = vmul.f32 %v804, %v144
    %v855 = vmul.f32 %v811, %v132
    %v856 = vmul.f32 %v811, %v136
    %v857 = vmul.f32 %v811, %v140
    %v858 = vmul.f32 %v811, %v144
    %v859 = vmul.f32 %v818, %v132
    %v860 = vmul.f32 %v818, %v136
    %v861 = vmul.f32 %v818, %v140
    %v862 = vmul.f32 %v818, %v144
    %v863 = vmul.f32 %v825, %v132
    %v864 = vmul.f32 %v825, %v136
    %v865 = vmul.f32 %v825, %v140
    %v866 = vmul.f32 %v825, %v144
    %v867 = vmul.f32 %v832, %v132
    %v868 = vmul.f32 %v832, %v136
    %v869 = vmul.f32 %v832, %v140
    %v870 = vmul.f32 %v832, %v144
    %v871 = vmul.f32 %v839, %v132
    %v872 = vmul.f32 %v839, %v136
    %v873 = vmul.f32 %v839, %v140
    %v874 = vmul.f32 %v839, %v144
    %v875 = vmul.f32 %v846, %v132
    %v876 = vmul.f32 %v846, %v136
    %v877 = vmul.f32 %v846, %v140
    %v878 = vmul.f32 %v846, %v144
    %v879 = vpack.c.bf16 %v847, %v847
    %v880 = vpack.c.bf16 %v848, %v848
    %v881 = vpack.c.bf16 %v849, %v849
    %v882 = vpack.c.bf16 %v850, %v850
    %v883 = vpack.c.bf16 %v851, %v851
    %v884 = vpack.c.bf16 %v852, %v852
    %v885 = vpack.c.bf16 %v853, %v853
    %v886 = vpack.c.bf16 %v854, %v854
    %v887 = vpack.c.bf16 %v855, %v855
    %v888 = vpack.c.bf16 %v856, %v856
    %v889 = vpack.c.bf16 %v857, %v857
    %v890 = vpack.c.bf16 %v858, %v858
    %v891 = vpack.c.bf16 %v859, %v859
    %v892 = vpack.c.bf16 %v860, %v860
    %v893 = vpack.c.bf16 %v861, %v861
    %v894 = vpack.c.bf16 %v862, %v862
    %v895 = vpack.c.bf16 %v863, %v863
    %v896 = vpack.c.bf16 %v864, %v864
    %v897 = vpack.c.bf16 %v865, %v865
    %v898 = vpack.c.bf16 %v866, %v866
    %v899 = vpack.c.bf16 %v867, %v867
    %v900 = vpack.c.bf16 %v868, %v868
    %v901 = vpack.c.bf16 %v869, %v869
    %v902 = vpack.c.bf16 %v870, %v870
    %v903 = vpack.c.bf16 %v871, %v871
    %v904 = vpack.c.bf16 %v872, %v872
    %v905 = vpack.c.bf16 %v873, %v873
    %v906 = vpack.c.bf16 %v874, %v874
    %v907 = vpack.c.bf16 %v875, %v875
    %v908 = vpack.c.bf16 %v876, %v876
    %v909 = vpack.c.bf16 %v877, %v877
    %v910 = vpack.c.bf16 %v878, %v878
    %v943 = vunpack.c.l.b16 %v879
    %v944 = vunpack.c.l.b16 %v880
    %v945 = vunpack.c.l.b16 %v881
    %v946 = vunpack.c.l.b16 %v882
    %v947 = vunpack.c.l.b16 %v883
    %v948 = vunpack.c.l.b16 %v884
    %v949 = vunpack.c.l.b16 %v885
    %v950 = vunpack.c.l.b16 %v886
    %v951 = vunpack.c.l.b16 %v887
    %v952 = vunpack.c.l.b16 %v888
    %v953 = vunpack.c.l.b16 %v889
    %v954 = vunpack.c.l.b16 %v890
    %v955 = vunpack.c.l.b16 %v891
    %v956 = vunpack.c.l.b16 %v892
    %v957 = vunpack.c.l.b16 %v893
    %v958 = vunpack.c.l.b16 %v894
    %v959 = vunpack.c.l.b16 %v895
    %v960 = vunpack.c.l.b16 %v896
    %v961 = vunpack.c.l.b16 %v897
    %v962 = vunpack.c.l.b16 %v898
    %v963 = vunpack.c.l.b16 %v899
    %v964 = vunpack.c.l.b16 %v900
    %v965 = vunpack.c.l.b16 %v901
    %v966 = vunpack.c.l.b16 %v902
    %v967 = vunpack.c.l.b16 %v903
    %v968 = vunpack.c.l.b16 %v904
    %v969 = vunpack.c.l.b16 %v905
    %v970 = vunpack.c.l.b16 %v906
    %v971 = vunpack.c.l.b16 %v907
    %v972 = vunpack.c.l.b16 %v908
    %v973 = vunpack.c.l.b16 %v909
    %v974 = vunpack.c.l.b16 %v910
    %v975 = vpack.c.b16 %v944, %v943
    %v976 = vpack.c.b16 %v946, %v945
    %v977 = vpack.c.b16 %v948, %v947
    %v978 = vpack.c.b16 %v950, %v949
    %v979 = vpack.c.b16 %v952, %v951
    %v980 = vpack.c.b16 %v954, %v953
    %v981 = vpack.c.b16 %v956, %v955
    %v982 = vpack.c.b16 %v958, %v957
    %v983 = vpack.c.b16 %v960, %v959
    %v984 = vpack.c.b16 %v962, %v961
    %v985 = vpack.c.b16 %v964, %v963
    %v986 = vpack.c.b16 %v966, %v965
    %v987 = vpack.c.b16 %v968, %v967
    %v988 = vpack.c.b16 %v970, %v969
    %v989 = vpack.c.b16 %v972, %v971
    %v990 = vpack.c.b16 %v974, %v973
    %s1007 = scalar_lea.vmem [#allocation2], 384
    %1008 = vst [vmem:[%s1007] sm:$0xff] %v975
    %1009 = vst [vmem:[%s1007 + $0x8] sm:$0xff] %v976
    %1010 = vst [vmem:[%s1007 + $0x10] sm:$0xff] %v977
    %1011 = vst [vmem:[%s1007 + $0x18] sm:$0xff] %v978
    %1012 = vst [vmem:[%s1007 + $0x20] sm:$0xff] %v979
    %1013 = vst [vmem:[%s1007 + $0x28] sm:$0xff] %v980
    %1014 = vst [vmem:[%s1007 + $0x30] sm:$0xff] %v981
    %1015 = vst [vmem:[%s1007 + $0x38] sm:$0xff] %v982
    %1016 = vst [vmem:[%s1007 + $0x40] sm:$0xff] %v983
    %1017 = vst [vmem:[%s1007 + $0x48] sm:$0xff] %v984
    %1018 = vst [vmem:[%s1007 + $0x50] sm:$0xff] %v985
    %1019 = vst [vmem:[%s1007 + $0x58] sm:$0xff] %v986
    %1020 = vst [vmem:[%s1007 + $0x60] sm:$0xff] %v987
    %1021 = vst [vmem:[%s1007 + $0x68] sm:$0xff] %v988
    %1022 = vst [vmem:[%s1007 + $0x70] sm:$0xff] %v989
    %1023 = vst [vmem:[%s1007 + $0x78] sm:$0xff] %v990
    %v1024 = vlaneseq
    %v1025 = vshrl.u32 %v1024, 7
    %v1026 = vsub.s32 0, %v1025
    %v1027 = vrot.slane %v59, %v1026
    %1029 = vbcast.lane.b32.xlu0 %v1027, 256
    %v1030 = vpop.permute.xlu0 %1029
    %v1031 = vlaneseq
    %v1032 = vshrl.u32 %v1031, 7
    %v1033 = vsub.s32 1, %v1032
    %v1034 = vrot.slane %v59, %v1033
    %1036 = vbcast.lane.b32.xlu0 %v1034, 256
    %v1037 = vpop.permute.xlu0 %1036
    %v1038 = vlaneseq
    %v1039 = vshrl.u32 %v1038, 7
    %v1040 = vsub.s32 2, %v1039
    %v1041 = vrot.slane %v59, %v1040
    %1043 = vbcast.lane.b32.xlu0 %v1041, 256
    %v1044 = vpop.permute.xlu0 %1043
    %v1045 = vlaneseq
    %v1046 = vshrl.u32 %v1045, 7
    %v1047 = vsub.s32 3, %v1046
    %v1048 = vrot.slane %v59, %v1047
    %1050 = vbcast.lane.b32.xlu0 %v1048, 256
    %v1051 = vpop.permute.xlu0 %1050
    %v1052 = vlaneseq
    %v1053 = vshrl.u32 %v1052, 7
    %v1054 = vsub.s32 4, %v1053
    %v1055 = vrot.slane %v59, %v1054
    %1057 = vbcast.lane.b32.xlu0 %v1055, 256
    %v1058 = vpop.permute.xlu0 %1057
    %v1059 = vlaneseq
    %v1060 = vshrl.u32 %v1059, 7
    %v1061 = vsub.s32 5, %v1060
    %v1062 = vrot.slane %v59, %v1061
    %1064 = vbcast.lane.b32.xlu0 %v1062, 256
    %v1065 = vpop.permute.xlu0 %1064
    %v1066 = vlaneseq
    %v1067 = vshrl.u32 %v1066, 7
    %v1068 = vsub.s32 6, %v1067
    %v1069 = vrot.slane %v59, %v1068
    %1071 = vbcast.lane.b32.xlu0 %v1069, 256
    %v1072 = vpop.permute.xlu0 %1071
    %v1073 = vlaneseq
    %v1074 = vshrl.u32 %v1073, 7
    %v1075 = vsub.s32 7, %v1074
    %v1076 = vrot.slane %v59, %v1075
    %1078 = vbcast.lane.b32.xlu0 %v1076, 256
    %v1079 = vpop.permute.xlu0 %1078
    %v1080 = vmul.f32 %v1030, %v132
    %v1081 = vmul.f32 %v1030, %v136
    %v1082 = vmul.f32 %v1030, %v140
    %v1083 = vmul.f32 %v1030, %v144
    %v1084 = vmul.f32 %v1037, %v132
    %v1085 = vmul.f32 %v1037, %v136
    %v1086 = vmul.f32 %v1037, %v140
    %v1087 = vmul.f32 %v1037, %v144
    %v1088 = vmul.f32 %v1044, %v132
    %v1089 = vmul.f32 %v1044, %v136
    %v1090 = vmul.f32 %v1044, %v140
    %v1091 = vmul.f32 %v1044, %v144
    %v1092 = vmul.f32 %v1051, %v132
    %v1093 = vmul.f32 %v1051, %v136
    %v1094 = vmul.f32 %v1051, %v140
    %v1095 = vmul.f32 %v1051, %v144
    %v1096 = vmul.f32 %v1058, %v132
    %v1097 = vmul.f32 %v1058, %v136
    %v1098 = vmul.f32 %v1058, %v140
    %v1099 = vmul.f32 %v1058, %v144
    %v1100 = vmul.f32 %v1065, %v132
    %v1101 = vmul.f32 %v1065, %v136
    %v1102 = vmul.f32 %v1065, %v140
    %v1103 = vmul.f32 %v1065, %v144
    %v1104 = vmul.f32 %v1072, %v132
    %v1105 = vmul.f32 %v1072, %v136
    %v1106 = vmul.f32 %v1072, %v140
    %v1107 = vmul.f32 %v1072, %v144
    %v1108 = vmul.f32 %v1079, %v132
    %v1109 = vmul.f32 %v1079, %v136
    %v1110 = vmul.f32 %v1079, %v140
    %v1111 = vmul.f32 %v1079, %v144
    %v1112 = vpack.c.bf16 %v1080, %v1080
    %v1113 = vpack.c.bf16 %v1081, %v1081
    %v1114 = vpack.c.bf16 %v1082, %v1082
    %v1115 = vpack.c.bf16 %v1083, %v1083
    %v1116 = vpack.c.bf16 %v1084, %v1084
    %v1117 = vpack.c.bf16 %v1085, %v1085
    %v1118 = vpack.c.bf16 %v1086, %v1086
    %v1119 = vpack.c.bf16 %v1087, %v1087
    %v1120 = vpack.c.bf16 %v1088, %v1088
    %v1121 = vpack.c.bf16 %v1089, %v1089
    %v1122 = vpack.c.bf16 %v1090, %v1090
    %v1123 = vpack.c.bf16 %v1091, %v1091
    %v1124 = vpack.c.bf16 %v1092, %v1092
    %v1125 = vpack.c.bf16 %v1093, %v1093
    %v1126 = vpack.c.bf16 %v1094, %v1094
    %v1127 = vpack.c.bf16 %v1095, %v1095
    %v1128 = vpack.c.bf16 %v1096, %v1096
    %v1129 = vpack.c.bf16 %v1097, %v1097
    %v1130 = vpack.c.bf16 %v1098, %v1098
    %v1131 = vpack.c.bf16 %v1099, %v1099
    %v1132 = vpack.c.bf16 %v1100, %v1100
    %v1133 = vpack.c.bf16 %v1101, %v1101
    %v1134 = vpack.c.bf16 %v1102, %v1102
    %v1135 = vpack.c.bf16 %v1103, %v1103
    %v1136 = vpack.c.bf16 %v1104, %v1104
    %v1137 = vpack.c.bf16 %v1105, %v1105
    %v1138 = vpack.c.bf16 %v1106, %v1106
    %v1139 = vpack.c.bf16 %v1107, %v1107
    %v1140 = vpack.c.bf16 %v1108, %v1108
    %v1141 = vpack.c.bf16 %v1109, %v1109
    %v1142 = vpack.c.bf16 %v1110, %v1110
    %v1143 = vpack.c.bf16 %v1111, %v1111
    %v1176 = vunpack.c.l.b16 %v1112
    %v1177 = vunpack.c.l.b16 %v1113
    %v1178 = vunpack.c.l.b16 %v1114
    %v1179 = vunpack.c.l.b16 %v1115
    %v1180 = vunpack.c.l.b16 %v1116
    %v1181 = vunpack.c.l.b16 %v1117
    %v1182 = vunpack.c.l.b16 %v1118
    %v1183 = vunpack.c.l.b16 %v1119
    %v1184 = vunpack.c.l.b16 %v1120
    %v1185 = vunpack.c.l.b16 %v1121
    %v1186 = vunpack.c.l.b16 %v1122
    %v1187 = vunpack.c.l.b16 %v1123
    %v1188 = vunpack.c.l.b16 %v1124
    %v1189 = vunpack.c.l.b16 %v1125
    %v1190 = vunpack.c.l.b16 %v1126
    %v1191 = vunpack.c.l.b16 %v1127
    %v1192 = vunpack.c.l.b16 %v1128
    %v1193 = vunpack.c.l.b16 %v1129
    %v1194 = vunpack.c.l.b16 %v1130
    %v1195 = vunpack.c.l.b16 %v1131
    %v1196 = vunpack.c.l.b16 %v1132
    %v1197 = vunpack.c.l.b16 %v1133
    %v1198 = vunpack.c.l.b16 %v1134
    %v1199 = vunpack.c.l.b16 %v1135
    %v1200 = vunpack.c.l.b16 %v1136
    %v1201 = vunpack.c.l.b16 %v1137
    %v1202 = vunpack.c.l.b16 %v1138
    %v1203 = vunpack.c.l.b16 %v1139
    %v1204 = vunpack.c.l.b16 %v1140
    %v1205 = vunpack.c.l.b16 %v1141
    %v1206 = vunpack.c.l.b16 %v1142
    %v1207 = vunpack.c.l.b16 %v1143
    %v1208 = vpack.c.b16 %v1177, %v1176
    %v1209 = vpack.c.b16 %v1179, %v1178
    %v1210 = vpack.c.b16 %v1181, %v1180
    %v1211 = vpack.c.b16 %v1183, %v1182
    %v1212 = vpack.c.b16 %v1185, %v1184
    %v1213 = vpack.c.b16 %v1187, %v1186
    %v1214 = vpack.c.b16 %v1189, %v1188
    %v1215 = vpack.c.b16 %v1191, %v1190
    %v1216 = vpack.c.b16 %v1193, %v1192
    %v1217 = vpack.c.b16 %v1195, %v1194
    %v1218 = vpack.c.b16 %v1197, %v1196
    %v1219 = vpack.c.b16 %v1199, %v1198
    %v1220 = vpack.c.b16 %v1201, %v1200
    %v1221 = vpack.c.b16 %v1203, %v1202
    %v1222 = vpack.c.b16 %v1205, %v1204
    %v1223 = vpack.c.b16 %v1207, %v1206
    %s1240 = scalar_lea.vmem [#allocation2], 512
    %1241 = vst [vmem:[%s1240] sm:$0xff] %v1208
    %1242 = vst [vmem:[%s1240 + $0x8] sm:$0xff] %v1209
    %1243 = vst [vmem:[%s1240 + $0x10] sm:$0xff] %v1210
    %1244 = vst [vmem:[%s1240 + $0x18] sm:$0xff] %v1211
    %1245 = vst [vmem:[%s1240 + $0x20] sm:$0xff] %v1212
    %1246 = vst [vmem:[%s1240 + $0x28] sm:$0xff] %v1213
    %1247 = vst [vmem:[%s1240 + $0x30] sm:$0xff] %v1214
    %1248 = vst [vmem:[%s1240 + $0x38] sm:$0xff] %v1215
    %1249 = vst [vmem:[%s1240 + $0x40] sm:$0xff] %v1216
    %1250 = vst [vmem:[%s1240 + $0x48] sm:$0xff] %v1217
    %1251 = vst [vmem:[%s1240 + $0x50] sm:$0xff] %v1218
    %1252 = vst [vmem:[%s1240 + $0x58] sm:$0xff] %v1219
    %1253 = vst [vmem:[%s1240 + $0x60] sm:$0xff] %v1220
    %1254 = vst [vmem:[%s1240 + $0x68] sm:$0xff] %v1221
    %1255 = vst [vmem:[%s1240 + $0x70] sm:$0xff] %v1222
    %1256 = vst [vmem:[%s1240 + $0x78] sm:$0xff] %v1223
    %v1257 = vlaneseq
    %v1258 = vshrl.u32 %v1257, 7
    %v1259 = vsub.s32 0, %v1258
    %v1260 = vrot.slane %v60, %v1259
    %1262 = vbcast.lane.b32.xlu0 %v1260, 256
    %v1263 = vpop.permute.xlu0 %1262
    %v1264 = vlaneseq
    %v1265 = vshrl.u32 %v1264, 7
    %v1266 = vsub.s32 1, %v1265
    %v1267 = vrot.slane %v60, %v1266
    %1269 = vbcast.lane.b32.xlu0 %v1267, 256
    %v1270 = vpop.permute.xlu0 %1269
    %v1271 = vlaneseq
    %v1272 = vshrl.u32 %v1271, 7
    %v1273 = vsub.s32 2, %v1272
    %v1274 = vrot.slane %v60, %v1273
    %1276 = vbcast.lane.b32.xlu0 %v1274, 256
    %v1277 = vpop.permute.xlu0 %1276
    %v1278 = vlaneseq
    %v1279 = vshrl.u32 %v1278, 7
    %v1280 = vsub.s32 3, %v1279
    %v1281 = vrot.slane %v60, %v1280
    %1283 = vbcast.lane.b32.xlu0 %v1281, 256
    %v1284 = vpop.permute.xlu0 %1283
    %v1285 = vlaneseq
    %v1286 = vshrl.u32 %v1285, 7
    %v1287 = vsub.s32 4, %v1286
    %v1288 = vrot.slane %v60, %v1287
    %1290 = vbcast.lane.b32.xlu0 %v1288, 256
    %v1291 = vpop.permute.xlu0 %1290
    %v1292 = vlaneseq
    %v1293 = vshrl.u32 %v1292, 7
    %v1294 = vsub.s32 5, %v1293
    %v1295 = vrot.slane %v60, %v1294
    %1297 = vbcast.lane.b32.xlu0 %v1295, 256
    %v1298 = vpop.permute.xlu0 %1297
    %v1299 = vlaneseq
    %v1300 = vshrl.u32 %v1299, 7
    %v1301 = vsub.s32 6, %v1300
    %v1302 = vrot.slane %v60, %v1301
    %1304 = vbcast.lane.b32.xlu0 %v1302, 256
    %v1305 = vpop.permute.xlu0 %1304
    %v1306 = vlaneseq
    %v1307 = vshrl.u32 %v1306, 7
    %v1308 = vsub.s32 7, %v1307
    %v1309 = vrot.slane %v60, %v1308
    %1311 = vbcast.lane.b32.xlu0 %v1309, 256
    %v1312 = vpop.permute.xlu0 %1311
    %v1313 = vmul.f32 %v1263, %v132
    %v1314 = vmul.f32 %v1263, %v136
    %v1315 = vmul.f32 %v1263, %v140
    %v1316 = vmul.f32 %v1263, %v144
    %v1317 = vmul.f32 %v1270, %v132
    %v1318 = vmul.f32 %v1270, %v136
    %v1319 = vmul.f32 %v1270, %v140
    %v1320 = vmul.f32 %v1270, %v144
    %v1321 = vmul.f32 %v1277, %v132
    %v1322 = vmul.f32 %v1277, %v136
    %v1323 = vmul.f32 %v1277, %v140
    %v1324 = vmul.f32 %v1277, %v144
    %v1325 = vmul.f32 %v1284, %v132
    %v1326 = vmul.f32 %v1284, %v136
    %v1327 = vmul.f32 %v1284, %v140
    %v1328 = vmul.f32 %v1284, %v144
    %v1329 = vmul.f32 %v1291, %v132
    %v1330 = vmul.f32 %v1291, %v136
    %v1331 = vmul.f32 %v1291, %v140
    %v1332 = vmul.f32 %v1291, %v144
    %v1333 = vmul.f32 %v1298, %v132
    %v1334 = vmul.f32 %v1298, %v136
    %v1335 = vmul.f32 %v1298, %v140
    %v1336 = vmul.f32 %v1298, %v144
    %v1337 = vmul.f32 %v1305, %v132
    %v1338 = vmul.f32 %v1305, %v136
    %v1339 = vmul.f32 %v1305, %v140
    %v1340 = vmul.f32 %v1305, %v144
    %v1341 = vmul.f32 %v1312, %v132
    %v1342 = vmul.f32 %v1312, %v136
    %v1343 = vmul.f32 %v1312, %v140
    %v1344 = vmul.f32 %v1312, %v144
    %v1345 = vpack.c.bf16 %v1313, %v1313
    %v1346 = vpack.c.bf16 %v1314, %v1314
    %v1347 = vpack.c.bf16 %v1315, %v1315
    %v1348 = vpack.c.bf16 %v1316, %v1316
    %v1349 = vpack.c.bf16 %v1317, %v1317
    %v1350 = vpack.c.bf16 %v1318, %v1318
    %v1351 = vpack.c.bf16 %v1319, %v1319
    %v1352 = vpack.c.bf16 %v1320, %v1320
    %v1353 = vpack.c.bf16 %v1321, %v1321
    %v1354 = vpack.c.bf16 %v1322, %v1322
    %v1355 = vpack.c.bf16 %v1323, %v1323
    %v1356 = vpack.c.bf16 %v1324, %v1324
    %v1357 = vpack.c.bf16 %v1325, %v1325
    %v1358 = vpack.c.bf16 %v1326, %v1326
    %v1359 = vpack.c.bf16 %v1327, %v1327
    %v1360 = vpack.c.bf16 %v1328, %v1328
    %v1361 = vpack.c.bf16 %v1329, %v1329
    %v1362 = vpack.c.bf16 %v1330, %v1330
    %v1363 = vpack.c.bf16 %v1331, %v1331
    %v1364 = vpack.c.bf16 %v1332, %v1332
    %v1365 = vpack.c.bf16 %v1333, %v1333
    %v1366 = vpack.c.bf16 %v1334, %v1334
    %v1367 = vpack.c.bf16 %v1335, %v1335
    %v1368 = vpack.c.bf16 %v1336, %v1336
    %v1369 = vpack.c.bf16 %v1337, %v1337
    %v1370 = vpack.c.bf16 %v1338, %v1338
    %v1371 = vpack.c.bf16 %v1339, %v1339
    %v1372 = vpack.c.bf16 %v1340, %v1340
    %v1373 = vpack.c.bf16 %v1341, %v1341
    %v1374 = vpack.c.bf16 %v1342, %v1342
    %v1375 = vpack.c.bf16 %v1343, %v1343
    %v1376 = vpack.c.bf16 %v1344, %v1344
    %v1409 = vunpack.c.l.b16 %v1345
    %v1410 = vunpack.c.l.b16 %v1346
    %v1411 = vunpack.c.l.b16 %v1347
    %v1412 = vunpack.c.l.b16 %v1348
    %v1413 = vunpack.c.l.b16 %v1349
    %v1414 = vunpack.c.l.b16 %v1350
    %v1415 = vunpack.c.l.b16 %v1351
    %v1416 = vunpack.c.l.b16 %v1352
    %v1417 = vunpack.c.l.b16 %v1353
    %v1418 = vunpack.c.l.b16 %v1354
    %v1419 = vunpack.c.l.b16 %v1355
    %v1420 = vunpack.c.l.b16 %v1356
    %v1421 = vunpack.c.l.b16 %v1357
    %v1422 = vunpack.c.l.b16 %v1358
    %v1423 = vunpack.c.l.b16 %v1359
    %v1424 = vunpack.c.l.b16 %v1360
    %v1425 = vunpack.c.l.b16 %v1361
    %v1426 = vunpack.c.l.b16 %v1362
    %v1427 = vunpack.c.l.b16 %v1363
    %v1428 = vunpack.c.l.b16 %v1364
    %v1429 = vunpack.c.l.b16 %v1365
    %v1430 = vunpack.c.l.b16 %v1366
    %v1431 = vunpack.c.l.b16 %v1367
    %v1432 = vunpack.c.l.b16 %v1368
    %v1433 = vunpack.c.l.b16 %v1369
    %v1434 = vunpack.c.l.b16 %v1370
    %v1435 = vunpack.c.l.b16 %v1371
    %v1436 = vunpack.c.l.b16 %v1372
    %v1437 = vunpack.c.l.b16 %v1373
    %v1438 = vunpack.c.l.b16 %v1374
    %v1439 = vunpack.c.l.b16 %v1375
    %v1440 = vunpack.c.l.b16 %v1376
    %v1441 = vpack.c.b16 %v1410, %v1409
    %v1442 = vpack.c.b16 %v1412, %v1411
    %v1443 = vpack.c.b16 %v1414, %v1413
    %v1444 = vpack.c.b16 %v1416, %v1415
    %v1445 = vpack.c.b16 %v1418, %v1417
    %v1446 = vpack.c.b16 %v1420, %v1419
    %v1447 = vpack.c.b16 %v1422, %v1421
    %v1448 = vpack.c.b16 %v1424, %v1423
    %v1449 = vpack.c.b16 %v1426, %v1425
    %v1450 = vpack.c.b16 %v1428, %v1427
    %v1451 = vpack.c.b16 %v1430, %v1429
    %v1452 = vpack.c.b16 %v1432, %v1431
    %v1453 = vpack.c.b16 %v1434, %v1433
    %v1454 = vpack.c.b16 %v1436, %v1435
    %v1455 = vpack.c.b16 %v1438, %v1437
    %v1456 = vpack.c.b16 %v1440, %v1439
    %s1473 = scalar_lea.vmem [#allocation2], 640
    %1474 = vst [vmem:[%s1473] sm:$0xff] %v1441
    %1475 = vst [vmem:[%s1473 + $0x8] sm:$0xff] %v1442
    %1476 = vst [vmem:[%s1473 + $0x10] sm:$0xff] %v1443
    %1477 = vst [vmem:[%s1473 + $0x18] sm:$0xff] %v1444
    %1478 = vst [vmem:[%s1473 + $0x20] sm:$0xff] %v1445
    %1479 = vst [vmem:[%s1473 + $0x28] sm:$0xff] %v1446
    %1480 = vst [vmem:[%s1473 + $0x30] sm:$0xff] %v1447
    %1481 = vst [vmem:[%s1473 + $0x38] sm:$0xff] %v1448
    %1482 = vst [vmem:[%s1473 + $0x40] sm:$0xff] %v1449
    %1483 = vst [vmem:[%s1473 + $0x48] sm:$0xff] %v1450
    %1484 = vst [vmem:[%s1473 + $0x50] sm:$0xff] %v1451
    %1485 = vst [vmem:[%s1473 + $0x58] sm:$0xff] %v1452
    %1486 = vst [vmem:[%s1473 + $0x60] sm:$0xff] %v1453
    %1487 = vst [vmem:[%s1473 + $0x68] sm:$0xff] %v1454
    %1488 = vst [vmem:[%s1473 + $0x70] sm:$0xff] %v1455
    %1489 = vst [vmem:[%s1473 + $0x78] sm:$0xff] %v1456
    %v1490 = vlaneseq
    %v1491 = vshrl.u32 %v1490, 7
    %v1492 = vsub.s32 0, %v1491
    %v1493 = vrot.slane %v61, %v1492
    %1495 = vbcast.lane.b32.xlu0 %v1493, 256
    %v1496 = vpop.permute.xlu0 %1495
    %v1497 = vlaneseq
    %v1498 = vshrl.u32 %v1497, 7
    %v1499 = vsub.s32 1, %v1498
    %v1500 = vrot.slane %v61, %v1499
    %1502 = vbcast.lane.b32.xlu0 %v1500, 256
    %v1503 = vpop.permute.xlu0 %1502
    %v1504 = vlaneseq
    %v1505 = vshrl.u32 %v1504, 7
    %v1506 = vsub.s32 2, %v1505
    %v1507 = vrot.slane %v61, %v1506
    %1509 = vbcast.lane.b32.xlu0 %v1507, 256
    %v1510 = vpop.permute.xlu0 %1509
    %v1511 = vlaneseq
    %v1512 = vshrl.u32 %v1511, 7
    %v1513 = vsub.s32 3, %v1512
    %v1514 = vrot.slane %v61, %v1513
    %1516 = vbcast.lane.b32.xlu0 %v1514, 256
    %v1517 = vpop.permute.xlu0 %1516
    %v1518 = vlaneseq
    %v1519 = vshrl.u32 %v1518, 7
    %v1520 = vsub.s32 4, %v1519
    %v1521 = vrot.slane %v61, %v1520
    %1523 = vbcast.lane.b32.xlu0 %v1521, 256
    %v1524 = vpop.permute.xlu0 %1523
    %v1525 = vlaneseq
    %v1526 = vshrl.u32 %v1525, 7
    %v1527 = vsub.s32 5, %v1526
    %v1528 = vrot.slane %v61, %v1527
    %1530 = vbcast.lane.b32.xlu0 %v1528, 256
    %v1531 = vpop.permute.xlu0 %1530
    %v1532 = vlaneseq
    %v1533 = vshrl.u32 %v1532, 7
    %v1534 = vsub.s32 6, %v1533
    %v1535 = vrot.slane %v61, %v1534
    %1537 = vbcast.lane.b32.xlu0 %v1535, 256
    %v1538 = vpop.permute.xlu0 %1537
    %v1539 = vlaneseq
    %v1540 = vshrl.u32 %v1539, 7
    %v1541 = vsub.s32 7, %v1540
    %v1542 = vrot.slane %v61, %v1541
    %1544 = vbcast.lane.b32.xlu0 %v1542, 256
    %v1545 = vpop.permute.xlu0 %1544
    %v1546 = vmul.f32 %v1496, %v132
    %v1547 = vmul.f32 %v1496, %v136
    %v1548 = vmul.f32 %v1496, %v140
    %v1549 = vmul.f32 %v1496, %v144
    %v1550 = vmul.f32 %v1503, %v132
    %v1551 = vmul.f32 %v1503, %v136
    %v1552 = vmul.f32 %v1503, %v140
    %v1553 = vmul.f32 %v1503, %v144
    %v1554 = vmul.f32 %v1510, %v132
    %v1555 = vmul.f32 %v1510, %v136
    %v1556 = vmul.f32 %v1510, %v140
    %v1557 = vmul.f32 %v1510, %v144
    %v1558 = vmul.f32 %v1517, %v132
    %v1559 = vmul.f32 %v1517, %v136
    %v1560 = vmul.f32 %v1517, %v140
    %v1561 = vmul.f32 %v1517, %v144
    %v1562 = vmul.f32 %v1524, %v132
    %v1563 = vmul.f32 %v1524, %v136
    %v1564 = vmul.f32 %v1524, %v140
    %v1565 = vmul.f32 %v1524, %v144
    %v1566 = vmul.f32 %v1531, %v132
    %v1567 = vmul.f32 %v1531, %v136
    %v1568 = vmul.f32 %v1531, %v140
    %v1569 = vmul.f32 %v1531, %v144
    %v1570 = vmul.f32 %v1538, %v132
    %v1571 = vmul.f32 %v1538, %v136
    %v1572 = vmul.f32 %v1538, %v140
    %v1573 = vmul.f32 %v1538, %v144
    %v1574 = vmul.f32 %v1545, %v132
    %v1575 = vmul.f32 %v1545, %v136
    %v1576 = vmul.f32 %v1545, %v140
    %v1577 = vmul.f32 %v1545, %v144
    %v1578 = vpack.c.bf16 %v1546, %v1546
    %v1579 = vpack.c.bf16 %v1547, %v1547
    %v1580 = vpack.c.bf16 %v1548, %v1548
    %v1581 = vpack.c.bf16 %v1549, %v1549
    %v1582 = vpack.c.bf16 %v1550, %v1550
    %v1583 = vpack.c.bf16 %v1551, %v1551
    %v1584 = vpack.c.bf16 %v1552, %v1552
    %v1585 = vpack.c.bf16 %v1553, %v1553
    %v1586 = vpack.c.bf16 %v1554, %v1554
    %v1587 = vpack.c.bf16 %v1555, %v1555
    %v1588 = vpack.c.bf16 %v1556, %v1556
    %v1589 = vpack.c.bf16 %v1557, %v1557
    %v1590 = vpack.c.bf16 %v1558, %v1558
    %v1591 = vpack.c.bf16 %v1559, %v1559
    %v1592 = vpack.c.bf16 %v1560, %v1560
    %v1593 = vpack.c.bf16 %v1561, %v1561
    %v1594 = vpack.c.bf16 %v1562, %v1562
    %v1595 = vpack.c.bf16 %v1563, %v1563
    %v1596 = vpack.c.bf16 %v1564, %v1564
    %v1597 = vpack.c.bf16 %v1565, %v1565
    %v1598 = vpack.c.bf16 %v1566, %v1566
    %v1599 = vpack.c.bf16 %v1567, %v1567
    %v1600 = vpack.c.bf16 %v1568, %v1568
    %v1601 = vpack.c.bf16 %v1569, %v1569
    %v1602 = vpack.c.bf16 %v1570, %v1570
    %v1603 = vpack.c.bf16 %v1571, %v1571
    %v1604 = vpack.c.bf16 %v1572, %v1572
    %v1605 = vpack.c.bf16 %v1573, %v1573
    %v1606 = vpack.c.bf16 %v1574, %v1574
    %v1607 = vpack.c.bf16 %v1575, %v1575
    %v1608 = vpack.c.bf16 %v1576, %v1576
    %v1609 = vpack.c.bf16 %v1577, %v1577
    %v1642 = vunpack.c.l.b16 %v1578
    %v1643 = vunpack.c.l.b16 %v1579
    %v1644 = vunpack.c.l.b16 %v1580
    %v1645 = vunpack.c.l.b16 %v1581
    %v1646 = vunpack.c.l.b16 %v1582
    %v1647 = vunpack.c.l.b16 %v1583
    %v1648 = vunpack.c.l.b16 %v1584
    %v1649 = vunpack.c.l.b16 %v1585
    %v1650 = vunpack.c.l.b16 %v1586
    %v1651 = vunpack.c.l.b16 %v1587
    %v1652 = vunpack.c.l.b16 %v1588
    %v1653 = vunpack.c.l.b16 %v1589
    %v1654 = vunpack.c.l.b16 %v1590
    %v1655 = vunpack.c.l.b16 %v1591
    %v1656 = vunpack.c.l.b16 %v1592
    %v1657 = vunpack.c.l.b16 %v1593
    %v1658 = vunpack.c.l.b16 %v1594
    %v1659 = vunpack.c.l.b16 %v1595
    %v1660 = vunpack.c.l.b16 %v1596
    %v1661 = vunpack.c.l.b16 %v1597
    %v1662 = vunpack.c.l.b16 %v1598
    %v1663 = vunpack.c.l.b16 %v1599
    %v1664 = vunpack.c.l.b16 %v1600
    %v1665 = vunpack.c.l.b16 %v1601
    %v1666 = vunpack.c.l.b16 %v1602
    %v1667 = vunpack.c.l.b16 %v1603
    %v1668 = vunpack.c.l.b16 %v1604
    %v1669 = vunpack.c.l.b16 %v1605
    %v1670 = vunpack.c.l.b16 %v1606
    %v1671 = vunpack.c.l.b16 %v1607
    %v1672 = vunpack.c.l.b16 %v1608
    %v1673 = vunpack.c.l.b16 %v1609
    %v1674 = vpack.c.b16 %v1643, %v1642
    %v1675 = vpack.c.b16 %v1645, %v1644
    %v1676 = vpack.c.b16 %v1647, %v1646
    %v1677 = vpack.c.b16 %v1649, %v1648
    %v1678 = vpack.c.b16 %v1651, %v1650
    %v1679 = vpack.c.b16 %v1653, %v1652
    %v1680 = vpack.c.b16 %v1655, %v1654
    %v1681 = vpack.c.b16 %v1657, %v1656
    %v1682 = vpack.c.b16 %v1659, %v1658
    %v1683 = vpack.c.b16 %v1661, %v1660
    %v1684 = vpack.c.b16 %v1663, %v1662
    %v1685 = vpack.c.b16 %v1665, %v1664
    %v1686 = vpack.c.b16 %v1667, %v1666
    %v1687 = vpack.c.b16 %v1669, %v1668
    %v1688 = vpack.c.b16 %v1671, %v1670
    %v1689 = vpack.c.b16 %v1673, %v1672
    %s1706 = scalar_lea.vmem [#allocation2], 768
    %1707 = vst [vmem:[%s1706] sm:$0xff] %v1674
    %1708 = vst [vmem:[%s1706 + $0x8] sm:$0xff] %v1675
    %1709 = vst [vmem:[%s1706 + $0x10] sm:$0xff] %v1676
    %1710 = vst [vmem:[%s1706 + $0x18] sm:$0xff] %v1677
    %1711 = vst [vmem:[%s1706 + $0x20] sm:$0xff] %v1678
    %1712 = vst [vmem:[%s1706 + $0x28] sm:$0xff] %v1679
    %1713 = vst [vmem:[%s1706 + $0x30] sm:$0xff] %v1680
    %1714 = vst [vmem:[%s1706 + $0x38] sm:$0xff] %v1681
    %1715 = vst [vmem:[%s1706 + $0x40] sm:$0xff] %v1682
    %1716 = vst [vmem:[%s1706 + $0x48] sm:$0xff] %v1683
    %1717 = vst [vmem:[%s1706 + $0x50] sm:$0xff] %v1684
    %1718 = vst [vmem:[%s1706 + $0x58] sm:$0xff] %v1685
    %1719 = vst [vmem:[%s1706 + $0x60] sm:$0xff] %v1686
    %1720 = vst [vmem:[%s1706 + $0x68] sm:$0xff] %v1687
    %1721 = vst [vmem:[%s1706 + $0x70] sm:$0xff] %v1688
    %1722 = vst [vmem:[%s1706 + $0x78] sm:$0xff] %v1689
    %v1723 = vlaneseq
    %v1724 = vshrl.u32 %v1723, 7
    %v1725 = vsub.s32 0, %v1724
    %v1726 = vrot.slane %v62, %v1725
    %1728 = vbcast.lane.b32.xlu0 %v1726, 256
    %v1729 = vpop.permute.xlu0 %1728
    %v1730 = vlaneseq
    %v1731 = vshrl.u32 %v1730, 7
    %v1732 = vsub.s32 1, %v1731
    %v1733 = vrot.slane %v62, %v1732
    %1735 = vbcast.lane.b32.xlu0 %v1733, 256
    %v1736 = vpop.permute.xlu0 %1735
    %v1737 = vlaneseq
    %v1738 = vshrl.u32 %v1737, 7
    %v1739 = vsub.s32 2, %v1738
    %v1740 = vrot.slane %v62, %v1739
    %1742 = vbcast.lane.b32.xlu0 %v1740, 256
    %v1743 = vpop.permute.xlu0 %1742
    %v1744 = vlaneseq
    %v1745 = vshrl.u32 %v1744, 7
    %v1746 = vsub.s32 3, %v1745
    %v1747 = vrot.slane %v62, %v1746
    %1749 = vbcast.lane.b32.xlu0 %v1747, 256
    %v1750 = vpop.permute.xlu0 %1749
    %v1751 = vlaneseq
    %v1752 = vshrl.u32 %v1751, 7
    %v1753 = vsub.s32 4, %v1752
    %v1754 = vrot.slane %v62, %v1753
    %1756 = vbcast.lane.b32.xlu0 %v1754, 256
    %v1757 = vpop.permute.xlu0 %1756
    %v1758 = vlaneseq
    %v1759 = vshrl.u32 %v1758, 7
    %v1760 = vsub.s32 5, %v1759
    %v1761 = vrot.slane %v62, %v1760
    %1763 = vbcast.lane.b32.xlu0 %v1761, 256
    %v1764 = vpop.permute.xlu0 %1763
    %v1765 = vlaneseq
    %v1766 = vshrl.u32 %v1765, 7
    %v1767 = vsub.s32 6, %v1766
    %v1768 = vrot.slane %v62, %v1767
    %1770 = vbcast.lane.b32.xlu0 %v1768, 256
    %v1771 = vpop.permute.xlu0 %1770
    %v1772 = vlaneseq
    %v1773 = vshrl.u32 %v1772, 7
    %v1774 = vsub.s32 7, %v1773
    %v1775 = vrot.slane %v62, %v1774
    %1777 = vbcast.lane.b32.xlu0 %v1775, 256
    %v1778 = vpop.permute.xlu0 %1777
    %v1779 = vmul.f32 %v1729, %v132
    %v1780 = vmul.f32 %v1729, %v136
    %v1781 = vmul.f32 %v1729, %v140
    %v1782 = vmul.f32 %v1729, %v144
    %v1783 = vmul.f32 %v1736, %v132
    %v1784 = vmul.f32 %v1736, %v136
    %v1785 = vmul.f32 %v1736, %v140
    %v1786 = vmul.f32 %v1736, %v144
    %v1787 = vmul.f32 %v1743, %v132
    %v1788 = vmul.f32 %v1743, %v136
    %v1789 = vmul.f32 %v1743, %v140
    %v1790 = vmul.f32 %v1743, %v144
    %v1791 = vmul.f32 %v1750, %v132
    %v1792 = vmul.f32 %v1750, %v136
    %v1793 = vmul.f32 %v1750, %v140
    %v1794 = vmul.f32 %v1750, %v144
    %v1795 = vmul.f32 %v1757, %v132
    %v1796 = vmul.f32 %v1757, %v136
    %v1797 = vmul.f32 %v1757, %v140
    %v1798 = vmul.f32 %v1757, %v144
    %v1799 = vmul.f32 %v1764, %v132
    %v1800 = vmul.f32 %v1764, %v136
    %v1801 = vmul.f32 %v1764, %v140
    %v1802 = vmul.f32 %v1764, %v144
    %v1803 = vmul.f32 %v1771, %v132
    %v1804 = vmul.f32 %v1771, %v136
    %v1805 = vmul.f32 %v1771, %v140
    %v1806 = vmul.f32 %v1771, %v144
    %v1807 = vmul.f32 %v1778, %v132
    %v1808 = vmul.f32 %v1778, %v136
    %v1809 = vmul.f32 %v1778, %v140
    %v1810 = vmul.f32 %v1778, %v144
    %v1811 = vpack.c.bf16 %v1779, %v1779
    %v1812 = vpack.c.bf16 %v1780, %v1780
    %v1813 = vpack.c.bf16 %v1781, %v1781
    %v1814 = vpack.c.bf16 %v1782, %v1782
    %v1815 = vpack.c.bf16 %v1783, %v1783
    %v1816 = vpack.c.bf16 %v1784, %v1784
    %v1817 = vpack.c.bf16 %v1785, %v1785
    %v1818 = vpack.c.bf16 %v1786, %v1786
    %v1819 = vpack.c.bf16 %v1787, %v1787
    %v1820 = vpack.c.bf16 %v1788, %v1788
    %v1821 = vpack.c.bf16 %v1789, %v1789
    %v1822 = vpack.c.bf16 %v1790, %v1790
    %v1823 = vpack.c.bf16 %v1791, %v1791
    %v1824 = vpack.c.bf16 %v1792, %v1792
    %v1825 = vpack.c.bf16 %v1793, %v1793
    %v1826 = vpack.c.bf16 %v1794, %v1794
    %v1827 = vpack.c.bf16 %v1795, %v1795
    %v1828 = vpack.c.bf16 %v1796, %v1796
    %v1829 = vpack.c.bf16 %v1797, %v1797
    %v1830 = vpack.c.bf16 %v1798, %v1798
    %v1831 = vpack.c.bf16 %v1799, %v1799
    %v1832 = vpack.c.bf16 %v1800, %v1800
    %v1833 = vpack.c.bf16 %v1801, %v1801
    %v1834 = vpack.c.bf16 %v1802, %v1802
    %v1835 = vpack.c.bf16 %v1803, %v1803
    %v1836 = vpack.c.bf16 %v1804, %v1804
    %v1837 = vpack.c.bf16 %v1805, %v1805
    %v1838 = vpack.c.bf16 %v1806, %v1806
    %v1839 = vpack.c.bf16 %v1807, %v1807
    %v1840 = vpack.c.bf16 %v1808, %v1808
    %v1841 = vpack.c.bf16 %v1809, %v1809
    %v1842 = vpack.c.bf16 %v1810, %v1810
    %v1875 = vunpack.c.l.b16 %v1811
    %v1876 = vunpack.c.l.b16 %v1812
    %v1877 = vunpack.c.l.b16 %v1813
    %v1878 = vunpack.c.l.b16 %v1814
    %v1879 = vunpack.c.l.b16 %v1815
    %v1880 = vunpack.c.l.b16 %v1816
    %v1881 = vunpack.c.l.b16 %v1817
    %v1882 = vunpack.c.l.b16 %v1818
    %v1883 = vunpack.c.l.b16 %v1819
    %v1884 = vunpack.c.l.b16 %v1820
    %v1885 = vunpack.c.l.b16 %v1821
    %v1886 = vunpack.c.l.b16 %v1822
    %v1887 = vunpack.c.l.b16 %v1823
    %v1888 = vunpack.c.l.b16 %v1824
    %v1889 = vunpack.c.l.b16 %v1825
    %v1890 = vunpack.c.l.b16 %v1826
    %v1891 = vunpack.c.l.b16 %v1827
    %v1892 = vunpack.c.l.b16 %v1828
    %v1893 = vunpack.c.l.b16 %v1829
    %v1894 = vunpack.c.l.b16 %v1830
    %v1895 = vunpack.c.l.b16 %v1831
    %v1896 = vunpack.c.l.b16 %v1832
    %v1897 = vunpack.c.l.b16 %v1833
    %v1898 = vunpack.c.l.b16 %v1834
    %v1899 = vunpack.c.l.b16 %v1835
    %v1900 = vunpack.c.l.b16 %v1836
    %v1901 = vunpack.c.l.b16 %v1837
    %v1902 = vunpack.c.l.b16 %v1838
    %v1903 = vunpack.c.l.b16 %v1839
    %v1904 = vunpack.c.l.b16 %v1840
    %v1905 = vunpack.c.l.b16 %v1841
    %v1906 = vunpack.c.l.b16 %v1842
    %v1907 = vpack.c.b16 %v1876, %v1875
    %v1908 = vpack.c.b16 %v1878, %v1877
    %v1909 = vpack.c.b16 %v1880, %v1879
    %v1910 = vpack.c.b16 %v1882, %v1881
    %v1911 = vpack.c.b16 %v1884, %v1883
    %v1912 = vpack.c.b16 %v1886, %v1885
    %v1913 = vpack.c.b16 %v1888, %v1887
    %v1914 = vpack.c.b16 %v1890, %v1889
    %v1915 = vpack.c.b16 %v1892, %v1891
    %v1916 = vpack.c.b16 %v1894, %v1893
    %v1917 = vpack.c.b16 %v1896, %v1895
    %v1918 = vpack.c.b16 %v1898, %v1897
    %v1919 = vpack.c.b16 %v1900, %v1899
    %v1920 = vpack.c.b16 %v1902, %v1901
    %v1921 = vpack.c.b16 %v1904, %v1903
    %v1922 = vpack.c.b16 %v1906, %v1905
    %s1939 = scalar_lea.vmem [#allocation2], 896
    %1940 = vst [vmem:[%s1939] sm:$0xff] %v1907
    %1941 = vst [vmem:[%s1939 + $0x8] sm:$0xff] %v1908
    %1942 = vst [vmem:[%s1939 + $0x10] sm:$0xff] %v1909
    %1943 = vst [vmem:[%s1939 + $0x18] sm:$0xff] %v1910
    %1944 = vst [vmem:[%s1939 + $0x20] sm:$0xff] %v1911
    %1945 = vst [vmem:[%s1939 + $0x28] sm:$0xff] %v1912
    %1946 = vst [vmem:[%s1939 + $0x30] sm:$0xff] %v1913
    %1947 = vst [vmem:[%s1939 + $0x38] sm:$0xff] %v1914
    %1948 = vst [vmem:[%s1939 + $0x40] sm:$0xff] %v1915
    %1949 = vst [vmem:[%s1939 + $0x48] sm:$0xff] %v1916
    %1950 = vst [vmem:[%s1939 + $0x50] sm:$0xff] %v1917
    %1951 = vst [vmem:[%s1939 + $0x58] sm:$0xff] %v1918
    %1952 = vst [vmem:[%s1939 + $0x60] sm:$0xff] %v1919
    %1953 = vst [vmem:[%s1939 + $0x68] sm:$0xff] %v1920
    %1954 = vst [vmem:[%s1939 + $0x70] sm:$0xff] %v1921
    %1955 = vst [vmem:[%s1939 + $0x78] sm:$0xff] %v1922
    %v1956 = vlaneseq
    %v1957 = vshrl.u32 %v1956, 7
    %v1958 = vsub.s32 0, %v1957
    %v1959 = vrot.slane %v63, %v1958
    %1961 = vbcast.lane.b32.xlu0 %v1959, 256
    %v1962 = vpop.permute.xlu0 %1961
    %v1963 = vlaneseq
    %v1964 = vshrl.u32 %v1963, 7
    %v1965 = vsub.s32 1, %v1964
    %v1966 = vrot.slane %v63, %v1965
    %1968 = vbcast.lane.b32.xlu0 %v1966, 256
    %v1969 = vpop.permute.xlu0 %1968
    %v1970 = vlaneseq
    %v1971 = vshrl.u32 %v1970, 7
    %v1972 = vsub.s32 2, %v1971
    %v1973 = vrot.slane %v63, %v1972
    %1975 = vbcast.lane.b32.xlu0 %v1973, 256
    %v1976 = vpop.permute.xlu0 %1975
    %v1977 = vlaneseq
    %v1978 = vshrl.u32 %v1977, 7
    %v1979 = vsub.s32 3, %v1978
    %v1980 = vrot.slane %v63, %v1979
    %1982 = vbcast.lane.b32.xlu0 %v1980, 256
    %v1983 = vpop.permute.xlu0 %1982
    %v1984 = vlaneseq
    %v1985 = vshrl.u32 %v1984, 7
    %v1986 = vsub.s32 4, %v1985
    %v1987 = vrot.slane %v63, %v1986
    %1989 = vbcast.lane.b32.xlu0 %v1987, 256
    %v1990 = vpop.permute.xlu0 %1989
    %v1991 = vlaneseq
    %v1992 = vshrl.u32 %v1991, 7
    %v1993 = vsub.s32 5, %v1992
    %v1994 = vrot.slane %v63, %v1993
    %1996 = vbcast.lane.b32.xlu0 %v1994, 256
    %v1997 = vpop.permute.xlu0 %1996
    %v1998 = vlaneseq
    %v1999 = vshrl.u32 %v1998, 7
    %v2000 = vsub.s32 6, %v1999
    %v2001 = vrot.slane %v63, %v2000
    %2003 = vbcast.lane.b32.xlu0 %v2001, 256
    %v2004 = vpop.permute.xlu0 %2003
    %v2005 = vlaneseq
    %v2006 = vshrl.u32 %v2005, 7
    %v2007 = vsub.s32 7, %v2006
    %v2008 = vrot.slane %v63, %v2007
    %2010 = vbcast.lane.b32.xlu0 %v2008, 256
    %v2011 = vpop.permute.xlu0 %2010
    %v2012 = vmul.f32 %v1962, %v132
    %v2013 = vmul.f32 %v1962, %v136
    %v2014 = vmul.f32 %v1962, %v140
    %v2015 = vmul.f32 %v1962, %v144
    %v2016 = vmul.f32 %v1969, %v132
    %v2017 = vmul.f32 %v1969, %v136
    %v2018 = vmul.f32 %v1969, %v140
    %v2019 = vmul.f32 %v1969, %v144
    %v2020 = vmul.f32 %v1976, %v132
    %v2021 = vmul.f32 %v1976, %v136
    %v2022 = vmul.f32 %v1976, %v140
    %v2023 = vmul.f32 %v1976, %v144
    %v2024 = vmul.f32 %v1983, %v132
    %v2025 = vmul.f32 %v1983, %v136
    %v2026 = vmul.f32 %v1983, %v140
    %v2027 = vmul.f32 %v1983, %v144
    %v2028 = vmul.f32 %v1990, %v132
    %v2029 = vmul.f32 %v1990, %v136
    %v2030 = vmul.f32 %v1990, %v140
    %v2031 = vmul.f32 %v1990, %v144
    %v2032 = vmul.f32 %v1997, %v132
    %v2033 = vmul.f32 %v1997, %v136
    %v2034 = vmul.f32 %v1997, %v140
    %v2035 = vmul.f32 %v1997, %v144
    %v2036 = vmul.f32 %v2004, %v132
    %v2037 = vmul.f32 %v2004, %v136
    %v2038 = vmul.f32 %v2004, %v140
    %v2039 = vmul.f32 %v2004, %v144
    %v2040 = vmul.f32 %v2011, %v132
    %v2041 = vmul.f32 %v2011, %v136
    %v2042 = vmul.f32 %v2011, %v140
    %v2043 = vmul.f32 %v2011, %v144
    %v2044 = vpack.c.bf16 %v2012, %v2012
    %v2045 = vpack.c.bf16 %v2013, %v2013
    %v2046 = vpack.c.bf16 %v2014, %v2014
    %v2047 = vpack.c.bf16 %v2015, %v2015
    %v2048 = vpack.c.bf16 %v2016, %v2016
    %v2049 = vpack.c.bf16 %v2017, %v2017
    %v2050 = vpack.c.bf16 %v2018, %v2018
    %v2051 = vpack.c.bf16 %v2019, %v2019
    %v2052 = vpack.c.bf16 %v2020, %v2020
    %v2053 = vpack.c.bf16 %v2021, %v2021
    %v2054 = vpack.c.bf16 %v2022, %v2022
    %v2055 = vpack.c.bf16 %v2023, %v2023
    %v2056 = vpack.c.bf16 %v2024, %v2024
    %v2057 = vpack.c.bf16 %v2025, %v2025
    %v2058 = vpack.c.bf16 %v2026, %v2026
    %v2059 = vpack.c.bf16 %v2027, %v2027
    %v2060 = vpack.c.bf16 %v2028, %v2028
    %v2061 = vpack.c.bf16 %v2029, %v2029
    %v2062 = vpack.c.bf16 %v2030, %v2030
    %v2063 = vpack.c.bf16 %v2031, %v2031
    %v2064 = vpack.c.bf16 %v2032, %v2032
    %v2065 = vpack.c.bf16 %v2033, %v2033
    %v2066 = vpack.c.bf16 %v2034, %v2034
    %v2067 = vpack.c.bf16 %v2035, %v2035
    %v2068 = vpack.c.bf16 %v2036, %v2036
    %v2069 = vpack.c.bf16 %v2037, %v2037
    %v2070 = vpack.c.bf16 %v2038, %v2038
    %v2071 = vpack.c.bf16 %v2039, %v2039
    %v2072 = vpack.c.bf16 %v2040, %v2040
    %v2073 = vpack.c.bf16 %v2041, %v2041
    %v2074 = vpack.c.bf16 %v2042, %v2042
    %v2075 = vpack.c.bf16 %v2043, %v2043
    %v2108 = vunpack.c.l.b16 %v2044
    %v2109 = vunpack.c.l.b16 %v2045
    %v2110 = vunpack.c.l.b16 %v2046
    %v2111 = vunpack.c.l.b16 %v2047
    %v2112 = vunpack.c.l.b16 %v2048
    %v2113 = vunpack.c.l.b16 %v2049
    %v2114 = vunpack.c.l.b16 %v2050
    %v2115 = vunpack.c.l.b16 %v2051
    %v2116 = vunpack.c.l.b16 %v2052
    %v2117 = vunpack.c.l.b16 %v2053
    %v2118 = vunpack.c.l.b16 %v2054
    %v2119 = vunpack.c.l.b16 %v2055
    %v2120 = vunpack.c.l.b16 %v2056
    %v2121 = vunpack.c.l.b16 %v2057
    %v2122 = vunpack.c.l.b16 %v2058
    %v2123 = vunpack.c.l.b16 %v2059
    %v2124 = vunpack.c.l.b16 %v2060
    %v2125 = vunpack.c.l.b16 %v2061
    %v2126 = vunpack.c.l.b16 %v2062
    %v2127 = vunpack.c.l.b16 %v2063
    %v2128 = vunpack.c.l.b16 %v2064
    %v2129 = vunpack.c.l.b16 %v2065
    %v2130 = vunpack.c.l.b16 %v2066
    %v2131 = vunpack.c.l.b16 %v2067
    %v2132 = vunpack.c.l.b16 %v2068
    %v2133 = vunpack.c.l.b16 %v2069
    %v2134 = vunpack.c.l.b16 %v2070
    %v2135 = vunpack.c.l.b16 %v2071
    %v2136 = vunpack.c.l.b16 %v2072
    %v2137 = vunpack.c.l.b16 %v2073
    %v2138 = vunpack.c.l.b16 %v2074
    %v2139 = vunpack.c.l.b16 %v2075
    %v2140 = vpack.c.b16 %v2109, %v2108
    %v2141 = vpack.c.b16 %v2111, %v2110
    %v2142 = vpack.c.b16 %v2113, %v2112
    %v2143 = vpack.c.b16 %v2115, %v2114
    %v2144 = vpack.c.b16 %v2117, %v2116
    %v2145 = vpack.c.b16 %v2119, %v2118
    %v2146 = vpack.c.b16 %v2121, %v2120
    %v2147 = vpack.c.b16 %v2123, %v2122
    %v2148 = vpack.c.b16 %v2125, %v2124
    %v2149 = vpack.c.b16 %v2127, %v2126
    %v2150 = vpack.c.b16 %v2129, %v2128
    %v2151 = vpack.c.b16 %v2131, %v2130
    %v2152 = vpack.c.b16 %v2133, %v2132
    %v2153 = vpack.c.b16 %v2135, %v2134
    %v2154 = vpack.c.b16 %v2137, %v2136
    %v2155 = vpack.c.b16 %v2139, %v2138
    %s2172 = scalar_lea.vmem [#allocation2], 1024
    %2173 = vst [vmem:[%s2172] sm:$0xff] %v2140
    %2174 = vst [vmem:[%s2172 + $0x8] sm:$0xff] %v2141
    %2175 = vst [vmem:[%s2172 + $0x10] sm:$0xff] %v2142
    %2176 = vst [vmem:[%s2172 + $0x18] sm:$0xff] %v2143
    %2177 = vst [vmem:[%s2172 + $0x20] sm:$0xff] %v2144
    %2178 = vst [vmem:[%s2172 + $0x28] sm:$0xff] %v2145
    %2179 = vst [vmem:[%s2172 + $0x30] sm:$0xff] %v2146
    %2180 = vst [vmem:[%s2172 + $0x38] sm:$0xff] %v2147
    %2181 = vst [vmem:[%s2172 + $0x40] sm:$0xff] %v2148
    %2182 = vst [vmem:[%s2172 + $0x48] sm:$0xff] %v2149
    %2183 = vst [vmem:[%s2172 + $0x50] sm:$0xff] %v2150
    %2184 = vst [vmem:[%s2172 + $0x58] sm:$0xff] %v2151
    %2185 = vst [vmem:[%s2172 + $0x60] sm:$0xff] %v2152
    %2186 = vst [vmem:[%s2172 + $0x68] sm:$0xff] %v2153
    %2187 = vst [vmem:[%s2172 + $0x70] sm:$0xff] %v2154
    %2188 = vst [vmem:[%s2172 + $0x78] sm:$0xff] %v2155
    %v2189 = vlaneseq
    %v2190 = vshrl.u32 %v2189, 7
    %v2191 = vsub.s32 0, %v2190
    %v2192 = vrot.slane %v64, %v2191
    %2194 = vbcast.lane.b32.xlu0 %v2192, 256
    %v2195 = vpop.permute.xlu0 %2194
    %v2196 = vlaneseq
    %v2197 = vshrl.u32 %v2196, 7
    %v2198 = vsub.s32 1, %v2197
    %v2199 = vrot.slane %v64, %v2198
    %2201 = vbcast.lane.b32.xlu0 %v2199, 256
    %v2202 = vpop.permute.xlu0 %2201
    %v2203 = vlaneseq
    %v2204 = vshrl.u32 %v2203, 7
    %v2205 = vsub.s32 2, %v2204
    %v2206 = vrot.slane %v64, %v2205
    %2208 = vbcast.lane.b32.xlu0 %v2206, 256
    %v2209 = vpop.permute.xlu0 %2208
    %v2210 = vlaneseq
    %v2211 = vshrl.u32 %v2210, 7
    %v2212 = vsub.s32 3, %v2211
    %v2213 = vrot.slane %v64, %v2212
    %2215 = vbcast.lane.b32.xlu0 %v2213, 256
    %v2216 = vpop.permute.xlu0 %2215
    %v2217 = vlaneseq
    %v2218 = vshrl.u32 %v2217, 7
    %v2219 = vsub.s32 4, %v2218
    %v2220 = vrot.slane %v64, %v2219
    %2222 = vbcast.lane.b32.xlu0 %v2220, 256
    %v2223 = vpop.permute.xlu0 %2222
    %v2224 = vlaneseq
    %v2225 = vshrl.u32 %v2224, 7
    %v2226 = vsub.s32 5, %v2225
    %v2227 = vrot.slane %v64, %v2226
    %2229 = vbcast.lane.b32.xlu0 %v2227, 256
    %v2230 = vpop.permute.xlu0 %2229
    %v2231 = vlaneseq
    %v2232 = vshrl.u32 %v2231, 7
    %v2233 = vsub.s32 6, %v2232
    %v2234 = vrot.slane %v64, %v2233
    %2236 = vbcast.lane.b32.xlu0 %v2234, 256
    %v2237 = vpop.permute.xlu0 %2236
    %v2238 = vlaneseq
    %v2239 = vshrl.u32 %v2238, 7
    %v2240 = vsub.s32 7, %v2239
    %v2241 = vrot.slane %v64, %v2240
    %2243 = vbcast.lane.b32.xlu0 %v2241, 256
    %v2244 = vpop.permute.xlu0 %2243
    %v2245 = vmul.f32 %v2195, %v132
    %v2246 = vmul.f32 %v2195, %v136
    %v2247 = vmul.f32 %v2195, %v140
    %v2248 = vmul.f32 %v2195, %v144
    %v2249 = vmul.f32 %v2202, %v132
    %v2250 = vmul.f32 %v2202, %v136
    %v2251 = vmul.f32 %v2202, %v140
    %v2252 = vmul.f32 %v2202, %v144
    %v2253 = vmul.f32 %v2209, %v132
    %v2254 = vmul.f32 %v2209, %v136
    %v2255 = vmul.f32 %v2209, %v140
    %v2256 = vmul.f32 %v2209, %v144
    %v2257 = vmul.f32 %v2216, %v132
    %v2258 = vmul.f32 %v2216, %v136
    %v2259 = vmul.f32 %v2216, %v140
    %v2260 = vmul.f32 %v2216, %v144
    %v2261 = vmul.f32 %v2223, %v132
    %v2262 = vmul.f32 %v2223, %v136
    %v2263 = vmul.f32 %v2223, %v140
    %v2264 = vmul.f32 %v2223, %v144
    %v2265 = vmul.f32 %v2230, %v132
    %v2266 = vmul.f32 %v2230, %v136
    %v2267 = vmul.f32 %v2230, %v140
    %v2268 = vmul.f32 %v2230, %v144
    %v2269 = vmul.f32 %v2237, %v132
    %v2270 = vmul.f32 %v2237, %v136
    %v2271 = vmul.f32 %v2237, %v140
    %v2272 = vmul.f32 %v2237, %v144
    %v2273 = vmul.f32 %v2244, %v132
    %v2274 = vmul.f32 %v2244, %v136
    %v2275 = vmul.f32 %v2244, %v140
    %v2276 = vmul.f32 %v2244, %v144
    %v2277 = vpack.c.bf16 %v2245, %v2245
    %v2278 = vpack.c.bf16 %v2246, %v2246
    %v2279 = vpack.c.bf16 %v2247, %v2247
    %v2280 = vpack.c.bf16 %v2248, %v2248
    %v2281 = vpack.c.bf16 %v2249, %v2249
    %v2282 = vpack.c.bf16 %v2250, %v2250
    %v2283 = vpack.c.bf16 %v2251, %v2251
    %v2284 = vpack.c.bf16 %v2252, %v2252
    %v2285 = vpack.c.bf16 %v2253, %v2253
    %v2286 = vpack.c.bf16 %v2254, %v2254
    %v2287 = vpack.c.bf16 %v2255, %v2255
    %v2288 = vpack.c.bf16 %v2256, %v2256
    %v2289 = vpack.c.bf16 %v2257, %v2257
    %v2290 = vpack.c.bf16 %v2258, %v2258
    %v2291 = vpack.c.bf16 %v2259, %v2259
    %v2292 = vpack.c.bf16 %v2260, %v2260
    %v2293 = vpack.c.bf16 %v2261, %v2261
    %v2294 = vpack.c.bf16 %v2262, %v2262
    %v2295 = vpack.c.bf16 %v2263, %v2263
    %v2296 = vpack.c.bf16 %v2264, %v2264
    %v2297 = vpack.c.bf16 %v2265, %v2265
    %v2298 = vpack.c.bf16 %v2266, %v2266
    %v2299 = vpack.c.bf16 %v2267, %v2267
    %v2300 = vpack.c.bf16 %v2268, %v2268
    %v2301 = vpack.c.bf16 %v2269, %v2269
    %v2302 = vpack.c.bf16 %v2270, %v2270
    %v2303 = vpack.c.bf16 %v2271, %v2271
    %v2304 = vpack.c.bf16 %v2272, %v2272
    %v2305 = vpack.c.bf16 %v2273, %v2273
    %v2306 = vpack.c.bf16 %v2274, %v2274
    %v2307 = vpack.c.bf16 %v2275, %v2275
    %v2308 = vpack.c.bf16 %v2276, %v2276
    %v2341 = vunpack.c.l.b16 %v2277
    %v2342 = vunpack.c.l.b16 %v2278
    %v2343 = vunpack.c.l.b16 %v2279
    %v2344 = vunpack.c.l.b16 %v2280
    %v2345 = vunpack.c.l.b16 %v2281
    %v2346 = vunpack.c.l.b16 %v2282
    %v2347 = vunpack.c.l.b16 %v2283
    %v2348 = vunpack.c.l.b16 %v2284
    %v2349 = vunpack.c.l.b16 %v2285
    %v2350 = vunpack.c.l.b16 %v2286
    %v2351 = vunpack.c.l.b16 %v2287
    %v2352 = vunpack.c.l.b16 %v2288
    %v2353 = vunpack.c.l.b16 %v2289
    %v2354 = vunpack.c.l.b16 %v2290
    %v2355 = vunpack.c.l.b16 %v2291
    %v2356 = vunpack.c.l.b16 %v2292
    %v2357 = vunpack.c.l.b16 %v2293
    %v2358 = vunpack.c.l.b16 %v2294
    %v2359 = vunpack.c.l.b16 %v2295
    %v2360 = vunpack.c.l.b16 %v2296
    %v2361 = vunpack.c.l.b16 %v2297
    %v2362 = vunpack.c.l.b16 %v2298
    %v2363 = vunpack.c.l.b16 %v2299
    %v2364 = vunpack.c.l.b16 %v2300
    %v2365 = vunpack.c.l.b16 %v2301
    %v2366 = vunpack.c.l.b16 %v2302
    %v2367 = vunpack.c.l.b16 %v2303
    %v2368 = vunpack.c.l.b16 %v2304
    %v2369 = vunpack.c.l.b16 %v2305
    %v2370 = vunpack.c.l.b16 %v2306
    %v2371 = vunpack.c.l.b16 %v2307
    %v2372 = vunpack.c.l.b16 %v2308
    %v2373 = vpack.c.b16 %v2342, %v2341
    %v2374 = vpack.c.b16 %v2344, %v2343
    %v2375 = vpack.c.b16 %v2346, %v2345
    %v2376 = vpack.c.b16 %v2348, %v2347
    %v2377 = vpack.c.b16 %v2350, %v2349
    %v2378 = vpack.c.b16 %v2352, %v2351
    %v2379 = vpack.c.b16 %v2354, %v2353
    %v2380 = vpack.c.b16 %v2356, %v2355
    %v2381 = vpack.c.b16 %v2358, %v2357
    %v2382 = vpack.c.b16 %v2360, %v2359
    %v2383 = vpack.c.b16 %v2362, %v2361
    %v2384 = vpack.c.b16 %v2364, %v2363
    %v2385 = vpack.c.b16 %v2366, %v2365
    %v2386 = vpack.c.b16 %v2368, %v2367
    %v2387 = vpack.c.b16 %v2370, %v2369
    %v2388 = vpack.c.b16 %v2372, %v2371
    %s2405 = scalar_lea.vmem [#allocation2], 1152
    %2406 = vst [vmem:[%s2405] sm:$0xff] %v2373
    %2407 = vst [vmem:[%s2405 + $0x8] sm:$0xff] %v2374
    %2408 = vst [vmem:[%s2405 + $0x10] sm:$0xff] %v2375
    %2409 = vst [vmem:[%s2405 + $0x18] sm:$0xff] %v2376
    %2410 = vst [vmem:[%s2405 + $0x20] sm:$0xff] %v2377
    %2411 = vst [vmem:[%s2405 + $0x28] sm:$0xff] %v2378
    %2412 = vst [vmem:[%s2405 + $0x30] sm:$0xff] %v2379
    %2413 = vst [vmem:[%s2405 + $0x38] sm:$0xff] %v2380
    %2414 = vst [vmem:[%s2405 + $0x40] sm:$0xff] %v2381
    %2415 = vst [vmem:[%s2405 + $0x48] sm:$0xff] %v2382
    %2416 = vst [vmem:[%s2405 + $0x50] sm:$0xff] %v2383
    %2417 = vst [vmem:[%s2405 + $0x58] sm:$0xff] %v2384
    %2418 = vst [vmem:[%s2405 + $0x60] sm:$0xff] %v2385
    %2419 = vst [vmem:[%s2405 + $0x68] sm:$0xff] %v2386
    %2420 = vst [vmem:[%s2405 + $0x70] sm:$0xff] %v2387
    %2421 = vst [vmem:[%s2405 + $0x78] sm:$0xff] %v2388
    %v2422 = vld [vmem:[%s3] sm:$0xf]
    %v2423 = vld [vmem:[#allocation3] sm:$0xff]
    %v2424 = vld [vmem:[#allocation3 + $0x8] sm:$0xff]
    %v2425 = vld [vmem:[#allocation3 + $0x10] sm:$0xff]
    %v2426 = vld [vmem:[#allocation3 + $0x18] sm:$0xff]
    %v2427 = vld [vmem:[#allocation3 + $0x20] sm:$0xff]
    %v2428 = vld [vmem:[#allocation3 + $0x28] sm:$0xff]
    %v2429 = vld [vmem:[#allocation3 + $0x30] sm:$0xff]
    %v2430 = vld [vmem:[#allocation3 + $0x38] sm:$0xff]
    %v2431 = vld [vmem:[#allocation3 + $0x40] sm:$0xff]
    %v2432 = vld [vmem:[#allocation3 + $0x48] sm:$0xff]
    %v2433 = vld [vmem:[#allocation3 + $0x50] sm:$0xff]
    %v2434 = vld [vmem:[#allocation3 + $0x58] sm:$0xff]
    %v2435 = vld [vmem:[#allocation3 + $0x60] sm:$0xff]
    %v2436 = vld [vmem:[#allocation3 + $0x68] sm:$0xff]
    %v2437 = vld [vmem:[#allocation3 + $0x70] sm:$0xff]
    %v2438 = vld [vmem:[#allocation3 + $0x78] sm:$0xff]
    %v2439 = vld [vmem:[#allocation3 + $0x80] sm:$0xff]
    %v2440 = vld [vmem:[#allocation3 + $0x88] sm:$0xff]
    %v2441 = vld [vmem:[#allocation3 + $0x90] sm:$0xff]
    %v2442 = vld [vmem:[#allocation3 + $0x98] sm:$0xff]
    %v2443 = vld [vmem:[#allocation3 + $0xa0] sm:$0xff]
    %v2444 = vld [vmem:[#allocation3 + $0xa8] sm:$0xff]
    %v2445 = vld [vmem:[#allocation3 + $0xb0] sm:$0xff]
    %v2446 = vld [vmem:[#allocation3 + $0xb8] sm:$0xff]
    %v2447 = vld [vmem:[#allocation3 + $0xc0] sm:$0xff]
    %v2448 = vld [vmem:[#allocation3 + $0xc8] sm:$0xff]
    %v2449 = vld [vmem:[#allocation3 + $0xd0] sm:$0xff]
    %v2450 = vld [vmem:[#allocation3 + $0xd8] sm:$0xff]
    %v2451 = vld [vmem:[#allocation3 + $0xe0] sm:$0xff]
    %v2452 = vld [vmem:[#allocation3 + $0xe8] sm:$0xff]
    %v2453 = vld [vmem:[#allocation3 + $0xf0] sm:$0xff]
    %v2454 = vld [vmem:[#allocation3 + $0xf8] sm:$0xff]
    %v2455 = vld [vmem:[#allocation2] sm:$0xff]
    %v2456 = vld [vmem:[#allocation2 + $0x8] sm:$0xff]
    %v2457 = vunpack.c.l.bf16 %v2455
    %v2458 = vunpack.c.h.bf16 %v2455
    %v2459 = vunpack.c.l.bf16 %v2456
    %v2460 = vunpack.c.h.bf16 %v2456
    %v2493 = vunpack.c.l.b16 %v2423
    %v2494 = vunpack.c.h.b16 %v2423
    %v2495 = vunpack.c.l.b16 %v2424
    %v2496 = vunpack.c.h.b16 %v2424
    %v2497 = vunpack.c.l.b16 %v2425
    %v2498 = vunpack.c.h.b16 %v2425
    %v2499 = vunpack.c.l.b16 %v2426
    %v2500 = vunpack.c.h.b16 %v2426
    %v2501 = vunpack.c.l.b16 %v2427
    %v2502 = vunpack.c.h.b16 %v2427
    %v2503 = vunpack.c.l.b16 %v2428
    %v2504 = vunpack.c.h.b16 %v2428
    %v2505 = vunpack.c.l.b16 %v2429
    %v2506 = vunpack.c.h.b16 %v2429
    %v2507 = vunpack.c.l.b16 %v2430
    %v2508 = vunpack.c.h.b16 %v2430
    %v2509 = vunpack.c.l.b16 %v2431
    %v2510 = vunpack.c.h.b16 %v2431
    %v2511 = vunpack.c.l.b16 %v2432
    %v2512 = vunpack.c.h.b16 %v2432
    %v2513 = vunpack.c.l.b16 %v2433
    %v2514 = vunpack.c.h.b16 %v2433
    %v2515 = vunpack.c.l.b16 %v2434
    %v2516 = vunpack.c.h.b16 %v2434
    %v2517 = vunpack.c.l.b16 %v2435
    %v2518 = vunpack.c.h.b16 %v2435
    %v2519 = vunpack.c.l.b16 %v2436
    %v2520 = vunpack.c.h.b16 %v2436
    %v2521 = vunpack.c.l.b16 %v2437
    %v2522 = vunpack.c.h.b16 %v2437
    %v2523 = vunpack.c.l.b16 %v2438
    %v2524 = vunpack.c.h.b16 %v2438
    %v2525 = vunpack.c.l.b16 %v2439
    %v2526 = vunpack.c.h.b16 %v2439
    %v2527 = vunpack.c.l.b16 %v2440
    %v2528 = vunpack.c.h.b16 %v2440
    %v2529 = vunpack.c.l.b16 %v2441
    %v2530 = vunpack.c.h.b16 %v2441
    %v2531 = vunpack.c.l.b16 %v2442
    %v2532 = vunpack.c.h.b16 %v2442
    %v2533 = vunpack.c.l.b16 %v2443
    %v2534 = vunpack.c.h.b16 %v2443
    %v2535 = vunpack.c.l.b16 %v2444
    %v2536 = vunpack.c.h.b16 %v2444
    %v2537 = vunpack.c.l.b16 %v2445
    %v2538 = vunpack.c.h.b16 %v2445
    %v2539 = vunpack.c.l.b16 %v2446
    %v2540 = vunpack.c.h.b16 %v2446
    %v2541 = vunpack.c.l.b16 %v2447
    %v2542 = vunpack.c.h.b16 %v2447
    %v2543 = vunpack.c.l.b16 %v2448
    %v2544 = vunpack.c.h.b16 %v2448
    %v2545 = vunpack.c.l.b16 %v2449
    %v2546 = vunpack.c.h.b16 %v2449
    %v2547 = vunpack.c.l.b16 %v2450
    %v2548 = vunpack.c.h.b16 %v2450
    %v2549 = vunpack.c.l.b16 %v2451
    %v2550 = vunpack.c.h.b16 %v2451
    %v2551 = vunpack.c.l.b16 %v2452
    %v2552 = vunpack.c.h.b16 %v2452
    %v2553 = vunpack.c.l.b16 %v2453
    %v2554 = vunpack.c.h.b16 %v2453
    %v2555 = vunpack.c.l.b16 %v2454
    %v2556 = vunpack.c.h.b16 %v2454
    %v2557 = vpack.c.b16 %v2497, %v2493
    %v2558 = vpack.c.b16 %v2498, %v2494
    %v2559 = vpack.c.b16 %v2499, %v2495
    %v2560 = vpack.c.b16 %v2500, %v2496
    %v2561 = vpack.c.b16 %v2505, %v2501
    %v2562 = vpack.c.b16 %v2506, %v2502
    %v2563 = vpack.c.b16 %v2507, %v2503
    %v2564 = vpack.c.b16 %v2508, %v2504
    %v2565 = vpack.c.b16 %v2513, %v2509
    %v2566 = vpack.c.b16 %v2514, %v2510
    %v2567 = vpack.c.b16 %v2515, %v2511
    %v2568 = vpack.c.b16 %v2516, %v2512
    %v2569 = vpack.c.b16 %v2521, %v2517
    %v2570 = vpack.c.b16 %v2522, %v2518
    %v2571 = vpack.c.b16 %v2523, %v2519
    %v2572 = vpack.c.b16 %v2524, %v2520
    %v2573 = vpack.c.b16 %v2529, %v2525
    %v2574 = vpack.c.b16 %v2530, %v2526
    %v2575 = vpack.c.b16 %v2531, %v2527
    %v2576 = vpack.c.b16 %v2532, %v2528
    %v2577 = vpack.c.b16 %v2537, %v2533
    %v2578 = vpack.c.b16 %v2538, %v2534
    %v2579 = vpack.c.b16 %v2539, %v2535
    %v2580 = vpack.c.b16 %v2540, %v2536
    %v2581 = vpack.c.b16 %v2545, %v2541
    %v2582 = vpack.c.b16 %v2546, %v2542
    %v2583 = vpack.c.b16 %v2547, %v2543
    %v2584 = vpack.c.b16 %v2548, %v2544
    %v2585 = vpack.c.b16 %v2553, %v2549
    %v2586 = vpack.c.b16 %v2554, %v2550
    %v2587 = vpack.c.b16 %v2555, %v2551
    %v2588 = vpack.c.b16 %v2556, %v2552
    %2621 = vmatprep.subr.bf16.mxu0 %v2558
    %2622 = vmatpush1.bf16.msra.mxu0 %v2557
    %2623 = vmatprep.subr.bf16.mxu0 %v2562
    %2624 = vmatpush1.bf16.msra.mxu0 %v2561
    %2625 = vmatprep.subr.bf16.mxu0 %v2566
    %2626 = vmatpush1.bf16.msra.mxu0 %v2565
    %2627 = vmatprep.subr.bf16.mxu0 %v2570
    %2628 = vmatpush1.bf16.msra.mxu0 %v2569
    %2629 = vmatprep.subr.bf16.mxu0 %v2574
    %2630 = vmatpush1.bf16.msra.mxu0 %v2573
    %2631 = vmatprep.subr.bf16.mxu0 %v2578
    %2632 = vmatpush1.bf16.msra.mxu0 %v2577
    %2633 = vmatprep.subr.bf16.mxu0 %v2582
    %2634 = vmatpush1.bf16.msra.mxu0 %v2581
    %2635 = vmatprep.subr.bf16.mxu0 %v2586
    %2636 = vmatpush1.bf16.msra.mxu0 %v2585
    %2637 = vmatprep.subr.bf16.mxu0 0
    %2638 = vmatpush1.bf16.msra.mxu0 0
    %2639 = vmatprep.subr.bf16.mxu0 0
    %2640 = vmatpush1.bf16.msra.mxu0 0
    %2641 = vmatprep.subr.bf16.mxu0 0
    %2642 = vmatpush1.bf16.msra.mxu0 0
    %2643 = vmatprep.subr.bf16.mxu0 0
    %2644 = vmatpush1.bf16.msra.mxu0 0
    %2645 = vmatprep.subr.bf16.mxu0 0
    %2646 = vmatpush1.bf16.msra.mxu0 0
    %2647 = vmatprep.subr.bf16.mxu0 0
    %2648 = vmatpush1.bf16.msra.mxu0 0
    %2649 = vmatprep.subr.bf16.mxu0 0
    %2650 = vmatpush1.bf16.msra.mxu0 0
    %2651 = vmatprep.subr.bf16.mxu0 0
    %2652 = vmatpush1.bf16.msra.mxu0 0
    %2653 = vmatprep.mubr.bf16.mxu0 0
    %2654 = vmatmul.mubr.bf16.gmra.mrb[0].mxu0 0
    %v2655 = vpop.f32.mrb[0].mxu0
    %v2656 = vadd.f32 %v2457, %v2655
    %v2657 = vpop.f32.mrb[0].mxu0
    %v2658 = vadd.f32 %v2458, %v2657
    %v2659 = vpop.f32.mrb[0].mxu0
    %v2660 = vpop.f32.mrb[0].mxu0
    %2661 = vdwg.mxu0
    %2662 = vmatprep.subr.bf16.mxu0 %v2560
    %2663 = vmatpush1.bf16.msra.mxu0 %v2559
    %2664 = vmatprep.subr.bf16.mxu0 %v2564
    %2665 = vmatpush1.bf16.msra.mxu0 %v2563
    %2666 = vmatprep.subr.bf16.mxu0 %v2568
    %2667 = vmatpush1.bf16.msra.mxu0 %v2567
    %2668 = vmatprep.subr.bf16.mxu0 %v2572
    %2669 = vmatpush1.bf16.msra.mxu0 %v2571
    %2670 = vmatprep.subr.bf16.mxu0 %v2576
    %2671 = vmatpush1.bf16.msra.mxu0 %v2575
    %2672 = vmatprep.subr.bf16.mxu0 %v2580
    %2673 = vmatpush1.bf16.msra.mxu0 %v2579
    %2674 = vmatprep.subr.bf16.mxu0 %v2584
    %2675 = vmatpush1.bf16.msra.mxu0 %v2583
    %2676 = vmatprep.subr.bf16.mxu0 %v2588
    %2677 = vmatpush1.bf16.msra.mxu0 %v2587
    %2678 = vmatprep.subr.bf16.mxu0 0
    %2679 = vmatpush1.bf16.msra.mxu0 0
    %2680 = vmatprep.subr.bf16.mxu0 0
    %2681 = vmatpush1.bf16.msra.mxu0 0
    %2682 = vmatprep.subr.bf16.mxu0 0
    %2683 = vmatpush1.bf16.msra.mxu0 0
    %2684 = vmatprep.subr.bf16.mxu0 0
    %2685 = vmatpush1.bf16.msra.mxu0 0
    %2686 = vmatprep.subr.bf16.mxu0 0
    %2687 = vmatpush1.bf16.msra.mxu0 0
    %2688 = vmatprep.subr.bf16.mxu0 0
    %2689 = vmatpush1.bf16.msra.mxu0 0
    %2690 = vmatprep.subr.bf16.mxu0 0
    %2691 = vmatpush1.bf16.msra.mxu0 0
    %2692 = vmatprep.subr.bf16.mxu0 0
    %2693 = vmatpush1.bf16.msra.mxu0 0
    %2694 = vmatprep.mubr.bf16.mxu0 0
    %2695 = vmatmul.mubr.bf16.gmra.mrb[0].mxu0 0
    %v2696 = vpop.f32.mrb[0].mxu0
    %v2697 = vadd.f32 %v2459, %v2696
    %v2698 = vpop.f32.mrb[0].mxu0
    %v2699 = vadd.f32 %v2460, %v2698
    %v2700 = vpop.f32.mrb[0].mxu0
    %v2701 = vpop.f32.mrb[0].mxu0
    %2702 = vdwg.mxu0
    %v2704 = vlaneseq
    %v2705 = vshrl.u32 %v2704, 7
    %v2706 = vsub.s32 0, %v2705
    %v2707 = vrot.slane %v2422, %v2706
    %v2708 = vlaneseq
    %v2709 = vshrl.u32 %v2708, 7
    %v2710 = vsub.s32 1, %v2709
    %v2711 = vrot.slane %v2422, %v2710
    %v2712 = vlaneseq
    %v2713 = vshrl.u32 %v2712, 7
    %v2714 = vsub.s32 2, %v2713
    %v2715 = vrot.slane %v2422, %v2714
    %v2716 = vlaneseq
    %v2717 = vshrl.u32 %v2716, 7
    %v2718 = vsub.s32 3, %v2717
    %v2719 = vrot.slane %v2422, %v2718
    %v2724 = vadd.f32 %v2656, %v2707
    %v2725 = vadd.f32 %v2658, %v2711
    %v2726 = vadd.f32 %v2697, %v2715
    %v2727 = vadd.f32 %v2699, %v2719
    %v2728 = vmul.f32 %v2724, 0.5
    %v2729 = vmul.f32 %v2725, 0.5
    %v2730 = vmul.f32 %v2726, 0.5
    %v2731 = vtanh.pop %v2728
    %v2732 = vtanh.pop %v2729
    %v2733 = vtanh.pop %v2730
    %v2734 = vmul.f32 %v2731, 0.5
    %v2735 = vmul.f32 %v2732, 0.5
    %v2736 = vmul.f32 %v2733, 0.5
    %v2737 = vadd.f32 %v2734, 0.5
    %v2738 = vadd.f32 %v2735, 0.5
    %v2739 = vadd.f32 %v2736, 0.5
    %v2740 = vtanh.pop %v2727
    %v2741 = vmul.f32 %v2738, 0.0
    %v2742 = vmul.f32 %v2737, %v2740
    %v2743 = vadd.f32 %v2741, %v2742
    %v2744 = vtanh.pop %v2743
    %v2745 = vmul.f32 %v2739, %v2744
    %v2746 = vlaneseq
    %v2747 = vand.u32 %v2746, 127
    %vm2748 = vcmp.lt.s32.totalorder %v2747, 64
    %v2749 = vsel %vm2748, 1, 0
    %vm2750 = vcmp.eq.s32.totalorder %v2749, 1
    %v2751 = vsel %vm2750, %v2745, 0.0
    %v2752 = vpack.c.bf16 %v2751, %v2751
    %v2753 = vsel %vm2750, %v2743, 0.0
    loop: start=0, step=1, limit=19
    $region30: #{tpu_custom_call.1} parent=1 // loop_pre_header
      _
    $region31: #{tpu_custom_call.1} parent=1 // loop_header
      %s2755 = sphi 0, %s2759
      %p2756 = scmp.ge.s32.totalorder %s2755, 19
      %v2760 = vphi %v2752, %v3414
      %v2761 = vphi %v2753, %v3411
    $region32: #{tpu_custom_call.1} parent=1 // loop_header_branch
      %2758 = sbr.rel (%p2756) target = $region36
    $region33: #{tpu_custom_call.1} parent=1 // loop_body
      %s2762 = smul.u32 %s2755, 4
      %s2763 = sadd.s32 %s2762, 1
      %v2764 = vld [vmem:[#allocation3] sm:$0xff]
      %v2765 = vld [vmem:[#allocation3 + $0x8] sm:$0xff]
      %v2766 = vld [vmem:[#allocation3 + $0x10] sm:$0xff]
      %v2767 = vld [vmem:[#allocation3 + $0x18] sm:$0xff]
      %v2768 = vld [vmem:[#allocation3 + $0x20] sm:$0xff]
      %v2769 = vld [vmem:[#allocation3 + $0x28] sm:$0xff]
      %v2770 = vld [vmem:[#allocation3 + $0x30] sm:$0xff]
      %v2771 = vld [vmem:[#allocation3 + $0x38] sm:$0xff]
      %v2772 = vld [vmem:[#allocation3 + $0x40] sm:$0xff]
      %v2773 = vld [vmem:[#allocation3 + $0x48] sm:$0xff]
      %v2774 = vld [vmem:[#allocation3 + $0x50] sm:$0xff]
      %v2775 = vld [vmem:[#allocation3 + $0x58] sm:$0xff]
      %v2776 = vld [vmem:[#allocation3 + $0x60] sm:$0xff]
      %v2777 = vld [vmem:[#allocation3 + $0x68] sm:$0xff]
      %v2778 = vld [vmem:[#allocation3 + $0x70] sm:$0xff]
      %v2779 = vld [vmem:[#allocation3 + $0x78] sm:$0xff]
      %v2780 = vld [vmem:[#allocation3 + $0x80] sm:$0xff]
      %v2781 = vld [vmem:[#allocation3 + $0x88] sm:$0xff]
      %v2782 = vld [vmem:[#allocation3 + $0x90] sm:$0xff]
      %v2783 = vld [vmem:[#allocation3 + $0x98] sm:$0xff]
      %v2784 = vld [vmem:[#allocation3 + $0xa0] sm:$0xff]
      %v2785 = vld [vmem:[#allocation3 + $0xa8] sm:$0xff]
      %v2786 = vld [vmem:[#allocation3 + $0xb0] sm:$0xff]
      %v2787 = vld [vmem:[#allocation3 + $0xb8] sm:$0xff]
      %v2788 = vld [vmem:[#allocation3 + $0xc0] sm:$0xff]
      %v2789 = vld [vmem:[#allocation3 + $0xc8] sm:$0xff]
      %v2790 = vld [vmem:[#allocation3 + $0xd0] sm:$0xff]
      %v2791 = vld [vmem:[#allocation3 + $0xd8] sm:$0xff]
      %v2792 = vld [vmem:[#allocation3 + $0xe0] sm:$0xff]
      %v2793 = vld [vmem:[#allocation3 + $0xe8] sm:$0xff]
      %v2794 = vld [vmem:[#allocation3 + $0xf0] sm:$0xff]
      %v2795 = vld [vmem:[#allocation3 + $0xf8] sm:$0xff]
      %s2796 = smul.u32 %s2763, 4
      %s2797 = smul.addr %s2796, 4
      %s2798 = scalar_lea.vmem [#allocation2], %s2797
      %v2799 = vld [vmem:[%s2798] sm:$0xff]
      %v2800 = vld [vmem:[%s2798 + $0x8] sm:$0xff]
      %v2801 = vunpack.c.l.bf16 %v2799
      %v2802 = vunpack.c.h.bf16 %v2799
      %v2803 = vunpack.c.l.bf16 %v2800
      %v2804 = vunpack.c.h.bf16 %v2800
      %v2837 = vunpack.c.l.b16 %v2764
      %v2838 = vunpack.c.h.b16 %v2764
      %v2839 = vunpack.c.l.b16 %v2765
      %v2840 = vunpack.c.h.b16 %v2765
      %v2841 = vunpack.c.l.b16 %v2766
      %v2842 = vunpack.c.h.b16 %v2766
      %v2843 = vunpack.c.l.b16 %v2767
      %v2844 = vunpack.c.h.b16 %v2767
      %v2845 = vunpack.c.l.b16 %v2768
      %v2846 = vunpack.c.h.b16 %v2768
      %v2847 = vunpack.c.l.b16 %v2769
      %v2848 = vunpack.c.h.b16 %v2769
      %v2849 = vunpack.c.l.b16 %v2770
      %v2850 = vunpack.c.h.b16 %v2770
      %v2851 = vunpack.c.l.b16 %v2771
      %v2852 = vunpack.c.h.b16 %v2771
      %v2853 = vunpack.c.l.b16 %v2772
      %v2854 = vunpack.c.h.b16 %v2772
      %v2855 = vunpack.c.l.b16 %v2773
      %v2856 = vunpack.c.h.b16 %v2773
      %v2857 = vunpack.c.l.b16 %v2774
      %v2858 = vunpack.c.h.b16 %v2774
      %v2859 = vunpack.c.l.b16 %v2775
      %v2860 = vunpack.c.h.b16 %v2775
      %v2861 = vunpack.c.l.b16 %v2776
      %v2862 = vunpack.c.h.b16 %v2776
      %v2863 = vunpack.c.l.b16 %v2777
      %v2864 = vunpack.c.h.b16 %v2777
      %v2865 = vunpack.c.l.b16 %v2778
      %v2866 = vunpack.c.h.b16 %v2778
      %v2867 = vunpack.c.l.b16 %v2779
      %v2868 = vunpack.c.h.b16 %v2779
      %v2869 = vunpack.c.l.b16 %v2780
      %v2870 = vunpack.c.h.b16 %v2780
      %v2871 = vunpack.c.l.b16 %v2781
      %v2872 = vunpack.c.h.b16 %v2781
      %v2873 = vunpack.c.l.b16 %v2782
      %v2874 = vunpack.c.h.b16 %v2782
      %v2875 = vunpack.c.l.b16 %v2783
      %v2876 = vunpack.c.h.b16 %v2783
      %v2877 = vunpack.c.l.b16 %v2784
      %v2878 = vunpack.c.h.b16 %v2784
      %v2879 = vunpack.c.l.b16 %v2785
      %v2880 = vunpack.c.h.b16 %v2785
      %v2881 = vunpack.c.l.b16 %v2786
      %v2882 = vunpack.c.h.b16 %v2786
      %v2883 = vunpack.c.l.b16 %v2787
      %v2884 = vunpack.c.h.b16 %v2787
      %v2885 = vunpack.c.l.b16 %v2788
      %v2886 = vunpack.c.h.b16 %v2788
      %v2887 = vunpack.c.l.b16 %v2789
      %v2888 = vunpack.c.h.b16 %v2789
      %v2889 = vunpack.c.l.b16 %v2790
      %v2890 = vunpack.c.h.b16 %v2790
      %v2891 = vunpack.c.l.b16 %v2791
      %v2892 = vunpack.c.h.b16 %v2791
      %v2893 = vunpack.c.l.b16 %v2792
      %v2894 = vunpack.c.h.b16 %v2792
      %v2895 = vunpack.c.l.b16 %v2793
      %v2896 = vunpack.c.h.b16 %v2793
      %v2897 = vunpack.c.l.b16 %v2794
      %v2898 = vunpack.c.h.b16 %v2794
      %v2899 = vunpack.c.l.b16 %v2795
      %v2900 = vunpack.c.h.b16 %v2795
      %v2901 = vpack.c.b16 %v2841, %v2837
      %v2902 = vpack.c.b16 %v2842, %v2838
      %v2903 = vpack.c.b16 %v2843, %v2839
      %v2904 = vpack.c.b16 %v2844, %v2840
      %v2905 = vpack.c.b16 %v2849, %v2845
      %v2906 = vpack.c.b16 %v2850, %v2846
      %v2907 = vpack.c.b16 %v2851, %v2847
      %v2908 = vpack.c.b16 %v2852, %v2848
      %v2909 = vpack.c.b16 %v2857, %v2853
      %v2910 = vpack.c.b16 %v2858, %v2854
      %v2911 = vpack.c.b16 %v2859, %v2855
      %v2912 = vpack.c.b16 %v2860, %v2856
      %v2913 = vpack.c.b16 %v2865, %v2861
      %v2914 = vpack.c.b16 %v2866, %v2862
      %v2915 = vpack.c.b16 %v2867, %v2863
      %v2916 = vpack.c.b16 %v2868, %v2864
      %v2917 = vpack.c.b16 %v2873, %v2869
      %v2918 = vpack.c.b16 %v2874, %v2870
      %v2919 = vpack.c.b16 %v2875, %v2871
      %v2920 = vpack.c.b16 %v2876, %v2872
      %v2921 = vpack.c.b16 %v2881, %v2877
      %v2922 = vpack.c.b16 %v2882, %v2878
      %v2923 = vpack.c.b16 %v2883, %v2879
      %v2924 = vpack.c.b16 %v2884, %v2880
      %v2925 = vpack.c.b16 %v2889, %v2885
      %v2926 = vpack.c.b16 %v2890, %v2886
      %v2927 = vpack.c.b16 %v2891, %v2887
      %v2928 = vpack.c.b16 %v2892, %v2888
      %v2929 = vpack.c.b16 %v2897, %v2893
      %v2930 = vpack.c.b16 %v2898, %v2894
      %v2931 = vpack.c.b16 %v2899, %v2895
      %v2932 = vpack.c.b16 %v2900, %v2896
      %2965 = vmatprep.subr.bf16.mxu0 %v2902
      %2966 = vmatpush1.bf16.msra.mxu0 %v2901
      %2967 = vmatprep.subr.bf16.mxu0 %v2906
      %2968 = vmatpush1.bf16.msra.mxu0 %v2905
      %2969 = vmatprep.subr.bf16.mxu0 %v2910
      %2970 = vmatpush1.bf16.msra.mxu0 %v2909
      %2971 = vmatprep.subr.bf16.mxu0 %v2914
      %2972 = vmatpush1.bf16.msra.mxu0 %v2913
      %2973 = vmatprep.subr.bf16.mxu0 %v2918
      %2974 = vmatpush1.bf16.msra.mxu0 %v2917
      %2975 = vmatprep.subr.bf16.mxu0 %v2922
      %2976 = vmatpush1.bf16.msra.mxu0 %v2921
      %2977 = vmatprep.subr.bf16.mxu0 %v2926
      %2978 = vmatpush1.bf16.msra.mxu0 %v2925
      %2979 = vmatprep.subr.bf16.mxu0 %v2930
      %2980 = vmatpush1.bf16.msra.mxu0 %v2929
      %2981 = vmatprep.subr.bf16.mxu0 0
      %2982 = vmatpush1.bf16.msra.mxu0 0
      %2983 = vmatprep.subr.bf16.mxu0 0
      %2984 = vmatpush1.bf16.msra.mxu0 0
      %2985 = vmatprep.subr.bf16.mxu0 0
      %2986 = vmatpush1.bf16.msra.mxu0 0
      %2987 = vmatprep.subr.bf16.mxu0 0
      %2988 = vmatpush1.bf16.msra.mxu0 0
      %2989 = vmatprep.subr.bf16.mxu0 0
      %2990 = vmatpush1.bf16.msra.mxu0 0
      %2991 = vmatprep.subr.bf16.mxu0 0
      %2992 = vmatpush1.bf16.msra.mxu0 0
      %2993 = vmatprep.subr.bf16.mxu0 0
      %2994 = vmatpush1.bf16.msra.mxu0 0
      %2995 = vmatprep.subr.bf16.mxu0 0
      %2996 = vmatpush1.bf16.msra.mxu0 0
      %2997 = vmatprep.mubr.bf16.mxu0 0
      %2998 = vmatmul.mubr.bf16.gmra.mrb[0].mxu0 %v2760
      %v2999 = vpop.f32.mrb[0].mxu0
      %v3000 = vadd.f32 %v2801, %v2999
      %v3001 = vpop.f32.mrb[0].mxu0
      %v3002 = vadd.f32 %v2802, %v3001
      %v3003 = vpop.f32.mrb[0].mxu0
      %v3004 = vpop.f32.mrb[0].mxu0
      %3005 = vdwg.mxu0
      %3006 = vmatprep.subr.bf16.mxu0 %v2904
      %3007 = vmatpush1.bf16.msra.mxu0 %v2903
      %3008 = vmatprep.subr.bf16.mxu0 %v2908
      %3009 = vmatpush1.bf16.msra.mxu0 %v2907
      %3010 = vmatprep.subr.bf16.mxu0 %v2912
      %3011 = vmatpush1.bf16.msra.mxu0 %v2911
      %3012 = vmatprep.subr.bf16.mxu0 %v2916
      %3013 = vmatpush1.bf16.msra.mxu0 %v2915
      %3014 = vmatprep.subr.bf16.mxu0 %v2920
      %3015 = vmatpush1.bf16.msra.mxu0 %v2919
      %3016 = vmatprep.subr.bf16.mxu0 %v2924
      %3017 = vmatpush1.bf16.msra.mxu0 %v2923
      %3018 = vmatprep.subr.bf16.mxu0 %v2928
      %3019 = vmatpush1.bf16.msra.mxu0 %v2927
      %3020 = vmatprep.subr.bf16.mxu0 %v2932
      %3021 = vmatpush1.bf16.msra.mxu0 %v2931
      %3022 = vmatprep.subr.bf16.mxu0 0
      %3023 = vmatpush1.bf16.msra.mxu0 0
      %3024 = vmatprep.subr.bf16.mxu0 0
      %3025 = vmatpush1.bf16.msra.mxu0 0
      %3026 = vmatprep.subr.bf16.mxu0 0
      %3027 = vmatpush1.bf16.msra.mxu0 0
      %3028 = vmatprep.subr.bf16.mxu0 0
      %3029 = vmatpush1.bf16.msra.mxu0 0
      %3030 = vmatprep.subr.bf16.mxu0 0
      %3031 = vmatpush1.bf16.msra.mxu0 0
      %3032 = vmatprep.subr.bf16.mxu0 0
      %3033 = vmatpush1.bf16.msra.mxu0 0
      %3034 = vmatprep.subr.bf16.mxu0 0
      %3035 = vmatpush1.bf16.msra.mxu0 0
      %3036 = vmatprep.subr.bf16.mxu0 0
      %3037 = vmatpush1.bf16.msra.mxu0 0
      %3038 = vmatprep.mubr.bf16.mxu0 0
      %3039 = vmatmul.mubr.bf16.gmra.mrb[0].mxu0 %v2760
      %v3040 = vpop.f32.mrb[0].mxu0
      %v3041 = vadd.f32 %v2803, %v3040
      %v3042 = vpop.f32.mrb[0].mxu0
      %v3043 = vadd.f32 %v2804, %v3042
      %v3044 = vpop.f32.mrb[0].mxu0
      %v3045 = vpop.f32.mrb[0].mxu0
      %3046 = vdwg.mxu0
      %v3047 = vadd.f32 %v3000, %v2707
      %v3048 = vadd.f32 %v3002, %v2711
      %v3049 = vadd.f32 %v3041, %v2715
      %v3050 = vadd.f32 %v3043, %v2719
      %v3051 = vmul.f32 %v3047, 0.5
      %v3052 = vmul.f32 %v3048, 0.5
      %v3053 = vmul.f32 %v3049, 0.5
      %v3054 = vtanh.pop %v3051
      %v3055 = vtanh.pop %v3052
      %v3056 = vtanh.pop %v3053
      %v3057 = vmul.f32 %v3054, 0.5
      %v3058 = vmul.f32 %v3055, 0.5
      %v3059 = vmul.f32 %v3056, 0.5
      %v3060 = vadd.f32 %v3057, 0.5
      %v3061 = vadd.f32 %v3058, 0.5
      %v3062 = vadd.f32 %v3059, 0.5
      %v3063 = vtanh.pop %v3050
      %v3064 = vmul.f32 %v3061, %v2761
      %v3065 = vmul.f32 %v3060, %v3063
      %v3066 = vadd.f32 %v3064, %v3065
      %v3067 = vtanh.pop %v3066
      %v3068 = vmul.f32 %v3062, %v3067
      %v3069 = vpack.c.bf16 %v3068, %v3068
      %s3070 = sadd.s32 %s2762, 2
      %s3071 = smul.u32 %s3070, 4
      %s3072 = smul.addr %s3071, 4
      %s3073 = scalar_lea.vmem [#allocation2], %s3072
      %v3074 = vld [vmem:[%s3073] sm:$0xff]
      %v3075 = vld [vmem:[%s3073 + $0x8] sm:$0xff]
      %v3076 = vunpack.c.l.bf16 %v3074
      %v3077 = vunpack.c.h.bf16 %v3074
      %v3078 = vunpack.c.l.bf16 %v3075
      %v3079 = vunpack.c.h.bf16 %v3075
      %3080 = vmatprep.subr.bf16.mxu0 %v2902
      %3081 = vmatpush1.bf16.msra.mxu0 %v2901
      %3082 = vmatprep.subr.bf16.mxu0 %v2906
      %3083 = vmatpush1.bf16.msra.mxu0 %v2905
      %3084 = vmatprep.subr.bf16.mxu0 %v2910
      %3085 = vmatpush1.bf16.msra.mxu0 %v2909
      %3086 = vmatprep.subr.bf16.mxu0 %v2914
      %3087 = vmatpush1.bf16.msra.mxu0 %v2913
      %3088 = vmatprep.subr.bf16.mxu0 %v2918
      %3089 = vmatpush1.bf16.msra.mxu0 %v2917
      %3090 = vmatprep.subr.bf16.mxu0 %v2922
      %3091 = vmatpush1.bf16.msra.mxu0 %v2921
      %3092 = vmatprep.subr.bf16.mxu0 %v2926
      %3093 = vmatpush1.bf16.msra.mxu0 %v2925
      %3094 = vmatprep.subr.bf16.mxu0 %v2930
      %3095 = vmatpush1.bf16.msra.mxu0 %v2929
      %3096 = vmatprep.subr.bf16.mxu0 0
      %3097 = vmatpush1.bf16.msra.mxu0 0
      %3098 = vmatprep.subr.bf16.mxu0 0
      %3099 = vmatpush1.bf16.msra.mxu0 0
      %3100 = vmatprep.subr.bf16.mxu0 0
      %3101 = vmatpush1.bf16.msra.mxu0 0
      %3102 = vmatprep.subr.bf16.mxu0 0
      %3103 = vmatpush1.bf16.msra.mxu0 0
      %3104 = vmatprep.subr.bf16.mxu0 0
      %3105 = vmatpush1.bf16.msra.mxu0 0
      %3106 = vmatprep.subr.bf16.mxu0 0
      %3107 = vmatpush1.bf16.msra.mxu0 0
      %3108 = vmatprep.subr.bf16.mxu0 0
      %3109 = vmatpush1.bf16.msra.mxu0 0
      %3110 = vmatprep.subr.bf16.mxu0 0
      %3111 = vmatpush1.bf16.msra.mxu0 0
      %3112 = vmatprep.mubr.bf16.mxu0 0
      %3113 = vmatmul.mubr.bf16.gmra.mrb[0].mxu0 %v3069
      %v3114 = vpop.f32.mrb[0].mxu0
      %v3115 = vadd.f32 %v3076, %v3114
      %v3116 = vpop.f32.mrb[0].mxu0
      %v3117 = vadd.f32 %v3077, %v3116
      %v3118 = vpop.f32.mrb[0].mxu0
      %v3119 = vpop.f32.mrb[0].mxu0
      %3120 = vdwg.mxu0
      %3121 = vmatprep.subr.bf16.mxu0 %v2904
      %3122 = vmatpush1.bf16.msra.mxu0 %v2903
      %3123 = vmatprep.subr.bf16.mxu0 %v2908
      %3124 = vmatpush1.bf16.msra.mxu0 %v2907
      %3125 = vmatprep.subr.bf16.mxu0 %v2912
      %3126 = vmatpush1.bf16.msra.mxu0 %v2911
      %3127 = vmatprep.subr.bf16.mxu0 %v2916
      %3128 = vmatpush1.bf16.msra.mxu0 %v2915
      %3129 = vmatprep.subr.bf16.mxu0 %v2920
      %3130 = vmatpush1.bf16.msra.mxu0 %v2919
      %3131 = vmatprep.subr.bf16.mxu0 %v2924
      %3132 = vmatpush1.bf16.msra.mxu0 %v2923
      %3133 = vmatprep.subr.bf16.mxu0 %v2928
      %3134 = vmatpush1.bf16.msra.mxu0 %v2927
      %3135 = vmatprep.subr.bf16.mxu0 %v2932
      %3136 = vmatpush1.bf16.msra.mxu0 %v2931
      %3137 = vmatprep.subr.bf16.mxu0 0
      %3138 = vmatpush1.bf16.msra.mxu0 0
      %3139 = vmatprep.subr.bf16.mxu0 0
      %3140 = vmatpush1.bf16.msra.mxu0 0
      %3141 = vmatprep.subr.bf16.mxu0 0
      %3142 = vmatpush1.bf16.msra.mxu0 0
      %3143 = vmatprep.subr.bf16.mxu0 0
      %3144 = vmatpush1.bf16.msra.mxu0 0
      %3145 = vmatprep.subr.bf16.mxu0 0
      %3146 = vmatpush1.bf16.msra.mxu0 0
      %3147 = vmatprep.subr.bf16.mxu0 0
      %3148 = vmatpush1.bf16.msra.mxu0 0
      %3149 = vmatprep.subr.bf16.mxu0 0
      %3150 = vmatpush1.bf16.msra.mxu0 0
      %3151 = vmatprep.subr.bf16.mxu0 0
      %3152 = vmatpush1.bf16.msra.mxu0 0
      %3153 = vmatprep.mubr.bf16.mxu0 0
      %3154 = vmatmul.mubr.bf16.gmra.mrb[0].mxu0 %v3069
      %v3155 = vpop.f32.mrb[0].mxu0
      %v3156 = vadd.f32 %v3078, %v3155
      %v3157 = vpop.f32.mrb[0].mxu0
      %v3158 = vadd.f32 %v3079, %v3157
      %v3159 = vpop.f32.mrb[0].mxu0
      %v3160 = vpop.f32.mrb[0].mxu0
      %3161 = vdwg.mxu0
      %v3162 = vadd.f32 %v3115, %v2707
      %v3163 = vadd.f32 %v3117, %v2711
      %v3164 = vadd.f32 %v3156, %v2715
      %v3165 = vadd.f32 %v3158, %v2719
      %v3166 = vmul.f32 %v3162, 0.5
      %v3167 = vmul.f32 %v3163, 0.5
      %v3168 = vmul.f32 %v3164, 0.5
      %v3169 = vtanh.pop %v3166
      %v3170 = vtanh.pop %v3167
      %v3171 = vtanh.pop %v3168
      %v3172 = vmul.f32 %v3169, 0.5
      %v3173 = vmul.f32 %v3170, 0.5
      %v3174 = vmul.f32 %v3171, 0.5
      %v3175 = vadd.f32 %v3172, 0.5
      %v3176 = vadd.f32 %v3173, 0.5
      %v3177 = vadd.f32 %v3174, 0.5
      %v3178 = vtanh.pop %v3165
      %v3179 = vmul.f32 %v3176, %v3066
      %v3180 = vmul.f32 %v3175, %v3178
      %v3181 = vadd.f32 %v3179, %v3180
      %v3182 = vtanh.pop %v3181
      %v3183 = vmul.f32 %v3177, %v3182
      %v3184 = vpack.c.bf16 %v3183, %v3183
      %s3185 = sadd.s32 %s2762, 3
      %s3186 = smul.u32 %s3185, 4
      %s3187 = smul.addr %s3186, 4
      %s3188 = scalar_lea.vmem [#allocation2], %s3187
      %v3189 = vld [vmem:[%s3188] sm:$0xff]
      %v3190 = vld [vmem:[%s3188 + $0x8] sm:$0xff]
      %v3191 = vunpack.c.l.bf16 %v3189
      %v3192 = vunpack.c.h.bf16 %v3189
      %v3193 = vunpack.c.l.bf16 %v3190
      %v3194 = vunpack.c.h.bf16 %v3190
      %3195 = vmatprep.subr.bf16.mxu0 %v2902
      %3196 = vmatpush1.bf16.msra.mxu0 %v2901
      %3197 = vmatprep.subr.bf16.mxu0 %v2906
      %3198 = vmatpush1.bf16.msra.mxu0 %v2905
      %3199 = vmatprep.subr.bf16.mxu0 %v2910
      %3200 = vmatpush1.bf16.msra.mxu0 %v2909
      %3201 = vmatprep.subr.bf16.mxu0 %v2914
      %3202 = vmatpush1.bf16.msra.mxu0 %v2913
      %3203 = vmatprep.subr.bf16.mxu0 %v2918
      %3204 = vmatpush1.bf16.msra.mxu0 %v2917
      %3205 = vmatprep.subr.bf16.mxu0 %v2922
      %3206 = vmatpush1.bf16.msra.mxu0 %v2921
      %3207 = vmatprep.subr.bf16.mxu0 %v2926
      %3208 = vmatpush1.bf16.msra.mxu0 %v2925
      %3209 = vmatprep.subr.bf16.mxu0 %v2930
      %3210 = vmatpush1.bf16.msra.mxu0 %v2929
      %3211 = vmatprep.subr.bf16.mxu0 0
      %3212 = vmatpush1.bf16.msra.mxu0 0
      %3213 = vmatprep.subr.bf16.mxu0 0
      %3214 = vmatpush1.bf16.msra.mxu0 0
      %3215 = vmatprep.subr.bf16.mxu0 0
      %3216 = vmatpush1.bf16.msra.mxu0 0
      %3217 = vmatprep.subr.bf16.mxu0 0
      %3218 = vmatpush1.bf16.msra.mxu0 0
      %3219 = vmatprep.subr.bf16.mxu0 0
      %3220 = vmatpush1.bf16.msra.mxu0 0
      %3221 = vmatprep.subr.bf16.mxu0 0
      %3222 = vmatpush1.bf16.msra.mxu0 0
      %3223 = vmatprep.subr.bf16.mxu0 0
      %3224 = vmatpush1.bf16.msra.mxu0 0
      %3225 = vmatprep.subr.bf16.mxu0 0
      %3226 = vmatpush1.bf16.msra.mxu0 0
      %3227 = vmatprep.mubr.bf16.mxu0 0
      %3228 = vmatmul.mubr.bf16.gmra.mrb[0].mxu0 %v3184
      %v3229 = vpop.f32.mrb[0].mxu0
      %v3230 = vadd.f32 %v3191, %v3229
      %v3231 = vpop.f32.mrb[0].mxu0
      %v3232 = vadd.f32 %v3192, %v3231
      %v3233 = vpop.f32.mrb[0].mxu0
      %v3234 = vpop.f32.mrb[0].mxu0
      %3235 = vdwg.mxu0
      %3236 = vmatprep.subr.bf16.mxu0 %v2904
      %3237 = vmatpush1.bf16.msra.mxu0 %v2903
      %3238 = vmatprep.subr.bf16.mxu0 %v2908
      %3239 = vmatpush1.bf16.msra.mxu0 %v2907
      %3240 = vmatprep.subr.bf16.mxu0 %v2912
      %3241 = vmatpush1.bf16.msra.mxu0 %v2911
      %3242 = vmatprep.subr.bf16.mxu0 %v2916
      %3243 = vmatpush1.bf16.msra.mxu0 %v2915
      %3244 = vmatprep.subr.bf16.mxu0 %v2920
      %3245 = vmatpush1.bf16.msra.mxu0 %v2919
      %3246 = vmatprep.subr.bf16.mxu0 %v2924
      %3247 = vmatpush1.bf16.msra.mxu0 %v2923
      %3248 = vmatprep.subr.bf16.mxu0 %v2928
      %3249 = vmatpush1.bf16.msra.mxu0 %v2927
      %3250 = vmatprep.subr.bf16.mxu0 %v2932
      %3251 = vmatpush1.bf16.msra.mxu0 %v2931
      %3252 = vmatprep.subr.bf16.mxu0 0
      %3253 = vmatpush1.bf16.msra.mxu0 0
      %3254 = vmatprep.subr.bf16.mxu0 0
      %3255 = vmatpush1.bf16.msra.mxu0 0
      %3256 = vmatprep.subr.bf16.mxu0 0
      %3257 = vmatpush1.bf16.msra.mxu0 0
      %3258 = vmatprep.subr.bf16.mxu0 0
      %3259 = vmatpush1.bf16.msra.mxu0 0
      %3260 = vmatprep.subr.bf16.mxu0 0
      %3261 = vmatpush1.bf16.msra.mxu0 0
      %3262 = vmatprep.subr.bf16.mxu0 0
      %3263 = vmatpush1.bf16.msra.mxu0 0
      %3264 = vmatprep.subr.bf16.mxu0 0
      %3265 = vmatpush1.bf16.msra.mxu0 0
      %3266 = vmatprep.subr.bf16.mxu0 0
      %3267 = vmatpush1.bf16.msra.mxu0 0
      %3268 = vmatprep.mubr.bf16.mxu0 0
      %3269 = vmatmul.mubr.bf16.gmra.mrb[0].mxu0 %v3184
      %v3270 = vpop.f32.mrb[0].mxu0
      %v3271 = vadd.f32 %v3193, %v3270
      %v3272 = vpop.f32.mrb[0].mxu0
      %v3273 = vadd.f32 %v3194, %v3272
      %v3274 = vpop.f32.mrb[0].mxu0
      %v3275 = vpop.f32.mrb[0].mxu0
      %3276 = vdwg.mxu0
      %v3277 = vadd.f32 %v3230, %v2707
      %v3278 = vadd.f32 %v3232, %v2711
      %v3279 = vadd.f32 %v3271, %v2715
      %v3280 = vadd.f32 %v3273, %v2719
      %v3281 = vmul.f32 %v3277, 0.5
      %v3282 = vmul.f32 %v3278, 0.5
      %v3283 = vmul.f32 %v3279, 0.5
      %v3284 = vtanh.pop %v3281
      %v3285 = vtanh.pop %v3282
      %v3286 = vtanh.pop %v3283
      %v3287 = vmul.f32 %v3284, 0.5
      %v3288 = vmul.f32 %v3285, 0.5
      %v3289 = vmul.f32 %v3286, 0.5
      %v3290 = vadd.f32 %v3287, 0.5
      %v3291 = vadd.f32 %v3288, 0.5
      %v3292 = vadd.f32 %v3289, 0.5
      %v3293 = vtanh.pop %v3280
      %v3294 = vmul.f32 %v3291, %v3181
      %v3295 = vmul.f32 %v3290, %v3293
      %v3296 = vadd.f32 %v3294, %v3295
      %v3297 = vtanh.pop %v3296
      %v3298 = vmul.f32 %v3292, %v3297
      %v3299 = vpack.c.bf16 %v3298, %v3298
      %s3300 = sadd.s32 %s2762, 4
      %s3301 = smul.u32 %s3300, 4
      %s3302 = smul.addr %s3301, 4
      %s3303 = scalar_lea.vmem [#allocation2], %s3302
      %v3304 = vld [vmem:[%s3303] sm:$0xff]
      %v3305 = vld [vmem:[%s3303 + $0x8] sm:$0xff]
      %v3306 = vunpack.c.l.bf16 %v3304
      %v3307 = vunpack.c.h.bf16 %v3304
      %v3308 = vunpack.c.l.bf16 %v3305
      %v3309 = vunpack.c.h.bf16 %v3305
      %3310 = vmatprep.subr.bf16.mxu0 %v2902
      %3311 = vmatpush1.bf16.msra.mxu0 %v2901
      %3312 = vmatprep.subr.bf16.mxu0 %v2906
      %3313 = vmatpush1.bf16.msra.mxu0 %v2905
      %3314 = vmatprep.subr.bf16.mxu0 %v2910
      %3315 = vmatpush1.bf16.msra.mxu0 %v2909
      %3316 = vmatprep.subr.bf16.mxu0 %v2914
      %3317 = vmatpush1.bf16.msra.mxu0 %v2913
      %3318 = vmatprep.subr.bf16.mxu0 %v2918
      %3319 = vmatpush1.bf16.msra.mxu0 %v2917
      %3320 = vmatprep.subr.bf16.mxu0 %v2922
      %3321 = vmatpush1.bf16.msra.mxu0 %v2921
      %3322 = vmatprep.subr.bf16.mxu0 %v2926
      %3323 = vmatpush1.bf16.msra.mxu0 %v2925
      %3324 = vmatprep.subr.bf16.mxu0 %v2930
      %3325 = vmatpush1.bf16.msra.mxu0 %v2929
      %3326 = vmatprep.subr.bf16.mxu0 0
      %3327 = vmatpush1.bf16.msra.mxu0 0
      %3328 = vmatprep.subr.bf16.mxu0 0
      %3329 = vmatpush1.bf16.msra.mxu0 0
      %3330 = vmatprep.subr.bf16.mxu0 0
      %3331 = vmatpush1.bf16.msra.mxu0 0
      %3332 = vmatprep.subr.bf16.mxu0 0
      %3333 = vmatpush1.bf16.msra.mxu0 0
      %3334 = vmatprep.subr.bf16.mxu0 0
      %3335 = vmatpush1.bf16.msra.mxu0 0
      %3336 = vmatprep.subr.bf16.mxu0 0
      %3337 = vmatpush1.bf16.msra.mxu0 0
      %3338 = vmatprep.subr.bf16.mxu0 0
      %3339 = vmatpush1.bf16.msra.mxu0 0
      %3340 = vmatprep.subr.bf16.mxu0 0
      %3341 = vmatpush1.bf16.msra.mxu0 0
      %3342 = vmatprep.mubr.bf16.mxu0 0
      %3343 = vmatmul.mubr.bf16.gmra.mrb[0].mxu0 %v3299
      %v3344 = vpop.f32.mrb[0].mxu0
      %v3345 = vadd.f32 %v3306, %v3344
      %v3346 = vpop.f32.mrb[0].mxu0
      %v3347 = vadd.f32 %v3307, %v3346
      %v3348 = vpop.f32.mrb[0].mxu0
      %v3349 = vpop.f32.mrb[0].mxu0
      %3350 = vdwg.mxu0
      %3351 = vmatprep.subr.bf16.mxu0 %v2904
      %3352 = vmatpush1.bf16.msra.mxu0 %v2903
      %3353 = vmatprep.subr.bf16.mxu0 %v2908
      %3354 = vmatpush1.bf16.msra.mxu0 %v2907
      %3355 = vmatprep.subr.bf16.mxu0 %v2912
      %3356 = vmatpush1.bf16.msra.mxu0 %v2911
      %3357 = vmatprep.subr.bf16.mxu0 %v2916
      %3358 = vmatpush1.bf16.msra.mxu0 %v2915
      %3359 = vmatprep.subr.bf16.mxu0 %v2920
      %3360 = vmatpush1.bf16.msra.mxu0 %v2919
      %3361 = vmatprep.subr.bf16.mxu0 %v2924
      %3362 = vmatpush1.bf16.msra.mxu0 %v2923
      %3363 = vmatprep.subr.bf16.mxu0 %v2928
      %3364 = vmatpush1.bf16.msra.mxu0 %v2927
      %3365 = vmatprep.subr.bf16.mxu0 %v2932
      %3366 = vmatpush1.bf16.msra.mxu0 %v2931
      %3367 = vmatprep.subr.bf16.mxu0 0
      %3368 = vmatpush1.bf16.msra.mxu0 0
      %3369 = vmatprep.subr.bf16.mxu0 0
      %3370 = vmatpush1.bf16.msra.mxu0 0
      %3371 = vmatprep.subr.bf16.mxu0 0
      %3372 = vmatpush1.bf16.msra.mxu0 0
      %3373 = vmatprep.subr.bf16.mxu0 0
      %3374 = vmatpush1.bf16.msra.mxu0 0
      %3375 = vmatprep.subr.bf16.mxu0 0
      %3376 = vmatpush1.bf16.msra.mxu0 0
      %3377 = vmatprep.subr.bf16.mxu0 0
      %3378 = vmatpush1.bf16.msra.mxu0 0
      %3379 = vmatprep.subr.bf16.mxu0 0
      %3380 = vmatpush1.bf16.msra.mxu0 0
      %3381 = vmatprep.subr.bf16.mxu0 0
      %3382 = vmatpush1.bf16.msra.mxu0 0
      %3383 = vmatprep.mubr.bf16.mxu0 0
      %3384 = vmatmul.mubr.bf16.gmra.mrb[0].mxu0 %v3299
      %v3385 = vpop.f32.mrb[0].mxu0
      %v3386 = vadd.f32 %v3308, %v3385
      %v3387 = vpop.f32.mrb[0].mxu0
      %v3388 = vadd.f32 %v3309, %v3387
      %v3389 = vpop.f32.mrb[0].mxu0
      %v3390 = vpop.f32.mrb[0].mxu0
      %3391 = vdwg.mxu0
      %v3392 = vadd.f32 %v3345, %v2707
      %v3393 = vadd.f32 %v3347, %v2711
      %v3394 = vadd.f32 %v3386, %v2715
      %v3395 = vadd.f32 %v3388, %v2719
      %v3396 = vmul.f32 %v3392, 0.5
      %v3397 = vmul.f32 %v3393, 0.5
      %v3398 = vmul.f32 %v3394, 0.5
      %v3399 = vtanh.pop %v3396
      %v3400 = vtanh.pop %v3397
      %v3401 = vtanh.pop %v3398
      %v3402 = vmul.f32 %v3399, 0.5
      %v3403 = vmul.f32 %v3400, 0.5
      %v3404 = vmul.f32 %v3401, 0.5
      %v3405 = vadd.f32 %v3402, 0.5
      %v3406 = vadd.f32 %v3403, 0.5
      %v3407 = vadd.f32 %v3404, 0.5
      %v3408 = vtanh.pop %v3395
      %v3409 = vmul.f32 %v3406, %v3296
      %v3410 = vmul.f32 %v3405, %v3408
      %v3411 = vadd.f32 %v3409, %v3410
      %v3412 = vtanh.pop %v3411
      %v3413 = vmul.f32 %v3407, %v3412
      %v3414 = vpack.c.bf16 %v3413, %v3413
    $region34: #{tpu_custom_call.1} parent=1 // loop_footer
      %s2759 = sadd.s32 1, %s2755
    $region35: #{tpu_custom_call.1} parent=1 // loop_footer_branch
      %2754 = sbr.rel target = $region31
    $region36: #{tpu_custom_call.1} parent=1 // loop_exit
      _
    %s3415 = scalar_lea.vmem [#allocation2], 1232
    %v3416 = vld [vmem:[%s3415] sm:$0xff]
    %v3417 = vld [vmem:[%s3415 + $0x8] sm:$0xff]
    %v3418 = vunpack.c.l.bf16 %v3416
    %v3419 = vunpack.c.h.bf16 %v3416
    %v3420 = vunpack.c.l.bf16 %v3417
    %v3421 = vunpack.c.h.bf16 %v3417
    %3422 = vmatprep.subr.bf16.mxu0 %v2558
    %3423 = vmatpush1.bf16.msra.mxu0 %v2557
    %3424 = vmatprep.subr.bf16.mxu0 %v2562
    %3425 = vmatpush1.bf16.msra.mxu0 %v2561
    %3426 = vmatprep.subr.bf16.mxu0 %v2566
    %3427 = vmatpush1.bf16.msra.mxu0 %v2565
    %3428 = vmatprep.subr.bf16.mxu0 %v2570
    %3429 = vmatpush1.bf16.msra.mxu0 %v2569
    %3430 = vmatprep.subr.bf16.mxu0 %v2574
    %3431 = vmatpush1.bf16.msra.mxu0 %v2573
    %3432 = vmatprep.subr.bf16.mxu0 %v2578
    %3433 = vmatpush1.bf16.msra.mxu0 %v2577
    %3434 = vmatprep.subr.bf16.mxu0 %v2582
    %3435 = vmatpush1.bf16.msra.mxu0 %v2581
    %3436 = vmatprep.subr.bf16.mxu0 %v2586
    %3437 = vmatpush1.bf16.msra.mxu0 %v2585
    %3438 = vmatprep.subr.bf16.mxu0 0
    %3439 = vmatpush1.bf16.msra.mxu0 0
    %3440 = vmatprep.subr.bf16.mxu0 0
    %3441 = vmatpush1.bf16.msra.mxu0 0
    %3442 = vmatprep.subr.bf16.mxu0 0
    %3443 = vmatpush1.bf16.msra.mxu0 0
    %3444 = vmatprep.subr.bf16.mxu0 0
    %3445 = vmatpush1.bf16.msra.mxu0 0
    %3446 = vmatprep.subr.bf16.mxu0 0
    %3447 = vmatpush1.bf16.msra.mxu0 0
    %3448 = vmatprep.subr.bf16.mxu0 0
    %3449 = vmatpush1.bf16.msra.mxu0 0
    %3450 = vmatprep.subr.bf16.mxu0 0
    %3451 = vmatpush1.bf16.msra.mxu0 0
    %3452 = vmatprep.subr.bf16.mxu0 0
    %3453 = vmatpush1.bf16.msra.mxu0 0
    %3454 = vmatprep.mubr.bf16.mxu0 0
    %3455 = vmatmul.mubr.bf16.gmra.mrb[0].mxu0 %v2760
    %v3456 = vpop.f32.mrb[0].mxu0
    %v3457 = vadd.f32 %v3418, %v3456
    %v3458 = vpop.f32.mrb[0].mxu0
    %v3459 = vadd.f32 %v3419, %v3458
    %v3460 = vpop.f32.mrb[0].mxu0
    %v3461 = vpop.f32.mrb[0].mxu0
    %3462 = vdwg.mxu0
    %3463 = vmatprep.subr.bf16.mxu0 %v2560
    %3464 = vmatpush1.bf16.msra.mxu0 %v2559
    %3465 = vmatprep.subr.bf16.mxu0 %v2564
    %3466 = vmatpush1.bf16.msra.mxu0 %v2563
    %3467 = vmatprep.subr.bf16.mxu0 %v2568
    %3468 = vmatpush1.bf16.msra.mxu0 %v2567
    %3469 = vmatprep.subr.bf16.mxu0 %v2572
    %3470 = vmatpush1.bf16.msra.mxu0 %v2571
    %3471 = vmatprep.subr.bf16.mxu0 %v2576
    %3472 = vmatpush1.bf16.msra.mxu0 %v2575
    %3473 = vmatprep.subr.bf16.mxu0 %v2580
    %3474 = vmatpush1.bf16.msra.mxu0 %v2579
    %3475 = vmatprep.subr.bf16.mxu0 %v2584
    %3476 = vmatpush1.bf16.msra.mxu0 %v2583
    %3477 = vmatprep.subr.bf16.mxu0 %v2588
    %3478 = vmatpush1.bf16.msra.mxu0 %v2587
    %3479 = vmatprep.subr.bf16.mxu0 0
    %3480 = vmatpush1.bf16.msra.mxu0 0
    %3481 = vmatprep.subr.bf16.mxu0 0
    %3482 = vmatpush1.bf16.msra.mxu0 0
    %3483 = vmatprep.subr.bf16.mxu0 0
    %3484 = vmatpush1.bf16.msra.mxu0 0
    %3485 = vmatprep.subr.bf16.mxu0 0
    %3486 = vmatpush1.bf16.msra.mxu0 0
    %3487 = vmatprep.subr.bf16.mxu0 0
    %3488 = vmatpush1.bf16.msra.mxu0 0
    %3489 = vmatprep.subr.bf16.mxu0 0
    %3490 = vmatpush1.bf16.msra.mxu0 0
    %3491 = vmatprep.subr.bf16.mxu0 0
    %3492 = vmatpush1.bf16.msra.mxu0 0
    %3493 = vmatprep.subr.bf16.mxu0 0
    %3494 = vmatpush1.bf16.msra.mxu0 0
    %3495 = vmatprep.mubr.bf16.mxu0 0
    %3496 = vmatmul.mubr.bf16.gmra.mrb[0].mxu0 %v2760
    %v3497 = vpop.f32.mrb[0].mxu0
    %v3498 = vadd.f32 %v3420, %v3497
    %v3499 = vpop.f32.mrb[0].mxu0
    %v3500 = vadd.f32 %v3421, %v3499
    %v3501 = vpop.f32.mrb[0].mxu0
    %v3502 = vpop.f32.mrb[0].mxu0
    %3503 = vdwg.mxu0
    %v3504 = vadd.f32 %v3457, %v2707
    %v3505 = vadd.f32 %v3459, %v2711
    %v3506 = vadd.f32 %v3498, %v2715
    %v3507 = vadd.f32 %v3500, %v2719
    %v3508 = vmul.f32 %v3504, 0.5
    %v3509 = vmul.f32 %v3505, 0.5
    %v3510 = vmul.f32 %v3506, 0.5
    %v3511 = vtanh.pop %v3508
    %v3512 = vtanh.pop %v3509
    %v3513 = vtanh.pop %v3510
    %v3514 = vmul.f32 %v3511, 0.5
    %v3515 = vmul.f32 %v3512, 0.5
    %v3516 = vmul.f32 %v3513, 0.5
    %v3517 = vadd.f32 %v3514, 0.5
    %v3518 = vadd.f32 %v3515, 0.5
    %v3519 = vadd.f32 %v3516, 0.5
    %v3520 = vtanh.pop %v3507
    %v3521 = vmul.f32 %v3518, %v2761
    %v3522 = vmul.f32 %v3517, %v3520
    %v3523 = vadd.f32 %v3521, %v3522
    %v3524 = vtanh.pop %v3523
    %v3525 = vmul.f32 %v3519, %v3524
    %v3526 = vpack.c.bf16 %v3525, %v3525
    %s3527 = scalar_lea.vmem [#allocation2], 1248
    %v3528 = vld [vmem:[%s3527] sm:$0xff]
    %v3529 = vld [vmem:[%s3527 + $0x8] sm:$0xff]
    %v3530 = vunpack.c.l.bf16 %v3528
    %v3531 = vunpack.c.h.bf16 %v3528
    %v3532 = vunpack.c.l.bf16 %v3529
    %v3533 = vunpack.c.h.bf16 %v3529
    %3534 = vmatprep.subr.bf16.mxu0 %v2558
    %3535 = vmatpush1.bf16.msra.mxu0 %v2557
    %3536 = vmatprep.subr.bf16.mxu0 %v2562
    %3537 = vmatpush1.bf16.msra.mxu0 %v2561
    %3538 = vmatprep.subr.bf16.mxu0 %v2566
    %3539 = vmatpush1.bf16.msra.mxu0 %v2565
    %3540 = vmatprep.subr.bf16.mxu0 %v2570
    %3541 = vmatpush1.bf16.msra.mxu0 %v2569
    %3542 = vmatprep.subr.bf16.mxu0 %v2574
    %3543 = vmatpush1.bf16.msra.mxu0 %v2573
    %3544 = vmatprep.subr.bf16.mxu0 %v2578
    %3545 = vmatpush1.bf16.msra.mxu0 %v2577
    %3546 = vmatprep.subr.bf16.mxu0 %v2582
    %3547 = vmatpush1.bf16.msra.mxu0 %v2581
    %3548 = vmatprep.subr.bf16.mxu0 %v2586
    %3549 = vmatpush1.bf16.msra.mxu0 %v2585
    %3550 = vmatprep.subr.bf16.mxu0 0
    %3551 = vmatpush1.bf16.msra.mxu0 0
    %3552 = vmatprep.subr.bf16.mxu0 0
    %3553 = vmatpush1.bf16.msra.mxu0 0
    %3554 = vmatprep.subr.bf16.mxu0 0
    %3555 = vmatpush1.bf16.msra.mxu0 0
    %3556 = vmatprep.subr.bf16.mxu0 0
    %3557 = vmatpush1.bf16.msra.mxu0 0
    %3558 = vmatprep.subr.bf16.mxu0 0
    %3559 = vmatpush1.bf16.msra.mxu0 0
    %3560 = vmatprep.subr.bf16.mxu0 0
    %3561 = vmatpush1.bf16.msra.mxu0 0
    %3562 = vmatprep.subr.bf16.mxu0 0
    %3563 = vmatpush1.bf16.msra.mxu0 0
    %3564 = vmatprep.subr.bf16.mxu0 0
    %3565 = vmatpush1.bf16.msra.mxu0 0
    %3566 = vmatprep.mubr.bf16.mxu0 0
    %3567 = vmatmul.mubr.bf16.gmra.mrb[0].mxu0 %v3526
    %v3568 = vpop.f32.mrb[0].mxu0
    %v3569 = vadd.f32 %v3530, %v3568
    %v3570 = vpop.f32.mrb[0].mxu0
    %v3571 = vadd.f32 %v3531, %v3570
    %v3572 = vpop.f32.mrb[0].mxu0
    %v3573 = vpop.f32.mrb[0].mxu0
    %3574 = vdwg.mxu0
    %3575 = vmatprep.subr.bf16.mxu0 %v2560
    %3576 = vmatpush1.bf16.msra.mxu0 %v2559
    %3577 = vmatprep.subr.bf16.mxu0 %v2564
    %3578 = vmatpush1.bf16.msra.mxu0 %v2563
    %3579 = vmatprep.subr.bf16.mxu0 %v2568
    %3580 = vmatpush1.bf16.msra.mxu0 %v2567
    %3581 = vmatprep.subr.bf16.mxu0 %v2572
    %3582 = vmatpush1.bf16.msra.mxu0 %v2571
    %3583 = vmatprep.subr.bf16.mxu0 %v2576
    %3584 = vmatpush1.bf16.msra.mxu0 %v2575
    %3585 = vmatprep.subr.bf16.mxu0 %v2580
    %3586 = vmatpush1.bf16.msra.mxu0 %v2579
    %3587 = vmatprep.subr.bf16.mxu0 %v2584
    %3588 = vmatpush1.bf16.msra.mxu0 %v2583
    %3589 = vmatprep.subr.bf16.mxu0 %v2588
    %3590 = vmatpush1.bf16.msra.mxu0 %v2587
    %3591 = vmatprep.subr.bf16.mxu0 0
    %3592 = vmatpush1.bf16.msra.mxu0 0
    %3593 = vmatprep.subr.bf16.mxu0 0
    %3594 = vmatpush1.bf16.msra.mxu0 0
    %3595 = vmatprep.subr.bf16.mxu0 0
    %3596 = vmatpush1.bf16.msra.mxu0 0
    %3597 = vmatprep.subr.bf16.mxu0 0
    %3598 = vmatpush1.bf16.msra.mxu0 0
    %3599 = vmatprep.subr.bf16.mxu0 0
    %3600 = vmatpush1.bf16.msra.mxu0 0
    %3601 = vmatprep.subr.bf16.mxu0 0
    %3602 = vmatpush1.bf16.msra.mxu0 0
    %3603 = vmatprep.subr.bf16.mxu0 0
    %3604 = vmatpush1.bf16.msra.mxu0 0
    %3605 = vmatprep.subr.bf16.mxu0 0
    %3606 = vmatpush1.bf16.msra.mxu0 0
    %3607 = vmatprep.mubr.bf16.mxu0 0
    %3608 = vmatmul.mubr.bf16.gmra.mrb[0].mxu0 %v3526
    %v3609 = vpop.f32.mrb[0].mxu0
    %v3610 = vadd.f32 %v3532, %v3609
    %v3611 = vpop.f32.mrb[0].mxu0
    %v3612 = vadd.f32 %v3533, %v3611
    %v3613 = vpop.f32.mrb[0].mxu0
    %v3614 = vpop.f32.mrb[0].mxu0
    %3615 = vdwg.mxu0
    %v3616 = vadd.f32 %v3569, %v2707
    %v3617 = vadd.f32 %v3571, %v2711
    %v3618 = vadd.f32 %v3610, %v2715
    %v3619 = vadd.f32 %v3612, %v2719
    %v3620 = vmul.f32 %v3616, 0.5
    %v3621 = vmul.f32 %v3617, 0.5
    %v3622 = vmul.f32 %v3618, 0.5
    %v3623 = vtanh.pop %v3620
    %v3624 = vtanh.pop %v3621
    %v3625 = vtanh.pop %v3622
    %v3626 = vmul.f32 %v3623, 0.5
    %v3627 = vmul.f32 %v3624, 0.5
    %v3628 = vmul.f32 %v3625, 0.5
    %v3629 = vadd.f32 %v3626, 0.5
    %v3630 = vadd.f32 %v3627, 0.5
    %v3631 = vadd.f32 %v3628, 0.5
    %v3632 = vtanh.pop %v3619
    %v3633 = vmul.f32 %v3630, %v3523
    %v3634 = vmul.f32 %v3629, %v3632
    %v3635 = vadd.f32 %v3633, %v3634
    %v3636 = vtanh.pop %v3635
    %v3637 = vmul.f32 %v3631, %v3636
    %v3638 = vpack.c.bf16 %v3637, %v3637
    %s3639 = scalar_lea.vmem [#allocation2], 1264
    %v3640 = vld [vmem:[%s3639] sm:$0xff]
    %v3641 = vld [vmem:[%s3639 + $0x8] sm:$0xff]
    %v3642 = vunpack.c.l.bf16 %v3640
    %v3643 = vunpack.c.h.bf16 %v3640
    %v3644 = vunpack.c.l.bf16 %v3641
    %v3645 = vunpack.c.h.bf16 %v3641
    %3646 = vmatprep.subr.bf16.mxu0 %v2558
    %3647 = vmatpush1.bf16.msra.mxu0 %v2557
    %3648 = vmatprep.subr.bf16.mxu0 %v2562
    %3649 = vmatpush1.bf16.msra.mxu0 %v2561
    %3650 = vmatprep.subr.bf16.mxu0 %v2566
    %3651 = vmatpush1.bf16.msra.mxu0 %v2565
    %3652 = vmatprep.subr.bf16.mxu0 %v2570
    %3653 = vmatpush1.bf16.msra.mxu0 %v2569
    %3654 = vmatprep.subr.bf16.mxu0 %v2574
    %3655 = vmatpush1.bf16.msra.mxu0 %v2573
    %3656 = vmatprep.subr.bf16.mxu0 %v2578
    %3657 = vmatpush1.bf16.msra.mxu0 %v2577
    %3658 = vmatprep.subr.bf16.mxu0 %v2582
    %3659 = vmatpush1.bf16.msra.mxu0 %v2581
    %3660 = vmatprep.subr.bf16.mxu0 %v2586
    %3661 = vmatpush1.bf16.msra.mxu0 %v2585
    %3662 = vmatprep.subr.bf16.mxu0 0
    %3663 = vmatpush1.bf16.msra.mxu0 0
    %3664 = vmatprep.subr.bf16.mxu0 0
    %3665 = vmatpush1.bf16.msra.mxu0 0
    %3666 = vmatprep.subr.bf16.mxu0 0
    %3667 = vmatpush1.bf16.msra.mxu0 0
    %3668 = vmatprep.subr.bf16.mxu0 0
    %3669 = vmatpush1.bf16.msra.mxu0 0
    %3670 = vmatprep.subr.bf16.mxu0 0
    %3671 = vmatpush1.bf16.msra.mxu0 0
    %3672 = vmatprep.subr.bf16.mxu0 0
    %3673 = vmatpush1.bf16.msra.mxu0 0
    %3674 = vmatprep.subr.bf16.mxu0 0
    %3675 = vmatpush1.bf16.msra.mxu0 0
    %3676 = vmatprep.subr.bf16.mxu0 0
    %3677 = vmatpush1.bf16.msra.mxu0 0
    %3678 = vmatprep.mubr.bf16.mxu0 0
    %3679 = vmatmul.mubr.bf16.gmra.mrb[0].mxu0 %v3638
    %v3680 = vpop.f32.mrb[0].mxu0
    %v3681 = vadd.f32 %v3642, %v3680
    %v3682 = vpop.f32.mrb[0].mxu0
    %v3683 = vadd.f32 %v3643, %v3682
    %v3684 = vpop.f32.mrb[0].mxu0
    %v3685 = vpop.f32.mrb[0].mxu0
    %3686 = vdwg.mxu0
    %3687 = vmatprep.subr.bf16.mxu0 %v2560
    %3688 = vmatpush1.bf16.msra.mxu0 %v2559
    %3689 = vmatprep.subr.bf16.mxu0 %v2564
    %3690 = vmatpush1.bf16.msra.mxu0 %v2563
    %3691 = vmatprep.subr.bf16.mxu0 %v2568
    %3692 = vmatpush1.bf16.msra.mxu0 %v2567
    %3693 = vmatprep.subr.bf16.mxu0 %v2572
    %3694 = vmatpush1.bf16.msra.mxu0 %v2571
    %3695 = vmatprep.subr.bf16.mxu0 %v2576
    %3696 = vmatpush1.bf16.msra.mxu0 %v2575
    %3697 = vmatprep.subr.bf16.mxu0 %v2580
    %3698 = vmatpush1.bf16.msra.mxu0 %v2579
    %3699 = vmatprep.subr.bf16.mxu0 %v2584
    %3700 = vmatpush1.bf16.msra.mxu0 %v2583
    %3701 = vmatprep.subr.bf16.mxu0 %v2588
    %3702 = vmatpush1.bf16.msra.mxu0 %v2587
    %3703 = vmatprep.subr.bf16.mxu0 0
    %3704 = vmatpush1.bf16.msra.mxu0 0
    %3705 = vmatprep.subr.bf16.mxu0 0
    %3706 = vmatpush1.bf16.msra.mxu0 0
    %3707 = vmatprep.subr.bf16.mxu0 0
    %3708 = vmatpush1.bf16.msra.mxu0 0
    %3709 = vmatprep.subr.bf16.mxu0 0
    %3710 = vmatpush1.bf16.msra.mxu0 0
    %3711 = vmatprep.subr.bf16.mxu0 0
    %3712 = vmatpush1.bf16.msra.mxu0 0
    %3713 = vmatprep.subr.bf16.mxu0 0
    %3714 = vmatpush1.bf16.msra.mxu0 0
    %3715 = vmatprep.subr.bf16.mxu0 0
    %3716 = vmatpush1.bf16.msra.mxu0 0
    %3717 = vmatprep.subr.bf16.mxu0 0
    %3718 = vmatpush1.bf16.msra.mxu0 0
    %3719 = vmatprep.mubr.bf16.mxu0 0
    %3720 = vmatmul.mubr.bf16.gmra.mrb[0].mxu0 %v3638
    %v3721 = vpop.f32.mrb[0].mxu0
    %v3722 = vadd.f32 %v3644, %v3721
    %v3723 = vpop.f32.mrb[0].mxu0
    %v3724 = vadd.f32 %v3645, %v3723
    %v3725 = vpop.f32.mrb[0].mxu0
    %v3726 = vpop.f32.mrb[0].mxu0
    %3727 = vdwg.mxu0
    %v3728 = vadd.f32 %v3681, %v2707
    %v3729 = vadd.f32 %v3683, %v2711
    %v3730 = vadd.f32 %v3722, %v2715
    %v3731 = vadd.f32 %v3724, %v2719
    %v3732 = vmul.f32 %v3728, 0.5
    %v3733 = vmul.f32 %v3729, 0.5
    %v3734 = vmul.f32 %v3730, 0.5
    %v3735 = vtanh.pop %v3732
    %v3736 = vtanh.pop %v3733
    %v3737 = vtanh.pop %v3734
    %v3738 = vmul.f32 %v3735, 0.5
    %v3739 = vmul.f32 %v3736, 0.5
    %v3740 = vmul.f32 %v3737, 0.5
    %v3741 = vadd.f32 %v3738, 0.5
    %v3742 = vadd.f32 %v3739, 0.5
    %v3743 = vadd.f32 %v3740, 0.5
    %v3744 = vtanh.pop %v3731
    %v3745 = vmul.f32 %v3742, %v3635
    %v3746 = vmul.f32 %v3741, %v3744
    %v3747 = vadd.f32 %v3745, %v3746
    %v3748 = vtanh.pop %v3747
    %v3749 = vmul.f32 %v3743, %v3748
    %v3750 = vpack.c.bf16 %v3749, %v3749
    %3751 = vmatprep.subr.bf16.mxu0 %v2558
    %3752 = vmatpush1.bf16.msra.mxu0 %v2557
    %3753 = vmatprep.subr.bf16.mxu0 %v2562
    %3754 = vmatpush1.bf16.msra.mxu0 %v2561
    %3755 = vmatprep.subr.bf16.mxu0 %v2566
    %3756 = vmatpush1.bf16.msra.mxu0 %v2565
    %3757 = vmatprep.subr.bf16.mxu0 %v2570
    %3758 = vmatpush1.bf16.msra.mxu0 %v2569
    %3759 = vmatprep.subr.bf16.mxu0 %v2574
    %3760 = vmatpush1.bf16.msra.mxu0 %v2573
    %3761 = vmatprep.subr.bf16.mxu0 %v2578
    %3762 = vmatpush1.bf16.msra.mxu0 %v2577
    %3763 = vmatprep.subr.bf16.mxu0 %v2582
    %3764 = vmatpush1.bf16.msra.mxu0 %v2581
    %3765 = vmatprep.subr.bf16.mxu0 %v2586
    %3766 = vmatpush1.bf16.msra.mxu0 %v2585
    %3767 = vmatprep.subr.bf16.mxu0 0
    %3768 = vmatpush1.bf16.msra.mxu0 0
    %3769 = vmatprep.subr.bf16.mxu0 0
    %3770 = vmatpush1.bf16.msra.mxu0 0
    %3771 = vmatprep.subr.bf16.mxu0 0
    %3772 = vmatpush1.bf16.msra.mxu0 0
    %3773 = vmatprep.subr.bf16.mxu0 0
    %3774 = vmatpush1.bf16.msra.mxu0 0
    %3775 = vmatprep.subr.bf16.mxu0 0
    %3776 = vmatpush1.bf16.msra.mxu0 0
    %3777 = vmatprep.subr.bf16.mxu0 0
    %3778 = vmatpush1.bf16.msra.mxu0 0
    %3779 = vmatprep.subr.bf16.mxu0 0
    %3780 = vmatpush1.bf16.msra.mxu0 0
    %3781 = vmatprep.subr.bf16.mxu0 0
    %3782 = vmatpush1.bf16.msra.mxu0 0
    %3783 = vmatprep.mubr.bf16.mxu0 0
    %3784 = vmatmul.mubr.bf16.gmra.mrb[0].mxu0 %v3750
    %v3785 = vpop.f32.mrb[0].mxu0
    %v3786 = vadd.f32 %v3642, %v3785
    %v3787 = vpop.f32.mrb[0].mxu0
    %v3788 = vadd.f32 %v3643, %v3787
    %v3789 = vpop.f32.mrb[0].mxu0
    %v3790 = vpop.f32.mrb[0].mxu0
    %3791 = vdwg.mxu0
    %3792 = vmatprep.subr.bf16.mxu0 %v2560
    %3793 = vmatpush1.bf16.msra.mxu0 %v2559
    %3794 = vmatprep.subr.bf16.mxu0 %v2564
    %3795 = vmatpush1.bf16.msra.mxu0 %v2563
    %3796 = vmatprep.subr.bf16.mxu0 %v2568
    %3797 = vmatpush1.bf16.msra.mxu0 %v2567
    %3798 = vmatprep.subr.bf16.mxu0 %v2572
    %3799 = vmatpush1.bf16.msra.mxu0 %v2571
    %3800 = vmatprep.subr.bf16.mxu0 %v2576
    %3801 = vmatpush1.bf16.msra.mxu0 %v2575
    %3802 = vmatprep.subr.bf16.mxu0 %v2580
    %3803 = vmatpush1.bf16.msra.mxu0 %v2579
    %3804 = vmatprep.subr.bf16.mxu0 %v2584
    %3805 = vmatpush1.bf16.msra.mxu0 %v2583
    %3806 = vmatprep.subr.bf16.mxu0 %v2588
    %3807 = vmatpush1.bf16.msra.mxu0 %v2587
    %3808 = vmatprep.subr.bf16.mxu0 0
    %3809 = vmatpush1.bf16.msra.mxu0 0
    %3810 = vmatprep.subr.bf16.mxu0 0
    %3811 = vmatpush1.bf16.msra.mxu0 0
    %3812 = vmatprep.subr.bf16.mxu0 0
    %3813 = vmatpush1.bf16.msra.mxu0 0
    %3814 = vmatprep.subr.bf16.mxu0 0
    %3815 = vmatpush1.bf16.msra.mxu0 0
    %3816 = vmatprep.subr.bf16.mxu0 0
    %3817 = vmatpush1.bf16.msra.mxu0 0
    %3818 = vmatprep.subr.bf16.mxu0 0
    %3819 = vmatpush1.bf16.msra.mxu0 0
    %3820 = vmatprep.subr.bf16.mxu0 0
    %3821 = vmatpush1.bf16.msra.mxu0 0
    %3822 = vmatprep.subr.bf16.mxu0 0
    %3823 = vmatpush1.bf16.msra.mxu0 0
    %3824 = vmatprep.mubr.bf16.mxu0 0
    %3825 = vmatmul.mubr.bf16.gmra.mrb[0].mxu0 %v3750
    %v3826 = vpop.f32.mrb[0].mxu0
    %v3827 = vadd.f32 %v3644, %v3826
    %v3828 = vpop.f32.mrb[0].mxu0
    %v3829 = vadd.f32 %v3645, %v3828
    %v3830 = vpop.f32.mrb[0].mxu0
    %v3831 = vpop.f32.mrb[0].mxu0
    %3832 = vdwg.mxu0
    %v3833 = vadd.f32 %v3786, %v2707
    %v3834 = vadd.f32 %v3788, %v2711
    %v3835 = vadd.f32 %v3827, %v2715
    %v3836 = vadd.f32 %v3829, %v2719
    %v3837 = vmul.f32 %v3833, 0.5
    %v3838 = vmul.f32 %v3834, 0.5
    %v3839 = vmul.f32 %v3835, 0.5
    %v3840 = vtanh.pop %v3837
    %v3841 = vtanh.pop %v3838
    %v3842 = vtanh.pop %v3839
    %v3843 = vmul.f32 %v3840, 0.5
    %v3844 = vmul.f32 %v3841, 0.5
    %v3845 = vmul.f32 %v3842, 0.5
    %v3846 = vadd.f32 %v3843, 0.5
    %v3847 = vadd.f32 %v3844, 0.5
    %v3848 = vadd.f32 %v3845, 0.5
    %v3849 = vtanh.pop %v3836
    %v3850 = vmul.f32 %v3847, %v3747
    %v3851 = vmul.f32 %v3846, %v3849
    %v3852 = vadd.f32 %v3850, %v3851
    %v3853 = vtanh.pop %v3852
    %v3854 = vmul.f32 %v3848, %v3853
    %v3855 = vmax.f32 %v3854, 0.0
    %v3856 = vld [vmem:[%s4] sm:$0xff]
    %v3857 = vld [vmem:[%s4 + $0x8] sm:$0xff]
    %v3858 = vld [vmem:[%s4 + $0x10] sm:$0xff]
    %v3859 = vld [vmem:[%s4 + $0x18] sm:$0xff]
    %v3860 = vld [vmem:[%s4 + $0x20] sm:$0xff]
    %v3861 = vld [vmem:[%s4 + $0x28] sm:$0xff]
    %v3862 = vld [vmem:[%s4 + $0x30] sm:$0xff]
    %v3863 = vld [vmem:[%s4 + $0x38] sm:$0xff]
    %v3864 = vld [vmem:[%s5] sm:$0x1]
    %v3866 = vlaneseq
    %v3867 = vshrl.u32 %v3866, 7
    %v3868 = vsub.s32 0, %v3867
    %v3869 = vrot.slane %v3864, %v3868
    %3872 = vrot.lane.b32.xlu0 %v3855, 64
    %v3873 = vpop.permute.xlu0 %3872
    %vm3874 = vcmask 523264
    %v3875 = vsel %vm3874, %v3873, 0
    %3877 = vmatprep.subr.mxu0 0.0
    %3878 = vmatpush1.msra.mxu0 %v3856
    %3879 = vmatprep.subr.mxu0 0.0
    %3880 = vmatpush1.msra.mxu0 %v3857
    %3881 = vmatprep.subr.mxu0 0.0
    %3882 = vmatpush1.msra.mxu0 %v3858
    %3883 = vmatprep.subr.mxu0 0.0
    %3884 = vmatpush1.msra.mxu0 %v3859
    %3885 = vmatprep.subr.mxu0 0.0
    %3886 = vmatpush1.msra.mxu0 %v3860
    %3887 = vmatprep.subr.mxu0 0.0
    %3888 = vmatpush1.msra.mxu0 %v3861
    %3889 = vmatprep.subr.mxu0 0.0
    %3890 = vmatpush1.msra.mxu0 %v3862
    %3891 = vmatprep.subr.mxu0 0.0
    %3892 = vmatpush1.msra.mxu0 %v3863
    %3893 = vmatprep.subr.mxu0 0.0
    %3894 = vmatpush1.msra.mxu0 0.0
    %3895 = vmatprep.subr.mxu0 0.0
    %3896 = vmatpush1.msra.mxu0 0.0
    %3897 = vmatprep.subr.mxu0 0.0
    %3898 = vmatpush1.msra.mxu0 0.0
    %3899 = vmatprep.subr.mxu0 0.0
    %3900 = vmatpush1.msra.mxu0 0.0
    %3901 = vmatprep.subr.mxu0 0.0
    %3902 = vmatpush1.msra.mxu0 0.0
    %3903 = vmatprep.subr.mxu0 0.0
    %3904 = vmatpush1.msra.mxu0 0.0
    %3905 = vmatprep.subr.mxu0 0.0
    %3906 = vmatpush1.msra.mxu0 0.0
    %3907 = vmatprep.subr.mxu0 0.0
    %3908 = vmatpush1.msra.mxu0 0.0
    %3909 = vmatprep.subr.mxu0 0.0
    %3910 = vmatpush1.msra.mxu0 0.0
    %3911 = vmatprep.subr.mxu0 0.0
    %3912 = vmatpush1.msra.mxu0 0.0
    %3913 = vmatprep.subr.mxu0 0.0
    %3914 = vmatpush1.msra.mxu0 0.0
    %3915 = vmatprep.subr.mxu0 0.0
    %3916 = vmatpush1.msra.mxu0 0.0
    %3917 = vmatprep.subr.mxu0 0.0
    %3918 = vmatpush1.msra.mxu0 0.0
    %3919 = vmatprep.subr.mxu0 0.0
    %3920 = vmatpush1.msra.mxu0 0.0
    %3921 = vmatprep.subr.mxu0 0.0
    %3922 = vmatpush1.msra.mxu0 0.0
    %3923 = vmatprep.subr.mxu0 0.0
    %3924 = vmatpush1.msra.mxu0 0.0
    %3925 = vmatprep.subr.mxu0 0.0
    %3926 = vmatpush1.msra.mxu0 0.0
    %3927 = vmatprep.subr.mxu0 0.0
    %3928 = vmatpush1.msra.mxu0 0.0
    %3929 = vmatprep.subr.mxu0 0.0
    %3930 = vmatpush1.msra.mxu0 0.0
    %3931 = vmatprep.subr.mxu0 0.0
    %3932 = vmatpush1.msra.mxu0 0.0
    %3933 = vmatprep.subr.mxu0 0.0
    %3934 = vmatpush1.msra.mxu0 0.0
    %3935 = vmatprep.subr.mxu0 0.0
    %3936 = vmatpush1.msra.mxu0 0.0
    %3937 = vmatprep.subr.mxu0 0.0
    %3938 = vmatpush1.msra.mxu0 0.0
    %3939 = vmatprep.subr.mxu0 0.0
    %3940 = vmatpush1.msra.mxu0 0.0
    %3941 = vmatprep.mubr.f32.mxu0 0.0
    %3942 = vmatmul.mubr.f32.gmra.mrb[0].mxu0 %v3875
    %v3943 = vpop.f32.mrb[0].mxu0
    %v3944 = vadd.f32 %v3869, %v3943
    %v3945 = vpop.f32.mrb[0].mxu0
    %3946 = vdwg.mxu0
    %vm3947 = vcmask 23552
    %v3948 = vsel %vm3947, %v3944, -inf
    %3949 = vmax.xlane.f32.xlu0 %v3948
    %v3950 = vpop.xlane.xlu0 %3949
    %v3951 = vsub.f32 %v3944, %v3950
    %v3952 = vmul.f32 %v3951, 1.442695
    %v3953 = vpow.pop %v3952
    %v3954 = vsel %vm3947, %v3953, 0.0
    %3955 = vadd.xlane.f32.xlu0 %v3954
    %v3956 = vpop.xlane.xlu0 %3955
    %v3957 = vrcp.pop %v3956
    %v3958 = vmul.f32 %v3953, %v3957
    %3959 = vst.msk [vmem:[%s6] sm:$0xff] %vm3947, %v3958
    // Predicated region
    $region37: #{tpu_custom_call.1} parent=1 // pred_check
      _
    $region38: #{tpu_custom_call.1} parent=1 // pred_check_branch
      %3961 = sbr.rel (0) target = $region40
    $region39: #{tpu_custom_call.1} parent=1 // pred_region
      _
    $region40: #{tpu_custom_call.1} parent=1 // pred_fallthru
      _
    // Predicated region
    $region41: #{tpu_custom_call.1} parent=1 // pred_check
      _
    $region42: #{tpu_custom_call.1} parent=1 // pred_check_branch
      %3963 = sbr.rel (0) target = $region44
    $region43: #{tpu_custom_call.1} parent=1 // pred_region
      _
    $region44: #{tpu_custom_call.1} parent=1 // pred_fallthru
      _
    %3964 = vsyncpa [#allocation4], 1

</llo_original>
